<compile_context>
chip_gen: v5e
topology: v5e:2x2
jax: 0.10.0
libtpu: 0.0.40
codegen_flags: <defaults>
</compile_context>

<pallas_src>
import jax
import jax.numpy as jnp
from jax.experimental import pallas as pl
from jax.experimental.pallas import tpu as pltpu


# ----------------------------- tiling helpers --------------------------------

def _pick_tile(n, cap):
    """Largest divisor of n that is a multiple of 8 and <= cap (fallback: n)."""
    for t in range(min(n, cap), 7, -1):
        if n % t == 0 and t % 8 == 0:
            return t
    return n


def _vmem_limit(*block_bytes):
    """Explicit scoped-VMEM limit: double-buffered blocks + headroom, capped
    at v7x's 64 MiB so one config is safe on every generation."""
    need = 2 * int(sum(int(b) for b in block_bytes)) + (4 << 20)
    return int(min(max(need, 16 << 20), 64 << 20))


# Demo-scale tile caps (HW = 64 here).  At production resolution / channel
# counts these would be derived from the per-generation VMEM budget
# (v7x 64 MiB, v5e/v6e 128 MiB); the grid / tiling structure is unchanged.
_ROW_TILE_CAP = 32     # proj / back spatial row tiles
_PAM_TILE_CAP = 32     # PAM flash query / key tiles


# ----------------------------- Pallas kernels --------------------------------

def proj_kernel(xcol_ref, w5ac_ref, s5ac_ref, wqkv_ref, bqkv_ref,
                f1_ref, f2_ref, q_ref, k_ref, v_ref):
    """Fused conv5a|conv5c (im2col matmul, BN folded, ReLU) + PAM q/k/v proj.

    xcol_ref : (1, T, 9*Cin)         bf16   im2col'ed c4 row tile
    w5ac_ref : (9*Cin, 2*inter)      bf16   [conv5a | conv5c], BN scale folded
    s5ac_ref : (1, 2*inter)          f32    BN shifts
    wqkv_ref : (inter, 2*c8p+inter)  bf16   fused PAM q/k/v 1x1 weights
    bqkv_ref : (1, 2*c8p+inter)      f32
    outputs  : feat1, feat2, q, k, v (bf16, lane-dense full-block stores)
    """
    inter = f1_ref.shape[-1]
    c8p = q_ref.shape[-1]

    xcol = xcol_ref[0]                                       # (T, 9*Cin) bf16
    feats = jnp.maximum(
        jnp.dot(xcol, w5ac_ref[...], preferred_element_type=jnp.float32)
        + s5ac_ref[...], 0.0)                                # (T, 2*inter) f32
    feat1 = feats[:, :inter]
    feat2 = feats[:, inter:]

    qkv = jnp.dot(feat1.astype(jnp.bfloat16), wqkv_ref[...],
                  preferred_element_type=jnp.float32) + bqkv_ref[...]

    f1_ref[0] = feat1.astype(f1_ref.dtype)
    f2_ref[0] = feat2.astype(f2_ref.dtype)
    q_ref[0] = qkv[:, :c8p].astype(q_ref.dtype)
    k_ref[0] = qkv[:, c8p:2 * c8p].astype(k_ref.dtype)
    v_ref[0] = qkv[:, 2 * c8p:].astype(v_ref.dtype)


def pam_flash_kernel(q_ref, k_ref, v_ref, f1_ref, gam_ref, o_ref,
                     m_sc, l_sc, acc_sc):
    """PAM position attention, flash-style online softmax over key tiles.

    grid = (B, q_tiles, kv_tiles); kv axis is last and "arbitrary".
    q_ref : (1, TQ, c8p) bf16    k_ref/v_ref : (1, TK, c8p/inter) bf16
    f1_ref: (1, TQ, inter) bf16 residual     gam_ref : (1,) f32 SMEM
    o_ref : (1, TQ, inter) bf16  sa_feat = gamma * attn(v) + feat1
    scratch: m (TQ,1), l (TQ,1), acc (TQ,inter) f32
    """
    kv = pl.program_id(2)

    @pl.when(kv == 0)
    def _():
        m_sc[...] = jnp.full_like(m_sc[...], -jnp.inf)
        l_sc[...] = jnp.zeros_like(l_sc[...])
        acc_sc[...] = jnp.zeros_like(acc_sc[...])

    q = q_ref[0]                                             # (TQ, c8p)  bf16
    k = k_ref[0]                                             # (TK, c8p)  bf16
    v = v_ref[0]                                             # (TK, inter) bf16

    # energy[i, j] = q_i . k_j
    s = jax.lax.dot_general(q, k, (((1,), (1,)), ((), ())),
                            preferred_element_type=jnp.float32)  # (TQ, TK) f32
    m_prev = m_sc[...]
    m_new = jnp.maximum(m_prev, jnp.max(s, axis=-1, keepdims=True))
    alpha = jnp.exp(m_prev - m_new)
    p = jnp.exp(s - m_new)                                   # f32 numerator
    l_sc[...] = alpha * l_sc[...] + jnp.sum(p, axis=-1, keepdims=True)
    acc_sc[...] = alpha * acc_sc[...] + jnp.dot(
        p.astype(jnp.bfloat16), v, preferred_element_type=jnp.float32)
    m_sc[...] = m_new

    @pl.when(kv == pl.num_programs(2) - 1)
    def _():
        inv_l = pl.reciprocal(l_sc[...], approx=True)
        pam = acc_sc[...] * inv_l                            # (TQ, inter) f32
        o_ref[0] = (gam_ref[0] * pam
                    + f1_ref[0].astype(jnp.float32)).astype(o_ref.dtype)


def cam_kernel(f2_ref, gam_ref, o_ref):
    """CAM channel attention (full HW per batch; (C,C) working set is tiny).

    f2_ref : (1, HW, inter) bf16     gam_ref : (1,) f32 SMEM
    o_ref  : (1, HW, inter) bf16     sc_feat = gamma * attn(feat2) + feat2
    """
    f2 = f2_ref[0]                                           # (HW, inter) bf16
    # energy[c, c'] = <channel_c, channel_c'> over spatial positions
    energy = jax.lax.dot_general(f2, f2, (((0,), (0,)), ((), ())),
                                 preferred_element_type=jnp.float32)
    energy_new = jnp.max(energy, axis=-1, keepdims=True) - energy
    energy_new = energy_new - jnp.max(energy_new, axis=-1, keepdims=True)
    p = jnp.exp(energy_new)
    attn = (p * pl.reciprocal(jnp.sum(p, axis=-1, keepdims=True), approx=True)
            ).astype(jnp.bfloat16)                           # (C, C) bf16
    # cam[hw, c] = sum_c' f2[hw, c'] * attn[c, c']
    cam = jax.lax.dot_general(f2, attn, (((1,), (1,)), ((), ())),
                              preferred_element_type=jnp.float32)
    o_ref[0] = (gam_ref[0] * cam + f2.astype(jnp.float32)).astype(o_ref.dtype)


def back_kernel(xsa_ref, xsc_ref, w51_ref, s51_ref, w52_ref, s52_ref,
                sa_ref, sc_ref):
    """conv51 / conv52 (dense im2col matmuls + BN shift + ReLU), no zero pad.

    xsa/xsc : (1, T, 9*inter) bf16  channel-block-major im2col tiles
    w51/w52 : (9*inter, inter) bf16  BN scale folded;  s51/s52 : (1, inter) f32
    sa/sc   : (1, T, inter) bf16     sa_conv / sc_conv
    """
    sa = jnp.maximum(
        jnp.dot(xsa_ref[0], w51_ref[...], preferred_element_type=jnp.float32)
        + s51_ref[...], 0.0)
    sc = jnp.maximum(
        jnp.dot(xsc_ref[0], w52_ref[...], preferred_element_type=jnp.float32)
        + s52_ref[...], 0.0)
    sa_ref[0] = sa.astype(sa_ref.dtype)
    sc_ref[0] = sc.astype(sc_ref.dtype)


# ------------------------------ thin wrappers ---------------------------------

def im2col_3x3(x):
    """(B, H, W, C) -> (B, H*W, 9*C), pad=1, tap-major / channel-minor order."""
    B, H, W, C = x.shape
    xp = jnp.pad(x, ((0, 0), (1, 1), (1, 1), (0, 0)))
    cols = [xp[:, di:di + H, dj:dj + W, :] for di in range(3) for dj in range(3)]
    return jnp.concatenate(cols, axis=-1).reshape(B, H * W, 9 * C)


def head_proj(xcol, w5ac, s5ac, wqkv, bqkv, *, tile):
    B, HW, K = xcol.shape
    inter2 = w5ac.shape[-1]
    inter = inter2 // 2
    qkvw = wqkv.shape[-1]
    c8p = (qkvw - inter) // 2
    nT = HW // tile

    cost = pl.CostEstimate(
        flops=int(2 * B * HW * (K * inter2 + inter * qkvw)),
        transcendentals=0,
        bytes_accessed=int(2 * (xcol.size + w5ac.size + wqkv.size
                                + B * HW * (inter2 + 2 * c8p + inter))))
    vmem = _vmem_limit(tile * K * 2, K * inter2 * 2, inter * qkvw * 2,
                       tile * (inter2 + 2 * c8p + inter) * 2)

    return pl.pallas_call(
        proj_kernel,
        out_shape=(
            jax.ShapeDtypeStruct((B, HW, inter), jnp.bfloat16),   # feat1
            jax.ShapeDtypeStruct((B, HW, inter), jnp.bfloat16),   # feat2
            jax.ShapeDtypeStruct((B, HW, c8p), jnp.bfloat16),     # q
            jax.ShapeDtypeStruct((B, HW, c8p), jnp.bfloat16),     # k
            jax.ShapeDtypeStruct((B, HW, inter), jnp.bfloat16),   # v
        ),
        grid=(B, nT),
        in_specs=[
            pl.BlockSpec((1, tile, K), lambda b, t: (b, t, 0)),
            pl.BlockSpec((K, inter2), lambda b, t: (0, 0)),
            pl.BlockSpec((1, inter2), lambda b, t: (0, 0)),
            pl.BlockSpec((inter, qkvw), lambda b, t: (0, 0)),
            pl.BlockSpec((1, qkvw), lambda b, t: (0, 0)),
        ],
        out_specs=(
            pl.BlockSpec((1, tile, inter), lambda b, t: (b, t, 0)),
            pl.BlockSpec((1, tile, inter), lambda b, t: (b, t, 0)),
            pl.BlockSpec((1, tile, c8p), lambda b, t: (b, t, 0)),
            pl.BlockSpec((1, tile, c8p), lambda b, t: (b, t, 0)),
            pl.BlockSpec((1, tile, inter), lambda b, t: (b, t, 0)),
        ),
        compiler_params=pltpu.CompilerParams(
            dimension_semantics=("parallel", "parallel"),
            vmem_limit_bytes=vmem),
        cost_estimate=cost,
    )(xcol, w5ac, s5ac, wqkv, bqkv)


def pam_attention(q, k, v, f1, gamma, *, tq, tk):
    B, HW, c8p = q.shape
    inter = v.shape[-1]
    nQ, nK = HW // tq, HW // tk

    cost = pl.CostEstimate(
        flops=int(2 * B * HW * HW * (c8p + inter)),
        transcendentals=int(B * HW * HW),
        bytes_accessed=int(2 * (q.size + f1.size + B * HW * inter
                                + nQ * (k.size + v.size) // B * B)))
    vmem = _vmem_limit(tq * c8p * 2, tk * c8p * 2, tk * inter * 2,
                       tq * inter * 2, tq * inter * 4, tq * tk * 4)

    return pl.pallas_call(
        pam_flash_kernel,
        out_shape=jax.ShapeDtypeStruct((B, HW, inter), jnp.bfloat16),
        grid=(B, nQ, nK),
        in_specs=[
            pl.BlockSpec((1, tq, c8p), lambda b, qi, ki: (b, qi, 0)),
            pl.BlockSpec((1, tk, c8p), lambda b, qi, ki: (b, ki, 0)),
            pl.BlockSpec((1, tk, inter), lambda b, qi, ki: (b, ki, 0)),
            pl.BlockSpec((1, tq, inter), lambda b, qi, ki: (b, qi, 0)),
            pl.BlockSpec(memory_space=pltpu.MemorySpace.SMEM),
        ],
        out_specs=pl.BlockSpec((1, tq, inter), lambda b, qi, ki: (b, qi, 0)),
        scratch_shapes=[
            pltpu.VMEM((tq, 1), jnp.float32),       # running max
            pltpu.VMEM((tq, 1), jnp.float32),       # running sum
            pltpu.VMEM((tq, inter), jnp.float32),   # accumulator
        ],
        compiler_params=pltpu.CompilerParams(
            dimension_semantics=("parallel", "parallel", "arbitrary"),
            vmem_limit_bytes=vmem),
        cost_estimate=cost,
    )(q, k, v, f1, gamma)


def cam_attention(f2, gamma):
    B, HW, inter = f2.shape
    cost = pl.CostEstimate(
        flops=int(4 * B * HW * inter * inter),
        transcendentals=int(B * inter * inter),
        bytes_accessed=int(2 * 2 * f2.size))
    vmem = _vmem_limit(HW * inter * 2, HW * inter * 2, inter * inter * 4)

    return pl.pallas_call(
        cam_kernel,
        out_shape=jax.ShapeDtypeStruct((B, HW, inter), jnp.bfloat16),
        grid=(B,),
        in_specs=[
            pl.BlockSpec((1, HW, inter), lambda b: (b, 0, 0)),
            pl.BlockSpec(memory_space=pltpu.MemorySpace.SMEM),
        ],
        out_specs=pl.BlockSpec((1, HW, inter), lambda b: (b, 0, 0)),
        compiler_params=pltpu.CompilerParams(
            dimension_semantics=("parallel",),
            vmem_limit_bytes=vmem),
        cost_estimate=cost,
    )(f2, gamma)


def head_back(xsa, xsc, w51, s51, w52, s52, *, tile):
    B, HW, K = xsa.shape
    inter = w51.shape[-1]
    nT = HW // tile

    cost = pl.CostEstimate(
        flops=int(2 * 2 * B * HW * K * inter),
        transcendentals=0,
        bytes_accessed=int(2 * (xsa.size + xsc.size + w51.size + w52.size
                                + 2 * B * HW * inter)))
    vmem = _vmem_limit(2 * tile * K * 2, 2 * K * inter * 2, 2 * tile * inter * 2)

    return pl.pallas_call(
        back_kernel,
        out_shape=(jax.ShapeDtypeStruct((B, HW, inter), jnp.bfloat16),
                   jax.ShapeDtypeStruct((B, HW, inter), jnp.bfloat16)),
        grid=(B, nT),
        in_specs=[
            pl.BlockSpec((1, tile, K), lambda b, t: (b, t, 0)),
            pl.BlockSpec((1, tile, K), lambda b, t: (b, t, 0)),
            pl.BlockSpec((K, inter), lambda b, t: (0, 0)),
            pl.BlockSpec((1, inter), lambda b, t: (0, 0)),
            pl.BlockSpec((K, inter), lambda b, t: (0, 0)),
            pl.BlockSpec((1, inter), lambda b, t: (0, 0)),
        ],
        out_specs=(pl.BlockSpec((1, tile, inter), lambda b, t: (b, t, 0)),
                   pl.BlockSpec((1, tile, inter), lambda b, t: (b, t, 0))),
        compiler_params=pltpu.CompilerParams(
            dimension_semantics=("parallel", "parallel"),
            vmem_limit_bytes=vmem),
        cost_estimate=cost,
    )(xsa, xsc, w51, s51, w52, s52)


# ------------------------------- parameters -----------------------------------

def init_params(key, in_backbone=3, head_in=64, nclass=1):
    inter = head_in // 4
    c8 = max(inter // 8, 1)
    keys = jax.random.split(key, 12)
    eps = 1e-5

    def kaiming_conv(k, kh, kw, cin, cout):
        fan_out = cout * kh * kw                       # mode='fan_out', relu
        return jax.random.normal(k, (kh, kw, cin, cout), jnp.float32) * \
            jnp.sqrt(2.0 / fan_out)

    def bn_fold(c):
        # fresh BatchNorm2d: weight=1, bias=0, running_mean=0, running_var=1
        scale = jnp.full((c,), 1.0 / jnp.sqrt(1.0 + eps), jnp.float32)
        shift = jnp.zeros((c,), jnp.float32)
        return scale, shift

    p = {}
    p['stem_w'] = kaiming_conv(keys[0], 3, 3, in_backbone, head_in)
    p['stem_scale'], p['stem_shift'] = bn_fold(head_in)
    p['conv5a_w'] = kaiming_conv(keys[1], 3, 3, head_in, inter)
    p['bn5a_scale'], p['bn5a_shift'] = bn_fold(inter)
    p['conv5c_w'] = kaiming_conv(keys[2], 3, 3, head_in, inter)
    p['bn5c_scale'], p['bn5c_shift'] = bn_fold(inter)
    p['pam_wq'] = kaiming_conv(keys[3], 1, 1, inter, c8).reshape(inter, c8)
    p['pam_bq'] = jnp.zeros((c8,), jnp.float32)
    p['pam_wk'] = kaiming_conv(keys[4], 1, 1, inter, c8).reshape(inter, c8)
    p['pam_bk'] = jnp.zeros((c8,), jnp.float32)
    p['pam_wv'] = kaiming_conv(keys[5], 1, 1, inter, inter).reshape(inter, inter)
    p['pam_bv'] = jnp.zeros((inter,), jnp.float32)
    p['pam_gamma'] = jnp.zeros((1,), jnp.float32)      # Parameter(torch.zeros(1))
    p['cam_gamma'] = jnp.zeros((1,), jnp.float32)
    p['conv51_w'] = kaiming_conv(keys[6], 3, 3, inter, inter)
    p['bn51_scale'], p['bn51_shift'] = bn_fold(inter)
    p['conv52_w'] = kaiming_conv(keys[7], 3, 3, inter, inter)
    p['bn52_scale'], p['bn52_shift'] = bn_fold(inter)
    p['conv6_w'] = kaiming_conv(keys[8], 1, 1, inter, nclass).reshape(inter, nclass)
    p['conv6_b'] = jnp.zeros((nclass,), jnp.float32)
    p['conv7_w'] = kaiming_conv(keys[9], 1, 1, inter, nclass).reshape(inter, nclass)
    p['conv7_b'] = jnp.zeros((nclass,), jnp.float32)
    p['conv8_w'] = kaiming_conv(keys[10], 1, 1, inter, nclass).reshape(inter, nclass)
    p['conv8_b'] = jnp.zeros((nclass,), jnp.float32)
    return p


def fold_params(p):
    """One-time (outside jit) fusion of weights into the kernel operand layout."""
    inter = p['conv5a_w'].shape[-1]
    c8 = p['pam_wq'].shape[-1]
    c8p = max(8, c8)                                   # pad q/k width for lane fill

    def fold3x3(w, scale):
        kh, kw, cin, cout = w.shape
        return (w * scale[None, None, None, :]).reshape(kh * kw * cin, cout)

    fp = {}
    # stem stand-in stays XLA-side
    fp['stem_w'] = p['stem_w']
    fp['stem_scale'] = p['stem_scale']
    fp['stem_shift'] = p['stem_shift']

    # conv5a | conv5c fused into one matmul (BN scale folded, bf16 weights)
    fp['w5ac'] = jnp.concatenate(
        [fold3x3(p['conv5a_w'], p['bn5a_scale']),
         fold3x3(p['conv5c_w'], p['bn5c_scale'])], axis=1).astype(jnp.bfloat16)
    fp['s5ac'] = jnp.concatenate(
        [p['bn5a_shift'], p['bn5c_shift']]).reshape(1, 2 * inter)

    # fused PAM q/k/v (q,k zero-padded to c8p lanes -> identical energies)
    wq = jnp.zeros((inter, c8p), jnp.float32).at[:, :c8].set(p['pam_wq'])
    wk = jnp.zeros((inter, c8p), jnp.float32).at[:, :c8].set(p['pam_wk'])
    bq = jnp.zeros((c8p,), jnp.float32).at[:c8].set(p['pam_bq'])
    bk = jnp.zeros((c8p,), jnp.float32).at[:c8].set(p['pam_bk'])
    fp['wqkv'] = jnp.concatenate([wq, wk, p['pam_wv']], axis=1).astype(jnp.bfloat16)
    fp['bqkv'] = jnp.concatenate([bq, bk, p['pam_bv']]).reshape(1, 2 * c8p + inter)
    fp['pam_gamma'] = p['pam_gamma']
    fp['cam_gamma'] = p['cam_gamma']

    # conv51 / conv52 as two DENSE matmuls (no block-diagonal zeros)
    fp['w51'] = fold3x3(p['conv51_w'], p['bn51_scale']).astype(jnp.bfloat16)
    fp['s51'] = p['bn51_shift'].reshape(1, inter)
    fp['w52'] = fold3x3(p['conv52_w'], p['bn52_scale']).astype(jnp.bfloat16)
    fp['s52'] = p['bn52_shift'].reshape(1, inter)

    # tiny 1x1 classifiers (conv6/conv7/conv8) stay XLA-side, f32
    fp['w6'], fp['b6'] = p['conv6_w'], p['conv6_b']
    fp['w7'], fp['b7'] = p['conv7_w'], p['conv7_b']
    fp['w8'], fp['b8'] = p['conv8_w'], p['conv8_b']
    return fp


# --------------------------------- forward ------------------------------------

def danet_forward(x_nchw, fp):
    B, _, H, W = x_nchw.shape
    x = jnp.transpose(x_nchw, (0, 2, 3, 1)).astype(jnp.float32)   # -> NHWC

    # TODO(synk): ResNet101 backbone stand-in (see header comment).
    c4 = jax.lax.conv_general_dilated(
        x, fp['stem_w'], (1, 1), 'SAME',
        dimension_numbers=('NHWC', 'HWIO', 'NHWC'))
    c4 = jnp.maximum(c4 * fp['stem_scale'] + fp['stem_shift'], 0.0)
    c4 = c4[:, ::8, ::8, :]                                       # output stride 8
    Bc, Hc, Wc, _ = c4.shape
    HW = Hc * Wc
    inter = fp['s5ac'].shape[-1] // 2
    nclass = fp['w6'].shape[-1]

    row_tile = _pick_tile(HW, _ROW_TILE_CAP)
    pam_tile = _pick_tile(HW, _PAM_TILE_CAP)

    # --- Kernel 1: conv5a|conv5c (+BN+ReLU) + PAM q/k/v projections ----------
    xcol = im2col_3x3(c4.astype(jnp.bfloat16))                    # (B, HW, 9*Cin)
    feat1, feat2, q, k, v = head_proj(xcol, fp['w5ac'], fp['s5ac'],
                                      fp['wqkv'], fp['bqkv'], tile=row_tile)

    # --- Kernel 2: PAM flash attention (online softmax over key tiles) -------
    sa_feat = pam_attention(q, k, v, feat1, fp['pam_gamma'],
                            tq=pam_tile, tk=pam_tile)             # (B, HW, inter)

    # --- Kernel 3: CAM channel attention --------------------------------------
    sc_feat = cam_attention(feat2, fp['cam_gamma'])               # (B, HW, inter)

    # --- Kernel 4: conv51 / conv52 (+BN+ReLU), dense channel-block matmuls ----
    xsa_col = im2col_3x3(sa_feat.reshape(Bc, Hc, Wc, inter))      # (B, HW, 9*inter)
    xsc_col = im2col_3x3(sc_feat.reshape(Bc, Hc, Wc, inter))
    sa_conv, sc_conv = head_back(xsa_col, xsc_col, fp['w51'], fp['s51'],
                                 fp['w52'], fp['s52'], tile=row_tile)

    # conv6 / conv7 / conv8 (1x1, Dropout2d = identity in eval): tiny, XLA-side
    sa_conv = sa_conv.astype(jnp.float32)
    sc_conv = sc_conv.astype(jnp.float32)
    sa_logits = sa_conv @ fp['w6'] + fp['b6']                     # (B, HW, nclass)
    sc_logits = sc_conv @ fp['w7'] + fp['b7']
    sasc_logits = (sa_conv + sc_conv) @ fp['w8'] + fp['b8']

    # bilinear upsample to input size (align_corners=False), return NCHW
    def up(t):
        t = t.reshape(Bc, Hc, Wc, nclass)
        t = jax.image.resize(t, (Bc, H, W, nclass), method='bilinear')
        return jnp.transpose(t, (0, 3, 1, 2))

    return up(sasc_logits), up(sa_logits), up(sc_logits)


# ----------------------------------- main --------------------------------------

if __name__ == "__main__":
    B, H, W = 2, 64, 64
    x = jax.random.normal(jax.random.PRNGKey(0), (B, 3, H, W), jnp.float32)  # NCHW
    params = init_params(jax.random.PRNGKey(1), in_backbone=3, head_in=64, nclass=1)
    # The module initializes gamma=0 (attention branch contributes nothing);
    # override with nonzero values so the PAM/CAM paths are actually exercised.
    params['pam_gamma'] = jnp.array([0.5], jnp.float32)
    params['cam_gamma'] = jnp.array([0.3], jnp.float32)
    fused = fold_params(params)   # one-time weight fusion (outside jit)

    fwd = jax.jit(danet_forward)
    outs = fwd(x, fused)
    outs = jax.block_until_ready(outs)

    assert outs[0].shape == (B, 1, H, W)
    assert outs[1].shape == (B, 1, H, W)
    assert outs[2].shape == (B, 1, H, W)
    assert all(bool(jnp.all(jnp.isfinite(o))) for o in outs)
    print("KERNEL_OK")
</pallas_src>

<mosaic_0001>
module attributes {stable_mosaic.version = 11 : i64} {
  func.func @proj_kernel(%arg0: i32, %arg1: i32, %arg2: memref<1x32x576xbf16, #tpu.memory_space<vmem>>, %arg3: memref<576x32xbf16, #tpu.memory_space<vmem>>, %arg4: memref<1x32xf32, #tpu.memory_space<vmem>>, %arg5: memref<16x32xbf16, #tpu.memory_space<vmem>>, %arg6: memref<1x32xf32, #tpu.memory_space<vmem>>, %arg7: memref<1x32x16xbf16, #tpu.memory_space<vmem>>, %arg8: memref<1x32x16xbf16, #tpu.memory_space<vmem>>, %arg9: memref<1x32x8xbf16, #tpu.memory_space<vmem>>, %arg10: memref<1x32x8xbf16, #tpu.memory_space<vmem>>, %arg11: memref<1x32x16xbf16, #tpu.memory_space<vmem>>) attributes {dimension_semantics = [#tpu.dimension_semantics<parallel>, #tpu.dimension_semantics<parallel>], iteration_bounds = array<i64: 2, 2>, scalar_prefetch = 0 : i64, scratch_operands = 0 : i64, tpu.core_type = #tpu.core_type<tc>, window_params = [{transform_indices = @transform_0, window_bounds = array<i64: 1, 32, 576>}, {pipeline_mode = #tpu.pipeline_mode<synchronous>, transform_indices = @transform_1, window_bounds = array<i64: 576, 32>}, {pipeline_mode = #tpu.pipeline_mode<synchronous>, transform_indices = @transform_2, window_bounds = array<i64: 1, 32>}, {pipeline_mode = #tpu.pipeline_mode<synchronous>, transform_indices = @transform_3, window_bounds = array<i64: 16, 32>}, {pipeline_mode = #tpu.pipeline_mode<synchronous>, transform_indices = @transform_4, window_bounds = array<i64: 1, 32>}, {transform_indices = @transform_5, window_bounds = array<i64: 1, 32, 16>}, {transform_indices = @transform_6, window_bounds = array<i64: 1, 32, 16>}, {transform_indices = @transform_7, window_bounds = array<i64: 1, 32, 8>}, {transform_indices = @transform_8, window_bounds = array<i64: 1, 32, 8>}, {transform_indices = @transform_9, window_bounds = array<i64: 1, 32, 16>}]} {
    %c0 = arith.constant 0 : index
    %c0_0 = arith.constant 0 : index
    %c0_1 = arith.constant 0 : index
    %0 = vector.load %arg2[%c0, %c0_0, %c0_1] : memref<1x32x576xbf16, #tpu.memory_space<vmem>>, vector<1x32x576xbf16>
    %1 = vector.shape_cast %0 : vector<1x32x576xbf16> to vector<32x576xbf16>
    %c0_2 = arith.constant 0 : index
    %c0_3 = arith.constant 0 : index
    %2 = vector.load %arg3[%c0_2, %c0_3] : memref<576x32xbf16, #tpu.memory_space<vmem>>, vector<576x32xbf16>
    %cst = arith.constant dense<0.000000e+00> : vector<32x32xf32>
    %3 = tpu.matmul %1, %2, %cst {dimension_numbers = #tpu.dot_dimension_numbers<[1], [0], [0], [1], [0, 0, 1, 1], [], []>} : vector<32x576xbf16>, vector<576x32xbf16>, vector<32x32xf32> -> vector<32x32xf32>
    %c0_4 = arith.constant 0 : index
    %c0_5 = arith.constant 0 : index
    %4 = vector.load %arg4[%c0_4, %c0_5] : memref<1x32xf32, #tpu.memory_space<vmem>>, vector<1x32xf32>
    %5 = vector.broadcast %4 : vector<1x32xf32> to vector<32x32xf32>
    %6 = arith.addf %3, %5 : vector<32x32xf32>
    %cst_6 = arith.constant 0.000000e+00 : f32
    %7 = vector.broadcast %cst_6 : f32 to vector<32x32xf32>
    %8 = arith.maximumf %6, %7 : vector<32x32xf32>
    %9 = vector.extract_strided_slice %8 {offsets = [0, 0], sizes = [32, 16], strides = [1, 1]} : vector<32x32xf32> to vector<32x16xf32>
    %10 = vector.extract_strided_slice %8 {offsets = [0, 16], sizes = [32, 16], strides = [1, 1]} : vector<32x32xf32> to vector<32x16xf32>
    %11 = arith.truncf %9 : vector<32x16xf32> to vector<32x16xbf16>
    %c0_7 = arith.constant 0 : index
    %c0_8 = arith.constant 0 : index
    %12 = vector.load %arg5[%c0_7, %c0_8] : memref<16x32xbf16, #tpu.memory_space<vmem>>, vector<16x32xbf16>
    %cst_9 = arith.constant dense<0.000000e+00> : vector<32x32xf32>
    %13 = tpu.matmul %11, %12, %cst_9 {dimension_numbers = #tpu.dot_dimension_numbers<[1], [0], [0], [1], [0, 0, 1, 1], [], []>} : vector<32x16xbf16>, vector<16x32xbf16>, vector<32x32xf32> -> vector<32x32xf32>
    %c0_10 = arith.constant 0 : index
    %c0_11 = arith.constant 0 : index
    %14 = vector.load %arg6[%c0_10, %c0_11] : memref<1x32xf32, #tpu.memory_space<vmem>>, vector<1x32xf32>
    %15 = vector.broadcast %14 : vector<1x32xf32> to vector<32x32xf32>
    %16 = arith.addf %13, %15 : vector<32x32xf32>
    %17 = arith.truncf %9 : vector<32x16xf32> to vector<32x16xbf16>
    %c0_12 = arith.constant 0 : index
    %c0_13 = arith.constant 0 : index
    %c0_14 = arith.constant 0 : index
    %18 = vector.load %arg7[%c0_12, %c0_13, %c0_14] : memref<1x32x16xbf16, #tpu.memory_space<vmem>>, vector<1x32x16xbf16>
    %19 = vector.shape_cast %18 : vector<1x32x16xbf16> to vector<32x16xbf16>
    %20 = vector.shape_cast %17 : vector<32x16xbf16> to vector<1x32x16xbf16>
    tpu.vector_store %arg7[%c0_12, %c0_13, %c0_14], %20 {strides = array<i32>} : memref<1x32x16xbf16, #tpu.memory_space<vmem>>, vector<1x32x16xbf16>,
    %21 = arith.truncf %10 : vector<32x16xf32> to vector<32x16xbf16>
    %c0_15 = arith.constant 0 : index
    %c0_16 = arith.constant 0 : index
    %c0_17 = arith.constant 0 : index
    %22 = vector.load %arg8[%c0_15, %c0_16, %c0_17] : memref<1x32x16xbf16, #tpu.memory_space<vmem>>, vector<1x32x16xbf16>
    %23 = vector.shape_cast %22 : vector<1x32x16xbf16> to vector<32x16xbf16>
    %24 = vector.shape_cast %21 : vector<32x16xbf16> to vector<1x32x16xbf16>
    tpu.vector_store %arg8[%c0_15, %c0_16, %c0_17], %24 {strides = array<i32>} : memref<1x32x16xbf16, #tpu.memory_space<vmem>>, vector<1x32x16xbf16>,
    %25 = vector.extract_strided_slice %16 {offsets = [0, 0], sizes = [32, 8], strides = [1, 1]} : vector<32x32xf32> to vector<32x8xf32>
    %26 = arith.truncf %25 : vector<32x8xf32> to vector<32x8xbf16>
    %c0_18 = arith.constant 0 : index
    %c0_19 = arith.constant 0 : index
    %c0_20 = arith.constant 0 : index
    %27 = vector.load %arg9[%c0_18, %c0_19, %c0_20] : memref<1x32x8xbf16, #tpu.memory_space<vmem>>, vector<1x32x8xbf16>
    %28 = vector.shape_cast %27 : vector<1x32x8xbf16> to vector<32x8xbf16>
    %29 = vector.shape_cast %26 : vector<32x8xbf16> to vector<1x32x8xbf16>
    tpu.vector_store %arg9[%c0_18, %c0_19, %c0_20], %29 {strides = array<i32>} : memref<1x32x8xbf16, #tpu.memory_space<vmem>>, vector<1x32x8xbf16>,
    %30 = vector.extract_strided_slice %16 {offsets = [0, 8], sizes = [32, 8], strides = [1, 1]} : vector<32x32xf32> to vector<32x8xf32>
    %31 = arith.truncf %30 : vector<32x8xf32> to vector<32x8xbf16>
    %c0_21 = arith.constant 0 : index
    %c0_22 = arith.constant 0 : index
    %c0_23 = arith.constant 0 : index
    %32 = vector.load %arg10[%c0_21, %c0_22, %c0_23] : memref<1x32x8xbf16, #tpu.memory_space<vmem>>, vector<1x32x8xbf16>
    %33 = vector.shape_cast %32 : vector<1x32x8xbf16> to vector<32x8xbf16>
    %34 = vector.shape_cast %31 : vector<32x8xbf16> to vector<1x32x8xbf16>
    tpu.vector_store %arg10[%c0_21, %c0_22, %c0_23], %34 {strides = array<i32>} : memref<1x32x8xbf16, #tpu.memory_space<vmem>>, vector<1x32x8xbf16>,
    %35 = vector.extract_strided_slice %16 {offsets = [0, 16], sizes = [32, 16], strides = [1, 1]} : vector<32x32xf32> to vector<32x16xf32>
    %36 = arith.truncf %35 : vector<32x16xf32> to vector<32x16xbf16>
    %c0_24 = arith.constant 0 : index
    %c0_25 = arith.constant 0 : index
    %c0_26 = arith.constant 0 : index
    %37 = vector.load %arg11[%c0_24, %c0_25, %c0_26] : memref<1x32x16xbf16, #tpu.memory_space<vmem>>, vector<1x32x16xbf16>
    %38 = vector.shape_cast %37 : vector<1x32x16xbf16> to vector<32x16xbf16>
    %39 = vector.shape_cast %36 : vector<32x16xbf16> to vector<1x32x16xbf16>
    tpu.vector_store %arg11[%c0_24, %c0_25, %c0_26], %39 {strides = array<i32>} : memref<1x32x16xbf16, #tpu.memory_space<vmem>>, vector<1x32x16xbf16>,
    return
  }
  func.func @transform_0(%arg0: i32, %arg1: i32) -> (i32, i32, i32) {
    %c0_i32 = arith.constant 0 : i32
    %c0_i32_0 = arith.constant 0 : i32
    return %arg0, %arg1, %c0_i32 : i32, i32, i32
  }
  func.func @transform_1(%arg0: i32, %arg1: i32) -> (i32, i32) {
    %c0_i32 = arith.constant 0 : i32
    %c0_i32_0 = arith.constant 0 : i32
    %c0_i32_1 = arith.constant 0 : i32
    return %c0_i32, %c0_i32_0 : i32, i32
  }
  func.func @transform_2(%arg0: i32, %arg1: i32) -> (i32, i32) {
    %c0_i32 = arith.constant 0 : i32
    %c0_i32_0 = arith.constant 0 : i32
    %c0_i32_1 = arith.constant 0 : i32
    return %c0_i32, %c0_i32_0 : i32, i32
  }
  func.func @transform_3(%arg0: i32, %arg1: i32) -> (i32, i32) {
    %c0_i32 = arith.constant 0 : i32
    %c0_i32_0 = arith.constant 0 : i32
    %c0_i32_1 = arith.constant 0 : i32
    return %c0_i32, %c0_i32_0 : i32, i32
  }
  func.func @transform_4(%arg0: i32, %arg1: i32) -> (i32, i32) {
    %c0_i32 = arith.constant 0 : i32
    %c0_i32_0 = arith.constant 0 : i32
    %c0_i32_1 = arith.constant 0 : i32
    return %c0_i32, %c0_i32_0 : i32, i32
  }
  func.func @transform_5(%arg0: i32, %arg1: i32) -> (i32, i32, i32) {
    %c0_i32 = arith.constant 0 : i32
    %c0_i32_0 = arith.constant 0 : i32
    return %arg0, %arg1, %c0_i32 : i32, i32, i32
  }
  func.func @transform_6(%arg0: i32, %arg1: i32) -> (i32, i32, i32) {
    %c0_i32 = arith.constant 0 : i32
    %c0_i32_0 = arith.constant 0 : i32
    return %arg0, %arg1, %c0_i32 : i32, i32, i32
  }
  func.func @transform_7(%arg0: i32, %arg1: i32) -> (i32, i32, i32) {
    %c0_i32 = arith.constant 0 : i32
    %c0_i32_0 = arith.constant 0 : i32
    return %arg0, %arg1, %c0_i32 : i32, i32, i32
  }
  func.func @transform_8(%arg0: i32, %arg1: i32) -> (i32, i32, i32) {
    %c0_i32 = arith.constant 0 : i32
    %c0_i32_0 = arith.constant 0 : i32
    return %arg0, %arg1, %c0_i32 : i32, i32, i32
  }
  func.func @transform_9(%arg0: i32, %arg1: i32) -> (i32, i32, i32) {
    %c0_i32 = arith.constant 0 : i32
    %c0_i32_0 = arith.constant 0 : i32
    return %arg0, %arg1, %c0_i32 : i32, i32, i32
  }
}

module attributes {stable_mosaic.version = 11 : i64} {
  func.func @cam_kernel(%arg0: i32, %arg1: memref<1x64x16xbf16, #tpu.memory_space<vmem>>, %arg2: memref<1xf32, #tpu.memory_space<smem>>, %arg3: memref<1x64x16xbf16, #tpu.memory_space<vmem>>) attributes {dimension_semantics = [#tpu.dimension_semantics<parallel>], iteration_bounds = array<i64: 2>, scalar_prefetch = 0 : i64, scratch_operands = 0 : i64, tpu.core_type = #tpu.core_type<tc>, window_params = [{transform_indices = @transform_0, window_bounds = array<i64: 1, 64, 16>}, {transform_indices = @transform_1, window_bounds = array<i64: 1>}, {transform_indices = @transform_2, window_bounds = array<i64: 1, 64, 16>}]} {
    %c0 = arith.constant 0 : index
    %c0_0 = arith.constant 0 : index
    %c0_1 = arith.constant 0 : index
    %0 = vector.load %arg1[%c0, %c0_0, %c0_1] : memref<1x64x16xbf16, #tpu.memory_space<vmem>>, vector<1x64x16xbf16>
    %1 = vector.shape_cast %0 : vector<1x64x16xbf16> to vector<64x16xbf16>
    %cst = arith.constant dense<0.000000e+00> : vector<16x16xf32>
    %2 = tpu.matmul %1, %1, %cst {dimension_numbers = #tpu.dot_dimension_numbers<[0], [0], [1], [1], [0, 1, 1, 1], [], []>} : vector<64x16xbf16>, vector<64x16xbf16>, vector<16x16xf32> -> vector<16x16xf32>
    %cst_2 = arith.constant dense<0xFF800000> : vector<16xf32>
    %3 = vector.multi_reduction <maximumf>, %2, %cst_2 [1] : vector<16x16xf32> to vector<16xf32>
    %4 = vector.shape_cast %3 : vector<16xf32> to vector<16x1xf32>
    %5 = vector.broadcast %4 : vector<16x1xf32> to vector<16x16xf32>
    %6 = arith.subf %5, %2 : vector<16x16xf32>
    %cst_3 = arith.constant dense<0xFF800000> : vector<16xf32>
    %7 = vector.multi_reduction <maximumf>, %6, %cst_3 [1] : vector<16x16xf32> to vector<16xf32>
    %8 = vector.shape_cast %7 : vector<16xf32> to vector<16x1xf32>
    %9 = vector.broadcast %8 : vector<16x1xf32> to vector<16x16xf32>
    %10 = arith.subf %6, %9 : vector<16x16xf32>
    %11 = math.exp %10 : vector<16x16xf32>
    %cst_4 = arith.constant dense<0.000000e+00> : vector<16xf32>
    %12 = vector.multi_reduction <add>, %11, %cst_4 [1] : vector<16x16xf32> to vector<16xf32>
    %13 = vector.shape_cast %12 : vector<16xf32> to vector<16x1xf32>
    %14 = tpu.reciprocal %13 {approx = true} : vector<16x1xf32> -> vector<16x1xf32>
    %15 = vector.broadcast %14 : vector<16x1xf32> to vector<16x16xf32>
    %16 = arith.mulf %11, %15 : vector<16x16xf32>
    %17 = arith.truncf %16 : vector<16x16xf32> to vector<16x16xbf16>
    %cst_5 = arith.constant dense<0.000000e+00> : vector<64x16xf32>
    %18 = tpu.matmul %1, %17, %cst_5 {dimension_numbers = #tpu.dot_dimension_numbers<[1], [1], [0], [0], [0, 0, 1, 0], [], []>} : vector<64x16xbf16>, vector<16x16xbf16>, vector<64x16xf32> -> vector<64x16xf32>
    %c0_6 = arith.constant 0 : index
    %19 = memref.load %arg2[%c0_6] : memref<1xf32, #tpu.memory_space<smem>>
    %20 = vector.broadcast %19 : f32 to vector<64x16xf32>
    %21 = arith.mulf %20, %18 : vector<64x16xf32>
    %22 = arith.extf %1 : vector<64x16xbf16> to vector<64x16xf32>
    %23 = arith.addf %21, %22 : vector<64x16xf32>
    %24 = arith.truncf %23 : vector<64x16xf32> to vector<64x16xbf16>
    %c0_7 = arith.constant 0 : index
    %c0_8 = arith.constant 0 : index
    %c0_9 = arith.constant 0 : index
    %25 = vector.load %arg3[%c0_7, %c0_8, %c0_9] : memref<1x64x16xbf16, #tpu.memory_space<vmem>>, vector<1x64x16xbf16>
    %26 = vector.shape_cast %25 : vector<1x64x16xbf16> to vector<64x16xbf16>
    %27 = vector.shape_cast %24 : vector<64x16xbf16> to vector<1x64x16xbf16>
    tpu.vector_store %arg3[%c0_7, %c0_8, %c0_9], %27 {strides = array<i32>} : memref<1x64x16xbf16, #tpu.memory_space<vmem>>, vector<1x64x16xbf16>,
    return
  }
  func.func @transform_0(%arg0: i32) -> (i32, i32, i32) {
    %c0_i32 = arith.constant 0 : i32
    %c0_i32_0 = arith.constant 0 : i32
    %c0_i32_1 = arith.constant 0 : i32
    return %arg0, %c0_i32, %c0_i32_0 : i32, i32, i32
  }
  func.func @transform_1(%arg0: i32) -> i32 {
    %c0_i32 = arith.constant 0 : i32
    %c0_i32_0 = arith.constant 0 : i32
    return %c0_i32 : i32
  }
  func.func @transform_2(%arg0: i32) -> (i32, i32, i32) {
    %c0_i32 = arith.constant 0 : i32
    %c0_i32_0 = arith.constant 0 : i32
    %c0_i32_1 = arith.constant 0 : i32
    return %arg0, %c0_i32, %c0_i32_0 : i32, i32, i32
  }
}

module attributes {stable_mosaic.version = 11 : i64} {
  func.func @pam_flash_kernel(%arg0: i32, %arg1: i32, %arg2: i32, %arg3: memref<1x32x8xbf16, #tpu.memory_space<vmem>>, %arg4: memref<1x32x8xbf16, #tpu.memory_space<vmem>>, %arg5: memref<1x32x16xbf16, #tpu.memory_space<vmem>>, %arg6: memref<1x32x16xbf16, #tpu.memory_space<vmem>>, %arg7: memref<1xf32, #tpu.memory_space<smem>>, %arg8: memref<1x32x16xbf16, #tpu.memory_space<vmem>>, %arg9: memref<32x1xf32, #tpu.memory_space<vmem>>, %arg10: memref<32x1xf32, #tpu.memory_space<vmem>>, %arg11: memref<32x16xf32, #tpu.memory_space<vmem>>) attributes {dimension_semantics = [#tpu.dimension_semantics<parallel>, #tpu.dimension_semantics<parallel>, #tpu.dimension_semantics<arbitrary>], iteration_bounds = array<i64: 2, 2, 2>, scalar_prefetch = 0 : i64, scratch_operands = 3 : i64, tpu.core_type = #tpu.core_type<tc>, window_params = [{transform_indices = @transform_0, window_bounds = array<i64: 1, 32, 8>}, {transform_indices = @transform_1, window_bounds = array<i64: 1, 32, 8>}, {transform_indices = @transform_2, window_bounds = array<i64: 1, 32, 16>}, {transform_indices = @transform_3, window_bounds = array<i64: 1, 32, 16>}, {transform_indices = @transform_4, window_bounds = array<i64: 1>}, {transform_indices = @transform_5, window_bounds = array<i64: 1, 32, 16>}]} {
    %c0_i32 = arith.constant 0 : i32
    %0 = arith.cmpi eq, %arg2, %c0_i32 : i32
    %1 = arith.extui %0 : i1 to i32
    %c0_i32_0 = arith.constant 0 : i32
    %2 = arith.cmpi ne, %1, %c0_i32_0 : i32
    scf.if %2 {
      %cst_25 = arith.constant 0xFF800000 : f32
      %36 = vector.broadcast %cst_25 : f32 to vector<32x1xf32>
      %c0_26 = arith.constant 0 : index
      %c0_27 = arith.constant 0 : index
      %37 = vector.load %arg9[%c0_26, %c0_27] : memref<32x1xf32, #tpu.memory_space<vmem>>, vector<32x1xf32>
      tpu.vector_store %arg9[%c0_26, %c0_27], %36 {strides = array<i32>} : memref<32x1xf32, #tpu.memory_space<vmem>>, vector<32x1xf32>,
      %cst_28 = arith.constant 0.000000e+00 : f32
      %38 = vector.broadcast %cst_28 : f32 to vector<32x1xf32>
      %c0_29 = arith.constant 0 : index
      %c0_30 = arith.constant 0 : index
      %39 = vector.load %arg10[%c0_29, %c0_30] : memref<32x1xf32, #tpu.memory_space<vmem>>, vector<32x1xf32>
      tpu.vector_store %arg10[%c0_29, %c0_30], %38 {strides = array<i32>} : memref<32x1xf32, #tpu.memory_space<vmem>>, vector<32x1xf32>,
      %cst_31 = arith.constant 0.000000e+00 : f32
      %40 = vector.broadcast %cst_31 : f32 to vector<32x16xf32>
      %c0_32 = arith.constant 0 : index
      %c0_33 = arith.constant 0 : index
      %41 = vector.load %arg11[%c0_32, %c0_33] : memref<32x16xf32, #tpu.memory_space<vmem>>, vector<32x16xf32>
      tpu.vector_store %arg11[%c0_32, %c0_33], %40 {strides = array<i32>} : memref<32x16xf32, #tpu.memory_space<vmem>>, vector<32x16xf32>,
    } else {
    }
    %c0 = arith.constant 0 : index
    %c0_1 = arith.constant 0 : index
    %c0_2 = arith.constant 0 : index
    %3 = vector.load %arg3[%c0, %c0_1, %c0_2] : memref<1x32x8xbf16, #tpu.memory_space<vmem>>, vector<1x32x8xbf16>
    %4 = vector.shape_cast %3 : vector<1x32x8xbf16> to vector<32x8xbf16>
    %c0_3 = arith.constant 0 : index
    %c0_4 = arith.constant 0 : index
    %c0_5 = arith.constant 0 : index
    %5 = vector.load %arg4[%c0_3, %c0_4, %c0_5] : memref<1x32x8xbf16, #tpu.memory_space<vmem>>, vector<1x32x8xbf16>
    %6 = vector.shape_cast %5 : vector<1x32x8xbf16> to vector<32x8xbf16>
    %c0_6 = arith.constant 0 : index
    %c0_7 = arith.constant 0 : index
    %c0_8 = arith.constant 0 : index
    %7 = vector.load %arg5[%c0_6, %c0_7, %c0_8] : memref<1x32x16xbf16, #tpu.memory_space<vmem>>, vector<1x32x16xbf16>
    %8 = vector.shape_cast %7 : vector<1x32x16xbf16> to vector<32x16xbf16>
    %cst = arith.constant dense<0.000000e+00> : vector<32x32xf32>
    %9 = tpu.matmul %4, %6, %cst {dimension_numbers = #tpu.dot_dimension_numbers<[1], [1], [0], [0], [0, 0, 1, 0], [], []>} : vector<32x8xbf16>, vector<32x8xbf16>, vector<32x32xf32> -> vector<32x32xf32>
    %c0_9 = arith.constant 0 : index
    %c0_10 = arith.constant 0 : index
    %10 = vector.load %arg9[%c0_9, %c0_10] : memref<32x1xf32, #tpu.memory_space<vmem>>, vector<32x1xf32>
    %cst_11 = arith.constant dense<0xFF800000> : vector<32xf32>
    %11 = vector.multi_reduction <maximumf>, %9, %cst_11 [1] : vector<32x32xf32> to vector<32xf32>
    %12 = vector.shape_cast %11 : vector<32xf32> to vector<32x1xf32>
    %13 = arith.maximumf %10, %12 : vector<32x1xf32>
    %14 = arith.subf %10, %13 : vector<32x1xf32>
    %15 = math.exp %14 : vector<32x1xf32>
    %16 = vector.broadcast %13 : vector<32x1xf32> to vector<32x32xf32>
    %17 = arith.subf %9, %16 : vector<32x32xf32>
    %18 = math.exp %17 : vector<32x32xf32>
    %c0_12 = arith.constant 0 : index
    %c0_13 = arith.constant 0 : index
    %19 = vector.load %arg10[%c0_12, %c0_13] : memref<32x1xf32, #tpu.memory_space<vmem>>, vector<32x1xf32>
    %20 = arith.mulf %15, %19 : vector<32x1xf32>
    %cst_14 = arith.constant dense<0.000000e+00> : vector<32xf32>
    %21 = vector.multi_reduction <add>, %18, %cst_14 [1] : vector<32x32xf32> to vector<32xf32>
    %22 = vector.shape_cast %21 : vector<32xf32> to vector<32x1xf32>
    %23 = arith.addf %20, %22 : vector<32x1xf32>
    %c0_15 = arith.constant 0 : index
    %c0_16 = arith.constant 0 : index
    %24 = vector.load %arg10[%c0_15, %c0_16] : memref<32x1xf32, #tpu.memory_space<vmem>>, vector<32x1xf32>
    tpu.vector_store %arg10[%c0_15, %c0_16], %23 {strides = array<i32>} : memref<32x1xf32, #tpu.memory_space<vmem>>, vector<32x1xf32>,
    %c0_17 = arith.constant 0 : index
    %c0_18 = arith.constant 0 : index
    %25 = vector.load %arg11[%c0_17, %c0_18] : memref<32x16xf32, #tpu.memory_space<vmem>>, vector<32x16xf32>
    %26 = vector.broadcast %15 : vector<32x1xf32> to vector<32x16xf32>
    %27 = arith.mulf %26, %25 : vector<32x16xf32>
    %28 = arith.truncf %18 : vector<32x32xf32> to vector<32x32xbf16>
    %cst_19 = arith.constant dense<0.000000e+00> : vector<32x16xf32>
    %29 = tpu.matmul %28, %8, %cst_19 {dimension_numbers = #tpu.dot_dimension_numbers<[1], [0], [0], [1], [0, 0, 1, 1], [], []>} : vector<32x32xbf16>, vector<32x16xbf16>, vector<32x16xf32> -> vector<32x16xf32>
    %30 = arith.addf %27, %29 : vector<32x16xf32>
    %c0_20 = arith.constant 0 : index
    %c0_21 = arith.constant 0 : index
    %31 = vector.load %arg11[%c0_20, %c0_21] : memref<32x16xf32, #tpu.memory_space<vmem>>, vector<32x16xf32>
    tpu.vector_store %arg11[%c0_20, %c0_21], %30 {strides = array<i32>} : memref<32x16xf32, #tpu.memory_space<vmem>>, vector<32x16xf32>,
    %c0_22 = arith.constant 0 : index
    %c0_23 = arith.constant 0 : index
    %32 = vector.load %arg9[%c0_22, %c0_23] : memref<32x1xf32, #tpu.memory_space<vmem>>, vector<32x1xf32>
    tpu.vector_store %arg9[%c0_22, %c0_23], %13 {strides = array<i32>} : memref<32x1xf32, #tpu.memory_space<vmem>>, vector<32x1xf32>,
    %c1_i32 = arith.constant 1 : i32
    %33 = arith.cmpi eq, %arg2, %c1_i32 : i32
    %34 = arith.extui %33 : i1 to i32
    %c0_i32_24 = arith.constant 0 : i32
    %35 = arith.cmpi ne, %34, %c0_i32_24 : i32
    scf.if %35 {
      %c0_25 = arith.constant 0 : index
      %c0_26 = arith.constant 0 : index
      %36 = vector.load %arg10[%c0_25, %c0_26] : memref<32x1xf32, #tpu.memory_space<vmem>>, vector<32x1xf32>
      %37 = tpu.reciprocal %36 {approx = true} : vector<32x1xf32> -> vector<32x1xf32>
      %c0_27 = arith.constant 0 : index
      %c0_28 = arith.constant 0 : index
      %38 = vector.load %arg11[%c0_27, %c0_28] : memref<32x16xf32, #tpu.memory_space<vmem>>, vector<32x16xf32>
      %39 = vector.broadcast %37 : vector<32x1xf32> to vector<32x16xf32>
      %40 = arith.mulf %38, %39 : vector<32x16xf32>
      %c0_29 = arith.constant 0 : index
      %41 = memref.load %arg7[%c0_29] : memref<1xf32, #tpu.memory_space<smem>>
      %42 = vector.broadcast %41 : f32 to vector<32x16xf32>
      %43 = arith.mulf %42, %40 : vector<32x16xf32>
      %c0_30 = arith.constant 0 : index
      %c0_31 = arith.constant 0 : index
      %c0_32 = arith.constant 0 : index
      %44 = vector.load %arg6[%c0_30, %c0_31, %c0_32] : memref<1x32x16xbf16, #tpu.memory_space<vmem>>, vector<1x32x16xbf16>
      %45 = vector.shape_cast %44 : vector<1x32x16xbf16> to vector<32x16xbf16>
      %46 = arith.extf %45 : vector<32x16xbf16> to vector<32x16xf32>
      %47 = arith.addf %43, %46 : vector<32x16xf32>
      %48 = arith.truncf %47 : vector<32x16xf32> to vector<32x16xbf16>
      %c0_33 = arith.constant 0 : index
      %c0_34 = arith.constant 0 : index
      %c0_35 = arith.constant 0 : index
      %49 = vector.load %arg8[%c0_33, %c0_34, %c0_35] : memref<1x32x16xbf16, #tpu.memory_space<vmem>>, vector<1x32x16xbf16>
      %50 = vector.shape_cast %49 : vector<1x32x16xbf16> to vector<32x16xbf16>
      %51 = vector.shape_cast %48 : vector<32x16xbf16> to vector<1x32x16xbf16>
      tpu.vector_store %arg8[%c0_33, %c0_34, %c0_35], %51 {strides = array<i32>} : memref<1x32x16xbf16, #tpu.memory_space<vmem>>, vector<1x32x16xbf16>,
    } else {
    }
    return
  }
  func.func @transform_0(%arg0: i32, %arg1: i32, %arg2: i32) -> (i32, i32, i32) {
    %c0_i32 = arith.constant 0 : i32
    %c0_i32_0 = arith.constant 0 : i32
    return %arg0, %arg1, %c0_i32 : i32, i32, i32
  }
  func.func @transform_1(%arg0: i32, %arg1: i32, %arg2: i32) -> (i32, i32, i32) {
    %c0_i32 = arith.constant 0 : i32
    %c0_i32_0 = arith.constant 0 : i32
    return %arg0, %arg2, %c0_i32 : i32, i32, i32
  }
  func.func @transform_2(%arg0: i32, %arg1: i32, %arg2: i32) -> (i32, i32, i32) {
    %c0_i32 = arith.constant 0 : i32
    %c0_i32_0 = arith.constant 0 : i32
    return %arg0, %arg2, %c0_i32 : i32, i32, i32
  }
  func.func @transform_3(%arg0: i32, %arg1: i32, %arg2: i32) -> (i32, i32, i32) {
    %c0_i32 = arith.constant 0 : i32
    %c0_i32_0 = arith.constant 0 : i32
    return %arg0, %arg1, %c0_i32 : i32, i32, i32
  }
  func.func @transform_4(%arg0: i32, %arg1: i32, %arg2: i32) -> i32 {
    %c0_i32 = arith.constant 0 : i32
    %c0_i32_0 = arith.constant 0 : i32
    return %c0_i32 : i32
  }
  func.func @transform_5(%arg0: i32, %arg1: i32, %arg2: i32) -> (i32, i32, i32) {
    %c0_i32 = arith.constant 0 : i32
    %c0_i32_0 = arith.constant 0 : i32
    return %arg0, %arg1, %c0_i32 : i32, i32, i32
  }
}

module attributes {stable_mosaic.version = 11 : i64} {
  func.func @back_kernel(%arg0: i32, %arg1: i32, %arg2: memref<1x32x144xbf16, #tpu.memory_space<vmem>>, %arg3: memref<1x32x144xbf16, #tpu.memory_space<vmem>>, %arg4: memref<144x16xbf16, #tpu.memory_space<vmem>>, %arg5: memref<1x16xf32, #tpu.memory_space<vmem>>, %arg6: memref<144x16xbf16, #tpu.memory_space<vmem>>, %arg7: memref<1x16xf32, #tpu.memory_space<vmem>>, %arg8: memref<1x32x16xbf16, #tpu.memory_space<vmem>>, %arg9: memref<1x32x16xbf16, #tpu.memory_space<vmem>>) attributes {dimension_semantics = [#tpu.dimension_semantics<parallel>, #tpu.dimension_semantics<parallel>], iteration_bounds = array<i64: 2, 2>, scalar_prefetch = 0 : i64, scratch_operands = 0 : i64, tpu.core_type = #tpu.core_type<tc>, window_params = [{transform_indices = @transform_0, window_bounds = array<i64: 1, 32, 144>}, {transform_indices = @transform_1, window_bounds = array<i64: 1, 32, 144>}, {pipeline_mode = #tpu.pipeline_mode<synchronous>, transform_indices = @transform_2, window_bounds = array<i64: 144, 16>}, {pipeline_mode = #tpu.pipeline_mode<synchronous>, transform_indices = @transform_3, window_bounds = array<i64: 1, 16>}, {pipeline_mode = #tpu.pipeline_mode<synchronous>, transform_indices = @transform_4, window_bounds = array<i64: 144, 16>}, {pipeline_mode = #tpu.pipeline_mode<synchronous>, transform_indices = @transform_5, window_bounds = array<i64: 1, 16>}, {transform_indices = @transform_6, window_bounds = array<i64: 1, 32, 16>}, {transform_indices = @transform_7, window_bounds = array<i64: 1, 32, 16>}]} {
    %c0 = arith.constant 0 : index
    %c0_0 = arith.constant 0 : index
    %c0_1 = arith.constant 0 : index
    %0 = vector.load %arg2[%c0, %c0_0, %c0_1] : memref<1x32x144xbf16, #tpu.memory_space<vmem>>, vector<1x32x144xbf16>
    %1 = vector.shape_cast %0 : vector<1x32x144xbf16> to vector<32x144xbf16>
    %c0_2 = arith.constant 0 : index
    %c0_3 = arith.constant 0 : index
    %2 = vector.load %arg4[%c0_2, %c0_3] : memref<144x16xbf16, #tpu.memory_space<vmem>>, vector<144x16xbf16>
    %cst = arith.constant dense<0.000000e+00> : vector<32x16xf32>
    %3 = tpu.matmul %1, %2, %cst {dimension_numbers = #tpu.dot_dimension_numbers<[1], [0], [0], [1], [0, 0, 1, 1], [], []>} : vector<32x144xbf16>, vector<144x16xbf16>, vector<32x16xf32> -> vector<32x16xf32>
    %c0_4 = arith.constant 0 : index
    %c0_5 = arith.constant 0 : index
    %4 = vector.load %arg5[%c0_4, %c0_5] : memref<1x16xf32, #tpu.memory_space<vmem>>, vector<1x16xf32>
    %5 = vector.broadcast %4 : vector<1x16xf32> to vector<32x16xf32>
    %6 = arith.addf %3, %5 : vector<32x16xf32>
    %cst_6 = arith.constant 0.000000e+00 : f32
    %7 = vector.broadcast %cst_6 : f32 to vector<32x16xf32>
    %8 = arith.maximumf %6, %7 : vector<32x16xf32>
    %c0_7 = arith.constant 0 : index
    %c0_8 = arith.constant 0 : index
    %c0_9 = arith.constant 0 : index
    %9 = vector.load %arg3[%c0_7, %c0_8, %c0_9] : memref<1x32x144xbf16, #tpu.memory_space<vmem>>, vector<1x32x144xbf16>
    %10 = vector.shape_cast %9 : vector<1x32x144xbf16> to vector<32x144xbf16>
    %c0_10 = arith.constant 0 : index
    %c0_11 = arith.constant 0 : index
    %11 = vector.load %arg6[%c0_10, %c0_11] : memref<144x16xbf16, #tpu.memory_space<vmem>>, vector<144x16xbf16>
    %cst_12 = arith.constant dense<0.000000e+00> : vector<32x16xf32>
    %12 = tpu.matmul %10, %11, %cst_12 {dimension_numbers = #tpu.dot_dimension_numbers<[1], [0], [0], [1], [0, 0, 1, 1], [], []>} : vector<32x144xbf16>, vector<144x16xbf16>, vector<32x16xf32> -> vector<32x16xf32>
    %c0_13 = arith.constant 0 : index
    %c0_14 = arith.constant 0 : index
    %13 = vector.load %arg7[%c0_13, %c0_14] : memref<1x16xf32, #tpu.memory_space<vmem>>, vector<1x16xf32>
    %14 = vector.broadcast %13 : vector<1x16xf32> to vector<32x16xf32>
    %15 = arith.addf %12, %14 : vector<32x16xf32>
    %cst_15 = arith.constant 0.000000e+00 : f32
    %16 = vector.broadcast %cst_15 : f32 to vector<32x16xf32>
    %17 = arith.maximumf %15, %16 : vector<32x16xf32>
    %18 = arith.truncf %8 : vector<32x16xf32> to vector<32x16xbf16>
    %c0_16 = arith.constant 0 : index
    %c0_17 = arith.constant 0 : index
    %c0_18 = arith.constant 0 : index
    %19 = vector.load %arg8[%c0_16, %c0_17, %c0_18] : memref<1x32x16xbf16, #tpu.memory_space<vmem>>, vector<1x32x16xbf16>
    %20 = vector.shape_cast %19 : vector<1x32x16xbf16> to vector<32x16xbf16>
    %21 = vector.shape_cast %18 : vector<32x16xbf16> to vector<1x32x16xbf16>
    tpu.vector_store %arg8[%c0_16, %c0_17, %c0_18], %21 {strides = array<i32>} : memref<1x32x16xbf16, #tpu.memory_space<vmem>>, vector<1x32x16xbf16>,
    %22 = arith.truncf %17 : vector<32x16xf32> to vector<32x16xbf16>
    %c0_19 = arith.constant 0 : index
    %c0_20 = arith.constant 0 : index
    %c0_21 = arith.constant 0 : index
    %23 = vector.load %arg9[%c0_19, %c0_20, %c0_21] : memref<1x32x16xbf16, #tpu.memory_space<vmem>>, vector<1x32x16xbf16>
    %24 = vector.shape_cast %23 : vector<1x32x16xbf16> to vector<32x16xbf16>
    %25 = vector.shape_cast %22 : vector<32x16xbf16> to vector<1x32x16xbf16>
    tpu.vector_store %arg9[%c0_19, %c0_20, %c0_21], %25 {strides = array<i32>} : memref<1x32x16xbf16, #tpu.memory_space<vmem>>, vector<1x32x16xbf16>,
    return
  }
  func.func @transform_0(%arg0: i32, %arg1: i32) -> (i32, i32, i32) {
    %c0_i32 = arith.constant 0 : i32
    %c0_i32_0 = arith.constant 0 : i32
    return %arg0, %arg1, %c0_i32 : i32, i32, i32
  }
  func.func @transform_1(%arg0: i32, %arg1: i32) -> (i32, i32, i32) {
    %c0_i32 = arith.constant 0 : i32
    %c0_i32_0 = arith.constant 0 : i32
    return %arg0, %arg1, %c0_i32 : i32, i32, i32
  }
  func.func @transform_2(%arg0: i32, %arg1: i32) -> (i32, i32) {
    %c0_i32 = arith.constant 0 : i32
    %c0_i32_0 = arith.constant 0 : i32
    %c0_i32_1 = arith.constant 0 : i32
    return %c0_i32, %c0_i32_0 : i32, i32
  }
  func.func @transform_3(%arg0: i32, %arg1: i32) -> (i32, i32) {
    %c0_i32 = arith.constant 0 : i32
    %c0_i32_0 = arith.constant 0 : i32
    %c0_i32_1 = arith.constant 0 : i32
    return %c0_i32, %c0_i32_0 : i32, i32
  }
  func.func @transform_4(%arg0: i32, %arg1: i32) -> (i32, i32) {
    %c0_i32 = arith.constant 0 : i32
    %c0_i32_0 = arith.constant 0 : i32
    %c0_i32_1 = arith.constant 0 : i32
    return %c0_i32, %c0_i32_0 : i32, i32
  }
  func.func @transform_5(%arg0: i32, %arg1: i32) -> (i32, i32) {
    %c0_i32 = arith.constant 0 : i32
    %c0_i32_0 = arith.constant 0 : i32
    %c0_i32_1 = arith.constant 0 : i32
    return %c0_i32, %c0_i32_0 : i32, i32
  }
  func.func @transform_6(%arg0: i32, %arg1: i32) -> (i32, i32, i32) {
    %c0_i32 = arith.constant 0 : i32
    %c0_i32_0 = arith.constant 0 : i32
    return %arg0, %arg1, %c0_i32 : i32, i32, i32
  }
  func.func @transform_7(%arg0: i32, %arg1: i32) -> (i32, i32, i32) {
    %c0_i32 = arith.constant 0 : i32
    %c0_i32_0 = arith.constant 0 : i32
    return %arg0, %arg1, %c0_i32 : i32, i32, i32
  }
}

</mosaic_0001>

<llo_original>
// kernel: danet_forward.6
$region0: #{danet_forward.6}
  #allocation0 [shape = 'u32[]', space=smem, size = 0x4, offset = 0x4, fixed_abs, tag = 'smem constant byte address 0x4 - core index']
  #allocation1 [shape = 'u32[72,128]{1,0:T(1,128)}', space=vmem, size = 0x9000, scoped, tag = 'internal scratch']
  #allocation2 [shape = 'f32[1]{0:T(128)S(6)}', space=smem, size = 0x200, scoped, tag = 'scoped memory for danet_forward.6']
  %s0 = inlined_call_operand.vmem [shape: bf16[2,64,16], index: 0, kind: input, shape index: {}]
  %s1 = inlined_call_operand.<no memory space> [shape: f32[1], index: 1, kind: input, shape index: {}]
  %s2 = inlined_call_operand.vmem [shape: bf16[2,64,16], index: 2, kind: output, shape index: {}]
  %s3 = sld [smem:[#allocation0]]
  $region41: #{danet_forward.6} parent=0
    _
  %s5 = ssub.s32 1, %s3
  %s6 = scalar_select 0, %s5, %s3
  %7 = sst [smem:[#allocation2]] %s1
  loop: start=0, step=1, limit=4
  $region2: #{danet_forward.6} parent=0 // loop_pre_header
    _
  $region3: #{danet_forward.6} parent=0 // loop_header
    %s9 = sphi 0, %s13
    %p10 = scmp.ge.s32.totalorder %s9, 4
    %s19 = sphi 0, %s21
    %s22 = sphi 0, %s19
    %s23 = sphi 0, %s22
    %s39 = sphi 0, %s23
    %s43 = sphi 0, %s43
    %s45 = sphi 0, %s43
    %s46 = sphi 0, %s45
    %s60 = sphi 0, %s46
    %s66 = sphi 0, %s68
    %s69 = sphi 0, %s66
    %s70 = sphi 0, %s69
    %s86 = sphi 0, %s70
  $region4: #{danet_forward.6} parent=0 // loop_header_branch
    %12 = sbr.rel (%p10) target = $region8
  $region5: #{danet_forward.6} parent=0 // loop_body
    %s14 = ssub.s32 %s9, 1
    %s15 = ssub.s32 %s9, 2
    %s16 = sadd.s32 %s9, 1
    %s17 = ssub.s32 %s9, %s16
    %p18 = scmp.eq.s32.totalorder %s17, 0
    %s20 = sadd.s32 %s19, 1
    %s21 = scalar_select %p18, %s19, %s20
    %p24 = pneg %p18
    %p25 = scmp.eq.s32.totalorder %s9, 1
    %p26 = por %p24, %p25
    %p27 = scmp.ne.s32.totalorder %s19, %s22
    %p28 = scmp.eq.s32.totalorder %s9, 0
    %p29 = por %p27, %p28
    %p30 = scmp.ne.s32.totalorder %s19, %s22
    %p31 = scmp.eq.s32.totalorder %s14, 1
    %p32 = por %p30, %p31
    %p33 = scmp.ne.s32.totalorder %s22, %s23
    %p34 = scmp.eq.s32.totalorder %s14, 0
    %p35 = por %p33, %p34
    %p36 = scmp.ne.s32.totalorder %s22, %s23
    %p37 = scmp.eq.s32.totalorder %s15, 1
    %p38 = por %p36, %p37
    %p40 = scmp.ne.s32.totalorder %s23, %s39
    %p41 = scmp.eq.s32.totalorder %s15, 0
    %p42 = por %p40, %p41
    %s44 = sadd.s32 %s43, 1
    %p47 = scmp.eq.s32.totalorder %s9, 1
    %p48 = scmp.ne.s32.totalorder %s43, %s45
    %p49 = scmp.eq.s32.totalorder %s9, 0
    %p50 = por %p48, %p49
    %p51 = scmp.ne.s32.totalorder %s43, %s45
    %p52 = scmp.eq.s32.totalorder %s14, 1
    %p53 = por %p51, %p52
    %p54 = scmp.ne.s32.totalorder %s45, %s46
    %p55 = scmp.eq.s32.totalorder %s14, 0
    %p56 = por %p54, %p55
    %p57 = scmp.ne.s32.totalorder %s45, %s46
    %p58 = scmp.eq.s32.totalorder %s15, 1
    %p59 = por %p57, %p58
    %p61 = scmp.ne.s32.totalorder %s46, %s60
    %p62 = scmp.eq.s32.totalorder %s15, 0
    %p63 = por %p61, %p62
    %s64 = ssub.s32 %s9, %s16
    %p65 = scmp.eq.s32.totalorder %s64, 0
    %s67 = sadd.s32 %s66, 1
    %s68 = scalar_select %p65, %s66, %s67
    %p71 = pneg %p65
    %p72 = scmp.eq.s32.totalorder %s9, 1
    %p73 = por %p71, %p72
    %p74 = scmp.ne.s32.totalorder %s66, %s69
    %p75 = scmp.eq.s32.totalorder %s9, 0
    %p76 = por %p74, %p75
    %p77 = scmp.ne.s32.totalorder %s66, %s69
    %p78 = scmp.eq.s32.totalorder %s14, 1
    %p79 = por %p77, %p78
    %p80 = scmp.ne.s32.totalorder %s69, %s70
    %p81 = scmp.eq.s32.totalorder %s14, 0
    %p82 = por %p80, %p81
    %p83 = scmp.ne.s32.totalorder %s69, %s70
    %p84 = scmp.eq.s32.totalorder %s15, 1
    %p85 = por %p83, %p84
    %p87 = scmp.ne.s32.totalorder %s70, %s86
    %p88 = scmp.eq.s32.totalorder %s15, 0
    %p89 = por %p87, %p88
    %p90 = scmp.le.s32.totalorder 1, %s9
    %p91 = scmp.lt.s32.totalorder %s9, 3
    %p92 = pnand %p90, %p91
    %p93 = pneg %p92
    // Predicated region
    $region9: #{danet_forward.6} parent=5 // pred_check
      _
    $region10: #{danet_forward.6} parent=5 // pred_check_branch
      %95 = sbr.rel (%p92) target = $region12
    $region11: #{danet_forward.6} parent=5 // pred_region
      %s96 = ssub.s32 %s9, 1
      // Predicated region
      $region13: #{danet_forward.6} parent=11 // pred_check
        %p97 = pneg %p56
      $region14: #{danet_forward.6} parent=11 // pred_check_branch
        %99 = sbr.rel (%p97) target = $region16
      $region15: #{danet_forward.6} parent=11 // pred_region
        _
      $region16: #{danet_forward.6} parent=11 // pred_fallthru
        _
    $region12: #{danet_forward.6} parent=5 // pred_fallthru
      _
    %p100 = scmp.lt.s32.totalorder %s9, 2
    // Predicated region
    $region17: #{danet_forward.6} parent=5 // pred_check
      %p101 = pneg %p100
    $region18: #{danet_forward.6} parent=5 // pred_check_branch
      %103 = sbr.rel (%p101) target = $region20
    $region19: #{danet_forward.6} parent=5 // pred_region
      // Predicated region
      $region21: #{danet_forward.6} parent=19 // pred_check
        %p104 = pneg %p29
      $region22: #{danet_forward.6} parent=19 // pred_check_branch
        %106 = sbr.rel (%p104) target = $region24
      $region23: #{danet_forward.6} parent=19 // pred_region
        %p107 = scmp.lt.s32.totalorder %s9, 1
        %s108 = scalar_select %p107, %s9, 1
        %s109 = smul.addr %s108, 8
        %s110 = smul.addr %s109, 4
        %s111 = scalar_lea.vmem %s0, %s110
      $region24: #{danet_forward.6} parent=19 // pred_fallthru
        _
    $region20: #{danet_forward.6} parent=5 // pred_fallthru
      _
    %p112 = scmp.le.s32.totalorder 1, %s9
    %p113 = scmp.lt.s32.totalorder %s9, 3
    %p114 = pnand %p112, %p113
    %p115 = pneg %p114
    // Predicated region
    $region25: #{danet_forward.6} parent=5 // pred_check
      _
    $region26: #{danet_forward.6} parent=5 // pred_check_branch
      %117 = sbr.rel (%p114) target = $region28
    $region27: #{danet_forward.6} parent=5 // pred_region
      %s118 = ssub.s32 %s9, 1
      %p119 = scmp.lt.s32.totalorder %s14, 1
      %s120 = scalar_select %p119, %s14, 1
      %s121 = smul.addr %s120, 8
      %s122 = smul.addr %s121, 4
      %s123 = scalar_lea.vmem %s0, %s122
      %p124 = pneg %p35
      %p125 = pneg %p32
      %p126 = pneg %p56
      %p127 = pneg %p53
      %p128 = pneg %p82
      %p129 = pneg %p79
      %p130 = scmp.lt.s32.totalorder %s14, 1
      %s131 = scalar_select %p130, %s14, 1
      %s132 = smul.addr %s131, 8
      %s133 = smul.addr %s132, 4
      %s134 = scalar_lea.vmem %s2, %s133
      %p135 = scmp.lt.s32.totalorder %s14, 1
      %s136 = scalar_select %p135, %s14, 1
      %s137 = smul.addr %s136, 8
      %s138 = smul.addr %s137, 4
      %s139 = scalar_lea.vmem %s0, %s138
      %p140 = scmp.lt.s32.totalorder %s14, 1
      %s141 = scalar_select %p140, %s14, 1
      %s142 = smul.addr %s141, 8
      %s143 = smul.addr %s142, 4
      %s144 = scalar_lea.vmem %s2, %s143
      %v146 = vld [vmem:[%s139] sm:$0xf]
      %v147 = vld [vmem:[%s139 + $0x4] sm:$0xf]
      %v148 = vld [vmem:[%s139 + $0x8] sm:$0xf]
      %v149 = vld [vmem:[%s139 + $0xc] sm:$0xf]
      %v150 = vld [vmem:[%s139 + $0x10] sm:$0xf]
      %v151 = vld [vmem:[%s139 + $0x14] sm:$0xf]
      %v152 = vld [vmem:[%s139 + $0x18] sm:$0xf]
      %v153 = vld [vmem:[%s139 + $0x1c] sm:$0xf]
      %v162 = vunpack.c.l.b16 %v146
      %v163 = vunpack.c.l.b16 %v147
      %v164 = vunpack.c.l.b16 %v148
      %v165 = vunpack.c.l.b16 %v149
      %v166 = vunpack.c.l.b16 %v150
      %v167 = vunpack.c.l.b16 %v151
      %v168 = vunpack.c.l.b16 %v152
      %v169 = vunpack.c.l.b16 %v153
      %v170 = vpack.c.b16 %v163, %v162
      %v171 = vpack.c.b16 %v165, %v164
      %v172 = vpack.c.b16 %v167, %v166
      %v173 = vpack.c.b16 %v169, %v168
      %178 = vxpose.xlu0.c.b16.start [1/8] %v170, 128
      %179 = vxpose.xlu0.c.b16.cont [2/8] %v171, 128
      %180 = vxpose.xlu0.c.b16.cont [3/8] %v172, 128
      %181 = vxpose.xlu0.c.b16.cont [4/8] %v173, 128
      %182 = vxpose.xlu0.c.b16.cont [5/8] 0, 128
      %183 = vxpose.xlu0.c.b16.cont [6/8] 0, 128
      %184 = vxpose.xlu0.c.b16.cont [7/8] 0, 128
      %185 = vxpose.xlu0.c.b16.end [8/8] 0, 128
      %v186 = vpop.trf.xlu0
      %v187 = vpop.trf.xlu0
      %v188 = vpop.trf.xlu0
      %v189 = vpop.trf.xlu0
      %v190 = vpop.trf.xlu0
      %v191 = vpop.trf.xlu0
      %v192 = vpop.trf.xlu0
      %v193 = vpop.trf.xlu0
      %vm194 = vcmask 523264
      %v196 = vsel %vm194, %v186, 0
      %198 = vmatpush.bf16.msra.mxu0 0
      %199 = vmatpush.bf16.msra.mxu0 0
      %200 = vmatpush.bf16.msra.mxu0 0
      %201 = vmatpush.bf16.msra.mxu0 0
      %202 = vmatpush.bf16.msra.mxu0 %v173
      %203 = vmatpush.bf16.msra.mxu0 %v172
      %204 = vmatpush.bf16.msra.mxu0 %v171
      %205 = vmatpush.bf16.msra.mxu0 %v170
      %206 = vmatmul.bf16.gmra.mxu0 %v196
      %v207 = vpop.f32.mrf.mxu0
      %v208 = vadd.f32 0.0, %v207
      %v209 = vpop.f32.mrf.mxu0
      %v210 = vadd.f32 0.0, %v209
      %211 = vdwg.mxu0
      %vm212 = vcmask 130048
      %v213 = vsel %vm212, %v208, -inf
      %214 = vmax.xlane.f32.xlu0 %v213
      %v215 = vpop.xlane.xlu0 %214
      %v216 = vsel %vm212, %v210, -inf
      %217 = vmax.xlane.f32.xlu0 %v216
      %v218 = vpop.xlane.xlu0 %217
      %v219 = vsub.f32 %v215, %v208
      %v220 = vsub.f32 %v218, %v210
      %v221 = vsel %vm212, %v219, -inf
      %222 = vmax.xlane.f32.xlu0 %v221
      %v223 = vpop.xlane.xlu0 %222
      %v224 = vsel %vm212, %v220, -inf
      %225 = vmax.xlane.f32.xlu0 %v224
      %v226 = vpop.xlane.xlu0 %225
      %v227 = vsub.f32 %v219, %v223
      %v228 = vsub.f32 %v220, %v226
      %v229 = vmul.f32 %v227, 1.442695
      %v230 = vpow.pop %v229
      %v231 = vmul.f32 %v228, 1.442695
      %v232 = vpow.pop %v231
      %v233 = vsel %vm212, %v230, 0.0
      %234 = vadd.xlane.f32.xlu0 %v233
      %v235 = vpop.xlane.xlu0 %234
      %v236 = vsel %vm212, %v232, 0.0
      %237 = vadd.xlane.f32.xlu0 %v236
      %v238 = vpop.xlane.xlu0 %237
      %v239 = vrcp.pop %v235
      %v240 = vrcp.pop %v238
      %v241 = vmul.f32 %v230, %v239
      %v242 = vmul.f32 %v232, %v240
      %v243 = vpack.c.bf16 %v242, %v241
      %v245 = vsel %vm212, %v170, 0
      %v248 = vsel %vm212, %v171, 0
      %v251 = vsel %vm212, %v172, 0
      %v254 = vsel %vm212, %v173, 0
      %v257 = vsel %vm212, %v243, 0
      %259 = vmatpush.bf16.xpose.msra.mxu0 0
      %260 = vmatpush.bf16.xpose.msra.mxu0 0
      %261 = vmatpush.bf16.xpose.msra.mxu0 0
      %262 = vmatpush.bf16.xpose.msra.mxu0 0
      %263 = vmatpush.bf16.xpose.msra.mxu0 0
      %264 = vmatpush.bf16.xpose.msra.mxu0 0
      %265 = vmatpush.bf16.xpose.msra.mxu0 0
      %266 = vmatpush.bf16.xpose.msra.mxu0 %v257
      %267 = vmatmul.bf16.gmra.mxu0 %v245
      %v268 = vpop.f32.mrf.mxu0
      %v269 = vadd.f32 0.0, %v268
      %v270 = vpop.f32.mrf.mxu0
      %v271 = vadd.f32 0.0, %v270
      %272 = vmatmul.bf16.gmra.mxu0 %v248
      %v273 = vpop.f32.mrf.mxu0
      %v274 = vadd.f32 0.0, %v273
      %v275 = vpop.f32.mrf.mxu0
      %v276 = vadd.f32 0.0, %v275
      %277 = vmatmul.bf16.gmra.mxu0 %v251
      %v278 = vpop.f32.mrf.mxu0
      %v279 = vadd.f32 0.0, %v278
      %v280 = vpop.f32.mrf.mxu0
      %v281 = vadd.f32 0.0, %v280
      %282 = vmatmul.bf16.gmra.mxu0 %v254
      %v283 = vpop.f32.mrf.mxu0
      %v284 = vadd.f32 0.0, %v283
      %v285 = vpop.f32.mrf.mxu0
      %v286 = vadd.f32 0.0, %v285
      %287 = vdwg.mxu0
      %s288 = sld [smem:[#allocation2]]
      %v289 = vstv %s288
      %v290 = vmul.f32 %v289, %v269
      %v291 = vmul.f32 %v289, %v271
      %v292 = vmul.f32 %v289, %v274
      %v293 = vmul.f32 %v289, %v276
      %v294 = vmul.f32 %v289, %v279
      %v295 = vmul.f32 %v289, %v281
      %v296 = vmul.f32 %v289, %v284
      %v297 = vmul.f32 %v289, %v286
      %v298 = vunpack.c.l.bf16 %v146
      %v299 = vunpack.c.l.bf16 %v147
      %v300 = vunpack.c.l.bf16 %v148
      %v301 = vunpack.c.l.bf16 %v149
      %v302 = vunpack.c.l.bf16 %v150
      %v303 = vunpack.c.l.bf16 %v151
      %v304 = vunpack.c.l.bf16 %v152
      %v305 = vunpack.c.l.bf16 %v153
      %v306 = vadd.f32 %v290, %v298
      %v307 = vadd.f32 %v291, %v299
      %v308 = vadd.f32 %v292, %v300
      %v309 = vadd.f32 %v293, %v301
      %v310 = vadd.f32 %v294, %v302
      %v311 = vadd.f32 %v295, %v303
      %v312 = vadd.f32 %v296, %v304
      %v313 = vadd.f32 %v297, %v305
      %v314 = vpack.c.bf16 %v306, %v306
      %v315 = vpack.c.bf16 %v307, %v307
      %v316 = vpack.c.bf16 %v308, %v308
      %v317 = vpack.c.bf16 %v309, %v309
      %v318 = vpack.c.bf16 %v310, %v310
      %v319 = vpack.c.bf16 %v311, %v311
      %v320 = vpack.c.bf16 %v312, %v312
      %v321 = vpack.c.bf16 %v313, %v313
      %vm322 = vcmask 125952
      %323 = vst.msk [vmem:[%s144] sm:$0xf] %vm322, %v314
      %324 = vst.msk [vmem:[%s144 + $0x4] sm:$0xf] %vm322, %v315
      %325 = vst.msk [vmem:[%s144 + $0x8] sm:$0xf] %vm322, %v316
      %326 = vst.msk [vmem:[%s144 + $0xc] sm:$0xf] %vm322, %v317
      %327 = vst.msk [vmem:[%s144 + $0x10] sm:$0xf] %vm322, %v318
      %328 = vst.msk [vmem:[%s144 + $0x14] sm:$0xf] %vm322, %v319
      %329 = vst.msk [vmem:[%s144 + $0x18] sm:$0xf] %vm322, %v320
      %330 = vst.msk [vmem:[%s144 + $0x1c] sm:$0xf] %vm322, %v321
      %p331 = scmp.lt.s32.totalorder %s14, 1
      %s332 = scalar_select %p331, %s14, 1
      %s333 = smul.addr %s332, 8
      %s334 = smul.addr %s333, 4
      %s335 = scalar_lea.vmem %s2, %s334
      // Predicated region
      $region29: #{danet_forward.6} parent=27 // pred_check
        %p336 = pneg %p79
      $region30: #{danet_forward.6} parent=27 // pred_check_branch
        %338 = sbr.rel (%p336) target = $region32
      $region31: #{danet_forward.6} parent=27 // pred_region
        _
      $region32: #{danet_forward.6} parent=27 // pred_fallthru
        _
    $region28: #{danet_forward.6} parent=5 // pred_fallthru
      _
    %p339 = scmp.le.s32.totalorder 2, %s9
    // Predicated region
    $region33: #{danet_forward.6} parent=5 // pred_check
      %p340 = pneg %p339
    $region34: #{danet_forward.6} parent=5 // pred_check_branch
      %342 = sbr.rel (%p340) target = $region36
    $region35: #{danet_forward.6} parent=5 // pred_region
      %s343 = ssub.s32 %s9, 2
      // Predicated region
      $region37: #{danet_forward.6} parent=35 // pred_check
        %p344 = pneg %p85
      $region38: #{danet_forward.6} parent=35 // pred_check_branch
        %346 = sbr.rel (%p344) target = $region40
      $region39: #{danet_forward.6} parent=35 // pred_region
        %p347 = scmp.lt.s32.totalorder %s15, 1
        %s348 = scalar_select %p347, %s15, 1
        %s349 = smul.addr %s348, 8
        %s350 = smul.addr %s349, 4
        %s351 = scalar_lea.vmem %s2, %s350
      $region40: #{danet_forward.6} parent=35 // pred_fallthru
        _
    $region36: #{danet_forward.6} parent=5 // pred_fallthru
      _
  $region6: #{danet_forward.6} parent=0 // loop_footer
    %s13 = sadd.s32 1, %s9
  $region7: #{danet_forward.6} parent=0 // loop_footer_branch
    %8 = sbr.rel target = $region3
  $region8: #{danet_forward.6} parent=0 // loop_exit
    _

// kernel: danet_forward.4
$region0: #{danet_forward.4}
  #allocation0 [shape = 'u32[]', space=smem, size = 0x4, offset = 0x4, fixed_abs, tag = 'smem constant byte address 0x4 - core index']
  #allocation1 [shape = 'u32[72,128]{1,0:T(1,128)}', space=vmem, size = 0x9000, scoped, tag = 'internal scratch']
  %s0 = inlined_call_operand.vmem [shape: bf16[2,64,576], index: 0, kind: input, shape index: {}]
  %s1 = inlined_call_operand.vmem [shape: bf16[576,32], index: 1, kind: input, shape index: {}]
  %s2 = inlined_call_operand.vmem [shape: f32[1,32], index: 2, kind: input, shape index: {}]
  %s3 = inlined_call_operand.vmem [shape: bf16[16,32], index: 3, kind: input, shape index: {}]
  %s4 = inlined_call_operand.vmem [shape: f32[1,32], index: 4, kind: input, shape index: {}]
  %s5 = inlined_call_operand.vmem [shape: bf16[2,64,16], index: 5, kind: output, shape index: {0}]
  %s6 = inlined_call_operand.vmem [shape: bf16[2,64,16], index: 6, kind: output, shape index: {1}]
  %s7 = inlined_call_operand.vmem [shape: bf16[2,64,8], index: 7, kind: output, shape index: {2}]
  %s8 = inlined_call_operand.vmem [shape: bf16[2,64,8], index: 8, kind: output, shape index: {3}]
  %s9 = inlined_call_operand.vmem [shape: bf16[2,64,16], index: 9, kind: output, shape index: {4}]
  %10 = xla_tuple %s5, %s6, %s7, %s8, %s9
  %s11 = sld [smem:[#allocation0]]
  $region85: #{danet_forward.4} parent=0
    _
  %s13 = ssub.s32 1, %s11
  %s14 = scalar_select 0, %s13, %s11
  loop: start=0, step=1, limit=6
  $region2: #{danet_forward.4} parent=0 // loop_pre_header
    _
  $region3: #{danet_forward.4} parent=0 // loop_header
    %s16 = sphi 0, %s20
    %p17 = scmp.ge.s32.totalorder %s16, 6
    %s23 = sphi 0, %s35
    %s24 = sphi 0, %s31
    %s25 = sphi 0, %s23
    %s26 = sphi 0, %s24
    %s27 = sphi 0, %s25
    %s28 = sphi 0, %s26
    %s40 = sphi 0, %s42
    %s43 = sphi 0, %s40
    %s44 = sphi 0, %s43
    %s60 = sphi 0, %s44
    %s64 = sphi 0, %s64
    %s66 = sphi 0, %s64
    %s67 = sphi 0, %s66
    %s81 = sphi 0, %s67
    %s85 = sphi 0, %s85
    %s87 = sphi 0, %s85
    %s88 = sphi 0, %s87
    %s102 = sphi 0, %s88
    %s106 = sphi 0, %s106
    %s108 = sphi 0, %s106
    %s109 = sphi 0, %s108
    %s123 = sphi 0, %s109
    %s127 = sphi 0, %s127
    %s129 = sphi 0, %s127
    %s130 = sphi 0, %s129
    %s144 = sphi 0, %s130
    %s152 = sphi 0, %s154
    %s155 = sphi 0, %s152
    %s156 = sphi 0, %s155
    %s172 = sphi 0, %s156
    %s180 = sphi 0, %s182
    %s183 = sphi 0, %s180
    %s184 = sphi 0, %s183
    %s200 = sphi 0, %s184
    %s208 = sphi 0, %s210
    %s211 = sphi 0, %s208
    %s212 = sphi 0, %s211
    %s228 = sphi 0, %s212
    %s236 = sphi 0, %s238
    %s239 = sphi 0, %s236
    %s240 = sphi 0, %s239
    %s256 = sphi 0, %s240
    %s264 = sphi 0, %s266
    %s267 = sphi 0, %s264
    %s268 = sphi 0, %s267
    %s284 = sphi 0, %s268
  $region4: #{danet_forward.4} parent=0 // loop_header_branch
    %19 = sbr.rel (%p17) target = $region8
  $region5: #{danet_forward.4} parent=0 // loop_body
    %s21 = ssub.s32 %s16, 1
    %s22 = ssub.s32 %s16, 2
    %s29 = sadd.s32 1, %s24
    %p30 = scmp.ge.s32.totalorder %s29, 2
    %s31 = scalar_select %p30, 0, %s29
    %s32 = sadd.s32 1, %s23
    %s33 = scalar_select %p30, %s32, %s23
    %p34 = scmp.ge.s32.totalorder %s33, 2
    %s35 = scalar_select %p34, 0, %s33
    %s36 = ssub.s32 %s23, %s35
    %s37 = ssub.s32 %s24, %s31
    %s38 = sor.u32 %s36, %s37
    %p39 = scmp.eq.s32.totalorder %s38, 0
    %s41 = sadd.s32 %s40, 1
    %s42 = scalar_select %p39, %s40, %s41
    %p45 = pneg %p39
    %p46 = scmp.eq.s32.totalorder %s16, 3
    %p47 = por %p45, %p46
    %p48 = scmp.ne.s32.totalorder %s40, %s43
    %p49 = scmp.eq.s32.totalorder %s16, 0
    %p50 = por %p48, %p49
    %p51 = scmp.ne.s32.totalorder %s40, %s43
    %p52 = scmp.eq.s32.totalorder %s21, 3
    %p53 = por %p51, %p52
    %p54 = scmp.ne.s32.totalorder %s43, %s44
    %p55 = scmp.eq.s32.totalorder %s21, 0
    %p56 = por %p54, %p55
    %p57 = scmp.ne.s32.totalorder %s43, %s44
    %p58 = scmp.eq.s32.totalorder %s22, 3
    %p59 = por %p57, %p58
    %p61 = scmp.ne.s32.totalorder %s44, %s60
    %p62 = scmp.eq.s32.totalorder %s22, 0
    %p63 = por %p61, %p62
    %s65 = sadd.s32 %s64, 1
    %p68 = scmp.eq.s32.totalorder %s16, 3
    %p69 = scmp.ne.s32.totalorder %s64, %s66
    %p70 = scmp.eq.s32.totalorder %s16, 0
    %p71 = por %p69, %p70
    %p72 = scmp.ne.s32.totalorder %s64, %s66
    %p73 = scmp.eq.s32.totalorder %s21, 3
    %p74 = por %p72, %p73
    %p75 = scmp.ne.s32.totalorder %s66, %s67
    %p76 = scmp.eq.s32.totalorder %s21, 0
    %p77 = por %p75, %p76
    %p78 = scmp.ne.s32.totalorder %s66, %s67
    %p79 = scmp.eq.s32.totalorder %s22, 3
    %p80 = por %p78, %p79
    %p82 = scmp.ne.s32.totalorder %s67, %s81
    %p83 = scmp.eq.s32.totalorder %s22, 0
    %p84 = por %p82, %p83
    %s86 = sadd.s32 %s85, 1
    %p89 = scmp.eq.s32.totalorder %s16, 3
    %p90 = scmp.ne.s32.totalorder %s85, %s87
    %p91 = scmp.eq.s32.totalorder %s16, 0
    %p92 = por %p90, %p91
    %p93 = scmp.ne.s32.totalorder %s85, %s87
    %p94 = scmp.eq.s32.totalorder %s21, 3
    %p95 = por %p93, %p94
    %p96 = scmp.ne.s32.totalorder %s87, %s88
    %p97 = scmp.eq.s32.totalorder %s21, 0
    %p98 = por %p96, %p97
    %p99 = scmp.ne.s32.totalorder %s87, %s88
    %p100 = scmp.eq.s32.totalorder %s22, 3
    %p101 = por %p99, %p100
    %p103 = scmp.ne.s32.totalorder %s88, %s102
    %p104 = scmp.eq.s32.totalorder %s22, 0
    %p105 = por %p103, %p104
    %s107 = sadd.s32 %s106, 1
    %p110 = scmp.eq.s32.totalorder %s16, 3
    %p111 = scmp.ne.s32.totalorder %s106, %s108
    %p112 = scmp.eq.s32.totalorder %s16, 0
    %p113 = por %p111, %p112
    %p114 = scmp.ne.s32.totalorder %s106, %s108
    %p115 = scmp.eq.s32.totalorder %s21, 3
    %p116 = por %p114, %p115
    %p117 = scmp.ne.s32.totalorder %s108, %s109
    %p118 = scmp.eq.s32.totalorder %s21, 0
    %p119 = por %p117, %p118
    %p120 = scmp.ne.s32.totalorder %s108, %s109
    %p121 = scmp.eq.s32.totalorder %s22, 3
    %p122 = por %p120, %p121
    %p124 = scmp.ne.s32.totalorder %s109, %s123
    %p125 = scmp.eq.s32.totalorder %s22, 0
    %p126 = por %p124, %p125
    %s128 = sadd.s32 %s127, 1
    %p131 = scmp.eq.s32.totalorder %s16, 3
    %p132 = scmp.ne.s32.totalorder %s127, %s129
    %p133 = scmp.eq.s32.totalorder %s16, 0
    %p134 = por %p132, %p133
    %p135 = scmp.ne.s32.totalorder %s127, %s129
    %p136 = scmp.eq.s32.totalorder %s21, 3
    %p137 = por %p135, %p136
    %p138 = scmp.ne.s32.totalorder %s129, %s130
    %p139 = scmp.eq.s32.totalorder %s21, 0
    %p140 = por %p138, %p139
    %p141 = scmp.ne.s32.totalorder %s129, %s130
    %p142 = scmp.eq.s32.totalorder %s22, 3
    %p143 = por %p141, %p142
    %p145 = scmp.ne.s32.totalorder %s130, %s144
    %p146 = scmp.eq.s32.totalorder %s22, 0
    %p147 = por %p145, %p146
    %s148 = ssub.s32 %s23, %s35
    %s149 = ssub.s32 %s24, %s31
    %s150 = sor.u32 %s148, %s149
    %p151 = scmp.eq.s32.totalorder %s150, 0
    %s153 = sadd.s32 %s152, 1
    %s154 = scalar_select %p151, %s152, %s153
    %p157 = pneg %p151
    %p158 = scmp.eq.s32.totalorder %s16, 3
    %p159 = por %p157, %p158
    %p160 = scmp.ne.s32.totalorder %s152, %s155
    %p161 = scmp.eq.s32.totalorder %s16, 0
    %p162 = por %p160, %p161
    %p163 = scmp.ne.s32.totalorder %s152, %s155
    %p164 = scmp.eq.s32.totalorder %s21, 3
    %p165 = por %p163, %p164
    %p166 = scmp.ne.s32.totalorder %s155, %s156
    %p167 = scmp.eq.s32.totalorder %s21, 0
    %p168 = por %p166, %p167
    %p169 = scmp.ne.s32.totalorder %s155, %s156
    %p170 = scmp.eq.s32.totalorder %s22, 3
    %p171 = por %p169, %p170
    %p173 = scmp.ne.s32.totalorder %s156, %s172
    %p174 = scmp.eq.s32.totalorder %s22, 0
    %p175 = por %p173, %p174
    %s176 = ssub.s32 %s23, %s35
    %s177 = ssub.s32 %s24, %s31
    %s178 = sor.u32 %s176, %s177
    %p179 = scmp.eq.s32.totalorder %s178, 0
    %s181 = sadd.s32 %s180, 1
    %s182 = scalar_select %p179, %s180, %s181
    %p185 = pneg %p179
    %p186 = scmp.eq.s32.totalorder %s16, 3
    %p187 = por %p185, %p186
    %p188 = scmp.ne.s32.totalorder %s180, %s183
    %p189 = scmp.eq.s32.totalorder %s16, 0
    %p190 = por %p188, %p189
    %p191 = scmp.ne.s32.totalorder %s180, %s183
    %p192 = scmp.eq.s32.totalorder %s21, 3
    %p193 = por %p191, %p192
    %p194 = scmp.ne.s32.totalorder %s183, %s184
    %p195 = scmp.eq.s32.totalorder %s21, 0
    %p196 = por %p194, %p195
    %p197 = scmp.ne.s32.totalorder %s183, %s184
    %p198 = scmp.eq.s32.totalorder %s22, 3
    %p199 = por %p197, %p198
    %p201 = scmp.ne.s32.totalorder %s184, %s200
    %p202 = scmp.eq.s32.totalorder %s22, 0
    %p203 = por %p201, %p202
    %s204 = ssub.s32 %s23, %s35
    %s205 = ssub.s32 %s24, %s31
    %s206 = sor.u32 %s204, %s205
    %p207 = scmp.eq.s32.totalorder %s206, 0
    %s209 = sadd.s32 %s208, 1
    %s210 = scalar_select %p207, %s208, %s209
    %p213 = pneg %p207
    %p214 = scmp.eq.s32.totalorder %s16, 3
    %p215 = por %p213, %p214
    %p216 = scmp.ne.s32.totalorder %s208, %s211
    %p217 = scmp.eq.s32.totalorder %s16, 0
    %p218 = por %p216, %p217
    %p219 = scmp.ne.s32.totalorder %s208, %s211
    %p220 = scmp.eq.s32.totalorder %s21, 3
    %p221 = por %p219, %p220
    %p222 = scmp.ne.s32.totalorder %s211, %s212
    %p223 = scmp.eq.s32.totalorder %s21, 0
    %p224 = por %p222, %p223
    %p225 = scmp.ne.s32.totalorder %s211, %s212
    %p226 = scmp.eq.s32.totalorder %s22, 3
    %p227 = por %p225, %p226
    %p229 = scmp.ne.s32.totalorder %s212, %s228
    %p230 = scmp.eq.s32.totalorder %s22, 0
    %p231 = por %p229, %p230
    %s232 = ssub.s32 %s23, %s35
    %s233 = ssub.s32 %s24, %s31
    %s234 = sor.u32 %s232, %s233
    %p235 = scmp.eq.s32.totalorder %s234, 0
    %s237 = sadd.s32 %s236, 1
    %s238 = scalar_select %p235, %s236, %s237
    %p241 = pneg %p235
    %p242 = scmp.eq.s32.totalorder %s16, 3
    %p243 = por %p241, %p242
    %p244 = scmp.ne.s32.totalorder %s236, %s239
    %p245 = scmp.eq.s32.totalorder %s16, 0
    %p246 = por %p244, %p245
    %p247 = scmp.ne.s32.totalorder %s236, %s239
    %p248 = scmp.eq.s32.totalorder %s21, 3
    %p249 = por %p247, %p248
    %p250 = scmp.ne.s32.totalorder %s239, %s240
    %p251 = scmp.eq.s32.totalorder %s21, 0
    %p252 = por %p250, %p251
    %p253 = scmp.ne.s32.totalorder %s239, %s240
    %p254 = scmp.eq.s32.totalorder %s22, 3
    %p255 = por %p253, %p254
    %p257 = scmp.ne.s32.totalorder %s240, %s256
    %p258 = scmp.eq.s32.totalorder %s22, 0
    %p259 = por %p257, %p258
    %s260 = ssub.s32 %s23, %s35
    %s261 = ssub.s32 %s24, %s31
    %s262 = sor.u32 %s260, %s261
    %p263 = scmp.eq.s32.totalorder %s262, 0
    %s265 = sadd.s32 %s264, 1
    %s266 = scalar_select %p263, %s264, %s265
    %p269 = pneg %p263
    %p270 = scmp.eq.s32.totalorder %s16, 3
    %p271 = por %p269, %p270
    %p272 = scmp.ne.s32.totalorder %s264, %s267
    %p273 = scmp.eq.s32.totalorder %s16, 0
    %p274 = por %p272, %p273
    %p275 = scmp.ne.s32.totalorder %s264, %s267
    %p276 = scmp.eq.s32.totalorder %s21, 3
    %p277 = por %p275, %p276
    %p278 = scmp.ne.s32.totalorder %s267, %s268
    %p279 = scmp.eq.s32.totalorder %s21, 0
    %p280 = por %p278, %p279
    %p281 = scmp.ne.s32.totalorder %s267, %s268
    %p282 = scmp.eq.s32.totalorder %s22, 3
    %p283 = por %p281, %p282
    %p285 = scmp.ne.s32.totalorder %s268, %s284
    %p286 = scmp.eq.s32.totalorder %s22, 0
    %p287 = por %p285, %p286
    %p288 = scmp.le.s32.totalorder 1, %s16
    %p289 = scmp.lt.s32.totalorder %s16, 5
    %p290 = pnand %p288, %p289
    %p291 = pneg %p290
    // Predicated region
    $region9: #{danet_forward.4} parent=5 // pred_check
      _
    $region10: #{danet_forward.4} parent=5 // pred_check_branch
      %293 = sbr.rel (%p290) target = $region12
    $region11: #{danet_forward.4} parent=5 // pred_region
      %s294 = ssub.s32 %s16, 1
      // Predicated region
      $region13: #{danet_forward.4} parent=11 // pred_check
        %p295 = pneg %p77
      $region14: #{danet_forward.4} parent=11 // pred_check_branch
        %297 = sbr.rel (%p295) target = $region16
      $region15: #{danet_forward.4} parent=11 // pred_region
        _
      $region16: #{danet_forward.4} parent=11 // pred_fallthru
        _
      // Predicated region
      $region17: #{danet_forward.4} parent=11 // pred_check
        %p298 = pneg %p98
      $region18: #{danet_forward.4} parent=11 // pred_check_branch
        %300 = sbr.rel (%p298) target = $region20
      $region19: #{danet_forward.4} parent=11 // pred_region
        _
      $region20: #{danet_forward.4} parent=11 // pred_fallthru
        _
      // Predicated region
      $region21: #{danet_forward.4} parent=11 // pred_check
        %p301 = pneg %p119
      $region22: #{danet_forward.4} parent=11 // pred_check_branch
        %303 = sbr.rel (%p301) target = $region24
      $region23: #{danet_forward.4} parent=11 // pred_region
        _
      $region24: #{danet_forward.4} parent=11 // pred_fallthru
        _
      // Predicated region
      $region25: #{danet_forward.4} parent=11 // pred_check
        %p304 = pneg %p140
      $region26: #{danet_forward.4} parent=11 // pred_check_branch
        %306 = sbr.rel (%p304) target = $region28
      $region27: #{danet_forward.4} parent=11 // pred_region
        _
      $region28: #{danet_forward.4} parent=11 // pred_fallthru
        _
    $region12: #{danet_forward.4} parent=5 // pred_fallthru
      _
    %p307 = scmp.lt.s32.totalorder %s16, 4
    // Predicated region
    $region29: #{danet_forward.4} parent=5 // pred_check
      %p308 = pneg %p307
    $region30: #{danet_forward.4} parent=5 // pred_check_branch
      %310 = sbr.rel (%p308) target = $region32
    $region31: #{danet_forward.4} parent=5 // pred_region
      // Predicated region
      $region33: #{danet_forward.4} parent=31 // pred_check
        %p311 = pneg %p50
      $region34: #{danet_forward.4} parent=31 // pred_check_branch
        %313 = sbr.rel (%p311) target = $region36
      $region35: #{danet_forward.4} parent=31 // pred_region
        %s314 = smul.u32 4, %s24
        %p315 = scmp.lt.s32.totalorder %s23, 1
        %s316 = scalar_select %p315, %s23, 1
        %p317 = scmp.lt.s32.totalorder %s314, 7
        %s318 = scalar_select %p317, %s314, 7
        %s319 = smul.addr %s318, 5
        %s320 = smul.addr %s316, 40
        %s321 = sadd.s32 %s319, %s320
        %s322 = smul.addr %s321, 4
        %s323 = scalar_lea.vmem %s0, %s322
        %s324 = smul.u32 4, %s24
      $region36: #{danet_forward.4} parent=31 // pred_fallthru
        _
    $region32: #{danet_forward.4} parent=5 // pred_fallthru
      _
    %p325 = scmp.le.s32.totalorder 1, %s16
    %p326 = scmp.lt.s32.totalorder %s16, 5
    %p327 = pnand %p325, %p326
    %p328 = pneg %p327
    // Predicated region
    $region37: #{danet_forward.4} parent=5 // pred_check
      _
    $region38: #{danet_forward.4} parent=5 // pred_check_branch
      %330 = sbr.rel (%p327) target = $region40
    $region39: #{danet_forward.4} parent=5 // pred_region
      %s331 = ssub.s32 %s16, 1
      %s332 = smul.u32 4, %s26
      %p333 = scmp.lt.s32.totalorder %s25, 1
      %s334 = scalar_select %p333, %s25, 1
      %p335 = scmp.lt.s32.totalorder %s332, 7
      %s336 = scalar_select %p335, %s332, 7
      %s337 = smul.addr %s336, 5
      %s338 = smul.addr %s334, 40
      %s339 = sadd.s32 %s337, %s338
      %s340 = smul.addr %s339, 4
      %s341 = scalar_lea.vmem %s0, %s340
      %p342 = pneg %p56
      %p343 = pneg %p53
      %p344 = pneg %p77
      %p345 = pneg %p74
      %p346 = pneg %p98
      %p347 = pneg %p95
      %p348 = pneg %p119
      %p349 = pneg %p116
      %p350 = pneg %p140
      %p351 = pneg %p137
      %p352 = pneg %p168
      %p353 = pneg %p165
      %s354 = smul.u32 4, %s26
      %p355 = scmp.lt.s32.totalorder %s25, 1
      %s356 = scalar_select %p355, %s25, 1
      %p357 = scmp.lt.s32.totalorder %s354, 7
      %s358 = scalar_select %p357, %s354, 7
      %s359 = smul.addr %s356, 8
      %s360 = sadd.s32 %s358, %s359
      %s361 = smul.addr %s360, 4
      %s362 = scalar_lea.vmem %s5, %s361
      %p363 = pneg %p196
      %p364 = pneg %p193
      %s365 = smul.u32 4, %s26
      %p366 = scmp.lt.s32.totalorder %s25, 1
      %s367 = scalar_select %p366, %s25, 1
      %p368 = scmp.lt.s32.totalorder %s365, 7
      %s369 = scalar_select %p368, %s365, 7
      %s370 = smul.addr %s367, 8
      %s371 = sadd.s32 %s369, %s370
      %s372 = smul.addr %s371, 4
      %s373 = scalar_lea.vmem %s6, %s372
      %p374 = pneg %p224
      %p375 = pneg %p221
      %s376 = smul.u32 4, %s26
      %p377 = scmp.lt.s32.totalorder %s25, 1
      %s378 = scalar_select %p377, %s25, 1
      %p379 = scmp.lt.s32.totalorder %s376, 7
      %s380 = scalar_select %p379, %s376, 7
      %s381 = smul.addr %s378, 8
      %s382 = sadd.s32 %s380, %s381
      %s383 = smul.addr %s382, 4
      %s384 = scalar_lea.vmem %s7, %s383
      %p385 = pneg %p252
      %p386 = pneg %p249
      %s387 = smul.u32 4, %s26
      %p388 = scmp.lt.s32.totalorder %s25, 1
      %s389 = scalar_select %p388, %s25, 1
      %p390 = scmp.lt.s32.totalorder %s387, 7
      %s391 = scalar_select %p390, %s387, 7
      %s392 = smul.addr %s389, 8
      %s393 = sadd.s32 %s391, %s392
      %s394 = smul.addr %s393, 4
      %s395 = scalar_lea.vmem %s8, %s394
      %p396 = pneg %p280
      %p397 = pneg %p277
      %s398 = smul.u32 4, %s26
      %p399 = scmp.lt.s32.totalorder %s25, 1
      %s400 = scalar_select %p399, %s25, 1
      %p401 = scmp.lt.s32.totalorder %s398, 7
      %s402 = scalar_select %p401, %s398, 7
      %s403 = smul.addr %s400, 8
      %s404 = sadd.s32 %s402, %s403
      %s405 = smul.addr %s404, 4
      %s406 = scalar_lea.vmem %s9, %s405
      %s407 = smul.u32 4, %s26
      %p408 = scmp.lt.s32.totalorder %s25, 1
      %s409 = scalar_select %p408, %s25, 1
      %p410 = scmp.lt.s32.totalorder %s407, 7
      %s411 = scalar_select %p410, %s407, 7
      %s412 = smul.addr %s411, 5
      %s413 = smul.addr %s409, 40
      %s414 = sadd.s32 %s412, %s413
      %s415 = smul.addr %s414, 4
      %s416 = scalar_lea.vmem %s0, %s415
      %s417 = smul.u32 4, %s26
      %s418 = smul.u32 4, %s26
      %p419 = scmp.lt.s32.totalorder %s25, 1
      %s420 = scalar_select %p419, %s25, 1
      %p421 = scmp.lt.s32.totalorder %s418, 7
      %s422 = scalar_select %p421, %s418, 7
      %s423 = smul.addr %s420, 8
      %s424 = sadd.s32 %s422, %s423
      %s425 = smul.addr %s424, 4
      %s426 = scalar_lea.vmem %s5, %s425
      %s427 = smul.u32 4, %s26
      %s428 = smul.u32 4, %s26
      %p429 = scmp.lt.s32.totalorder %s25, 1
      %s430 = scalar_select %p429, %s25, 1
      %p431 = scmp.lt.s32.totalorder %s428, 7
      %s432 = scalar_select %p431, %s428, 7
      %s433 = smul.addr %s430, 8
      %s434 = sadd.s32 %s432, %s433
      %s435 = smul.addr %s434, 4
      %s436 = scalar_lea.vmem %s6, %s435
      %s437 = smul.u32 4, %s26
      %s438 = smul.u32 4, %s26
      %p439 = scmp.lt.s32.totalorder %s25, 1
      %s440 = scalar_select %p439, %s25, 1
      %p441 = scmp.lt.s32.totalorder %s438, 7
      %s442 = scalar_select %p441, %s438, 7
      %s443 = smul.addr %s440, 8
      %s444 = sadd.s32 %s442, %s443
      %s445 = smul.addr %s444, 4
      %s446 = scalar_lea.vmem %s7, %s445
      %s447 = smul.u32 4, %s26
      %s448 = smul.u32 4, %s26
      %p449 = scmp.lt.s32.totalorder %s25, 1
      %s450 = scalar_select %p449, %s25, 1
      %p451 = scmp.lt.s32.totalorder %s448, 7
      %s452 = scalar_select %p451, %s448, 7
      %s453 = smul.addr %s450, 8
      %s454 = sadd.s32 %s452, %s453
      %s455 = smul.addr %s454, 4
      %s456 = scalar_lea.vmem %s8, %s455
      %s457 = smul.u32 4, %s26
      %s458 = smul.u32 4, %s26
      %p459 = scmp.lt.s32.totalorder %s25, 1
      %s460 = scalar_select %p459, %s25, 1
      %p461 = scmp.lt.s32.totalorder %s458, 7
      %s462 = scalar_select %p461, %s458, 7
      %s463 = smul.addr %s460, 8
      %s464 = sadd.s32 %s462, %s463
      %s465 = smul.addr %s464, 4
      %s466 = scalar_lea.vmem %s9, %s465
      %s467 = smul.u32 4, %s26
      %v469 = vld [vmem:[%s416] sm:$0xff]
      %v470 = vld [vmem:[%s416 + $0x8] sm:$0xff]
      %v471 = vld [vmem:[%s416 + $0x10] sm:$0xf]
      %v472 = vld [vmem:[%s416 + $0x14] sm:$0xff]
      %v473 = vld [vmem:[%s416 + $0x1c] sm:$0xff]
      %v474 = vld [vmem:[%s416 + $0x24] sm:$0xf]
      %v475 = vld [vmem:[%s416 + $0x28] sm:$0xff]
      %v476 = vld [vmem:[%s416 + $0x30] sm:$0xff]
      %v477 = vld [vmem:[%s416 + $0x38] sm:$0xf]
      %v478 = vld [vmem:[%s416 + $0x3c] sm:$0xff]
      %v479 = vld [vmem:[%s416 + $0x44] sm:$0xff]
      %v480 = vld [vmem:[%s416 + $0x4c] sm:$0xf]
      %v481 = vld [vmem:[%s1] sm:$0xf]
      %v482 = vld [vmem:[%s1 + $0x4] sm:$0xf]
      %v483 = vld [vmem:[%s1 + $0x8] sm:$0xf]
      %v484 = vld [vmem:[%s1 + $0xc] sm:$0xf]
      %v485 = vld [vmem:[%s1 + $0x10] sm:$0xf]
      %v486 = vld [vmem:[%s1 + $0x14] sm:$0xf]
      %v487 = vld [vmem:[%s1 + $0x18] sm:$0xf]
      %v488 = vld [vmem:[%s1 + $0x1c] sm:$0xf]
      %v489 = vld [vmem:[%s1 + $0x20] sm:$0xf]
      %v490 = vld [vmem:[%s1 + $0x24] sm:$0xf]
      %v491 = vld [vmem:[%s1 + $0x28] sm:$0xf]
      %v492 = vld [vmem:[%s1 + $0x2c] sm:$0xf]
      %v493 = vld [vmem:[%s1 + $0x30] sm:$0xf]
      %v494 = vld [vmem:[%s1 + $0x34] sm:$0xf]
      %v495 = vld [vmem:[%s1 + $0x38] sm:$0xf]
      %v496 = vld [vmem:[%s1 + $0x3c] sm:$0xf]
      %v497 = vld [vmem:[%s1 + $0x40] sm:$0xf]
      %v498 = vld [vmem:[%s1 + $0x44] sm:$0xf]
      %v499 = vld [vmem:[%s1 + $0x48] sm:$0xf]
      %v500 = vld [vmem:[%s1 + $0x4c] sm:$0xf]
      %v501 = vld [vmem:[%s1 + $0x50] sm:$0xf]
      %v502 = vld [vmem:[%s1 + $0x54] sm:$0xf]
      %v503 = vld [vmem:[%s1 + $0x58] sm:$0xf]
      %v504 = vld [vmem:[%s1 + $0x5c] sm:$0xf]
      %v505 = vld [vmem:[%s1 + $0x60] sm:$0xf]
      %v506 = vld [vmem:[%s1 + $0x64] sm:$0xf]
      %v507 = vld [vmem:[%s1 + $0x68] sm:$0xf]
      %v508 = vld [vmem:[%s1 + $0x6c] sm:$0xf]
      %v509 = vld [vmem:[%s1 + $0x70] sm:$0xf]
      %v510 = vld [vmem:[%s1 + $0x74] sm:$0xf]
      %v511 = vld [vmem:[%s1 + $0x78] sm:$0xf]
      %v512 = vld [vmem:[%s1 + $0x7c] sm:$0xf]
      %v513 = vld [vmem:[%s1 + $0x80] sm:$0xf]
      %v514 = vld [vmem:[%s1 + $0x84] sm:$0xf]
      %v515 = vld [vmem:[%s1 + $0x88] sm:$0xf]
      %v516 = vld [vmem:[%s1 + $0x8c] sm:$0xf]
      %v517 = vld [vmem:[%s1 + $0x90] sm:$0xf]
      %v518 = vld [vmem:[%s1 + $0x94] sm:$0xf]
      %v519 = vld [vmem:[%s1 + $0x98] sm:$0xf]
      %v520 = vld [vmem:[%s1 + $0x9c] sm:$0xf]
      %v521 = vld [vmem:[%s1 + $0xa0] sm:$0xf]
      %v522 = vld [vmem:[%s1 + $0xa4] sm:$0xf]
      %v523 = vld [vmem:[%s1 + $0xa8] sm:$0xf]
      %v524 = vld [vmem:[%s1 + $0xac] sm:$0xf]
      %v525 = vld [vmem:[%s1 + $0xb0] sm:$0xf]
      %v526 = vld [vmem:[%s1 + $0xb4] sm:$0xf]
      %v527 = vld [vmem:[%s1 + $0xb8] sm:$0xf]
      %v528 = vld [vmem:[%s1 + $0xbc] sm:$0xf]
      %v529 = vld [vmem:[%s1 + $0xc0] sm:$0xf]
      %v530 = vld [vmem:[%s1 + $0xc4] sm:$0xf]
      %v531 = vld [vmem:[%s1 + $0xc8] sm:$0xf]
      %v532 = vld [vmem:[%s1 + $0xcc] sm:$0xf]
      %v533 = vld [vmem:[%s1 + $0xd0] sm:$0xf]
      %v534 = vld [vmem:[%s1 + $0xd4] sm:$0xf]
      %v535 = vld [vmem:[%s1 + $0xd8] sm:$0xf]
      %v536 = vld [vmem:[%s1 + $0xdc] sm:$0xf]
      %v537 = vld [vmem:[%s1 + $0xe0] sm:$0xf]
      %v538 = vld [vmem:[%s1 + $0xe4] sm:$0xf]
      %v539 = vld [vmem:[%s1 + $0xe8] sm:$0xf]
      %v540 = vld [vmem:[%s1 + $0xec] sm:$0xf]
      %v541 = vld [vmem:[%s1 + $0xf0] sm:$0xf]
      %v542 = vld [vmem:[%s1 + $0xf4] sm:$0xf]
      %v543 = vld [vmem:[%s1 + $0xf8] sm:$0xf]
      %v544 = vld [vmem:[%s1 + $0xfc] sm:$0xf]
      %v545 = vld [vmem:[%s1 + $0x100] sm:$0xf]
      %v546 = vld [vmem:[%s1 + $0x104] sm:$0xf]
      %v547 = vld [vmem:[%s1 + $0x108] sm:$0xf]
      %v548 = vld [vmem:[%s1 + $0x10c] sm:$0xf]
      %v549 = vld [vmem:[%s1 + $0x110] sm:$0xf]
      %v550 = vld [vmem:[%s1 + $0x114] sm:$0xf]
      %v551 = vld [vmem:[%s1 + $0x118] sm:$0xf]
      %v552 = vld [vmem:[%s1 + $0x11c] sm:$0xf]
      %v553 = vld [vmem:[%s2] sm:$0x1]
      %v555 = vperm.slane %v553, 0
      %v569 = vunpack.c.l.b16 %v469
      %v570 = vunpack.c.h.b16 %v469
      %v571 = vunpack.c.l.b16 %v470
      %v572 = vunpack.c.h.b16 %v470
      %v573 = vunpack.c.l.b16 %v471
      %v574 = vunpack.c.l.b16 %v472
      %v575 = vunpack.c.h.b16 %v472
      %v576 = vunpack.c.l.b16 %v473
      %v577 = vunpack.c.h.b16 %v473
      %v578 = vunpack.c.l.b16 %v474
      %v579 = vunpack.c.l.b16 %v475
      %v580 = vunpack.c.h.b16 %v475
      %v581 = vunpack.c.l.b16 %v476
      %v582 = vunpack.c.h.b16 %v476
      %v583 = vunpack.c.l.b16 %v477
      %v584 = vunpack.c.l.b16 %v478
      %v585 = vunpack.c.h.b16 %v478
      %v586 = vunpack.c.l.b16 %v479
      %v587 = vunpack.c.h.b16 %v479
      %v588 = vunpack.c.l.b16 %v480
      %v589 = vpack.c.b16 %v574, %v569
      %v590 = vpack.c.b16 %v575, %v570
      %v591 = vpack.c.b16 %v576, %v571
      %v592 = vpack.c.b16 %v577, %v572
      %v593 = vpack.c.b16 %v578, %v573
      %v594 = vpack.c.b16 %v584, %v579
      %v595 = vpack.c.b16 %v585, %v580
      %v596 = vpack.c.b16 %v586, %v581
      %v597 = vpack.c.b16 %v587, %v582
      %v598 = vpack.c.b16 %v588, %v583
      %v679 = vunpack.c.l.b16 %v481
      %v680 = vunpack.c.l.b16 %v482
      %v681 = vunpack.c.l.b16 %v483
      %v682 = vunpack.c.l.b16 %v484
      %v683 = vunpack.c.l.b16 %v485
      %v684 = vunpack.c.l.b16 %v486
      %v685 = vunpack.c.l.b16 %v487
      %v686 = vunpack.c.l.b16 %v488
      %v687 = vunpack.c.l.b16 %v489
      %v688 = vunpack.c.l.b16 %v490
      %v689 = vunpack.c.l.b16 %v491
      %v690 = vunpack.c.l.b16 %v492
      %v691 = vunpack.c.l.b16 %v493
      %v692 = vunpack.c.l.b16 %v494
      %v693 = vunpack.c.l.b16 %v495
      %v694 = vunpack.c.l.b16 %v496
      %v695 = vunpack.c.l.b16 %v497
      %v696 = vunpack.c.l.b16 %v498
      %v697 = vunpack.c.l.b16 %v499
      %v698 = vunpack.c.l.b16 %v500
      %v699 = vunpack.c.l.b16 %v501
      %v700 = vunpack.c.l.b16 %v502
      %v701 = vunpack.c.l.b16 %v503
      %v702 = vunpack.c.l.b16 %v504
      %v703 = vunpack.c.l.b16 %v505
      %v704 = vunpack.c.l.b16 %v506
      %v705 = vunpack.c.l.b16 %v507
      %v706 = vunpack.c.l.b16 %v508
      %v707 = vunpack.c.l.b16 %v509
      %v708 = vunpack.c.l.b16 %v510
      %v709 = vunpack.c.l.b16 %v511
      %v710 = vunpack.c.l.b16 %v512
      %v711 = vunpack.c.l.b16 %v513
      %v712 = vunpack.c.l.b16 %v514
      %v713 = vunpack.c.l.b16 %v515
      %v714 = vunpack.c.l.b16 %v516
      %v715 = vunpack.c.l.b16 %v517
      %v716 = vunpack.c.l.b16 %v518
      %v717 = vunpack.c.l.b16 %v519
      %v718 = vunpack.c.l.b16 %v520
      %v719 = vunpack.c.l.b16 %v521
      %v720 = vunpack.c.l.b16 %v522
      %v721 = vunpack.c.l.b16 %v523
      %v722 = vunpack.c.l.b16 %v524
      %v723 = vunpack.c.l.b16 %v525
      %v724 = vunpack.c.l.b16 %v526
      %v725 = vunpack.c.l.b16 %v527
      %v726 = vunpack.c.l.b16 %v528
      %v727 = vunpack.c.l.b16 %v529
      %v728 = vunpack.c.l.b16 %v530
      %v729 = vunpack.c.l.b16 %v531
      %v730 = vunpack.c.l.b16 %v532
      %v731 = vunpack.c.l.b16 %v533
      %v732 = vunpack.c.l.b16 %v534
      %v733 = vunpack.c.l.b16 %v535
      %v734 = vunpack.c.l.b16 %v536
      %v735 = vunpack.c.l.b16 %v537
      %v736 = vunpack.c.l.b16 %v538
      %v737 = vunpack.c.l.b16 %v539
      %v738 = vunpack.c.l.b16 %v540
      %v739 = vunpack.c.l.b16 %v541
      %v740 = vunpack.c.l.b16 %v542
      %v741 = vunpack.c.l.b16 %v543
      %v742 = vunpack.c.l.b16 %v544
      %v743 = vunpack.c.l.b16 %v545
      %v744 = vunpack.c.l.b16 %v546
      %v745 = vunpack.c.l.b16 %v547
      %v746 = vunpack.c.l.b16 %v548
      %v747 = vunpack.c.l.b16 %v549
      %v748 = vunpack.c.l.b16 %v550
      %v749 = vunpack.c.l.b16 %v551
      %v750 = vunpack.c.l.b16 %v552
      %v751 = vpack.c.b16 %v680, %v679
      %v752 = vpack.c.b16 %v682, %v681
      %v753 = vpack.c.b16 %v684, %v683
      %v754 = vpack.c.b16 %v686, %v685
      %v755 = vpack.c.b16 %v688, %v687
      %v756 = vpack.c.b16 %v690, %v689
      %v757 = vpack.c.b16 %v692, %v691
      %v758 = vpack.c.b16 %v694, %v693
      %v759 = vpack.c.b16 %v696, %v695
      %v760 = vpack.c.b16 %v698, %v697
      %v761 = vpack.c.b16 %v700, %v699
      %v762 = vpack.c.b16 %v702, %v701
      %v763 = vpack.c.b16 %v704, %v703
      %v764 = vpack.c.b16 %v706, %v705
      %v765 = vpack.c.b16 %v708, %v707
      %v766 = vpack.c.b16 %v710, %v709
      %v767 = vpack.c.b16 %v712, %v711
      %v768 = vpack.c.b16 %v714, %v713
      %v769 = vpack.c.b16 %v716, %v715
      %v770 = vpack.c.b16 %v718, %v717
      %v771 = vpack.c.b16 %v720, %v719
      %v772 = vpack.c.b16 %v722, %v721
      %v773 = vpack.c.b16 %v724, %v723
      %v774 = vpack.c.b16 %v726, %v725
      %v775 = vpack.c.b16 %v728, %v727
      %v776 = vpack.c.b16 %v730, %v729
      %v777 = vpack.c.b16 %v732, %v731
      %v778 = vpack.c.b16 %v734, %v733
      %v779 = vpack.c.b16 %v736, %v735
      %v780 = vpack.c.b16 %v738, %v737
      %v781 = vpack.c.b16 %v740, %v739
      %v782 = vpack.c.b16 %v742, %v741
      %v783 = vpack.c.b16 %v744, %v743
      %v784 = vpack.c.b16 %v746, %v745
      %v785 = vpack.c.b16 %v748, %v747
      %v786 = vpack.c.b16 %v750, %v749
      %vm823 = vcmask 523264
      %v825 = vsel %vm823, %v593, 0
      %v828 = vsel %vm823, %v598, 0
      %830 = vmatpush.bf16.msra.mxu0 %v758
      %831 = vmatpush.bf16.msra.mxu0 %v757
      %832 = vmatpush.bf16.msra.mxu0 %v756
      %833 = vmatpush.bf16.msra.mxu0 %v755
      %834 = vmatpush.bf16.msra.mxu0 %v754
      %835 = vmatpush.bf16.msra.mxu0 %v753
      %836 = vmatpush.bf16.msra.mxu0 %v752
      %837 = vmatpush.bf16.msra.mxu0 %v751
      %838 = vmatmul.bf16.gmra.mxu0 %v589
      %v839 = vpop.f32.mrf.mxu0
      %v840 = vadd.f32 %v555, %v839
      %v841 = vpop.f32.mrf.mxu0
      %v842 = vadd.f32 %v555, %v841
      %843 = vmatmul.bf16.gmra.mxu0 %v594
      %v844 = vpop.f32.mrf.mxu0
      %v845 = vadd.f32 %v555, %v844
      %v846 = vpop.f32.mrf.mxu0
      %v847 = vadd.f32 %v555, %v846
      %848 = vdwg.mxu0
      %849 = vmatpush.bf16.msra.mxu0 %v766
      %850 = vmatpush.bf16.msra.mxu0 %v765
      %851 = vmatpush.bf16.msra.mxu0 %v764
      %852 = vmatpush.bf16.msra.mxu0 %v763
      %853 = vmatpush.bf16.msra.mxu0 %v762
      %854 = vmatpush.bf16.msra.mxu0 %v761
      %855 = vmatpush.bf16.msra.mxu0 %v760
      %856 = vmatpush.bf16.msra.mxu0 %v759
      %857 = vmatmul.bf16.gmra.mxu0 %v590
      %v858 = vpop.f32.mrf.mxu0
      %v859 = vadd.f32 %v840, %v858
      %v860 = vpop.f32.mrf.mxu0
      %v861 = vadd.f32 %v842, %v860
      %862 = vmatmul.bf16.gmra.mxu0 %v595
      %v863 = vpop.f32.mrf.mxu0
      %v864 = vadd.f32 %v845, %v863
      %v865 = vpop.f32.mrf.mxu0
      %v866 = vadd.f32 %v847, %v865
      %867 = vdwg.mxu0
      %868 = vmatpush.bf16.msra.mxu0 %v774
      %869 = vmatpush.bf16.msra.mxu0 %v773
      %870 = vmatpush.bf16.msra.mxu0 %v772
      %871 = vmatpush.bf16.msra.mxu0 %v771
      %872 = vmatpush.bf16.msra.mxu0 %v770
      %873 = vmatpush.bf16.msra.mxu0 %v769
      %874 = vmatpush.bf16.msra.mxu0 %v768
      %875 = vmatpush.bf16.msra.mxu0 %v767
      %876 = vmatmul.bf16.gmra.mxu0 %v591
      %v877 = vpop.f32.mrf.mxu0
      %v878 = vadd.f32 %v859, %v877
      %v879 = vpop.f32.mrf.mxu0
      %v880 = vadd.f32 %v861, %v879
      %881 = vmatmul.bf16.gmra.mxu0 %v596
      %v882 = vpop.f32.mrf.mxu0
      %v883 = vadd.f32 %v864, %v882
      %v884 = vpop.f32.mrf.mxu0
      %v885 = vadd.f32 %v866, %v884
      %886 = vdwg.mxu0
      %887 = vmatpush.bf16.msra.mxu0 %v782
      %888 = vmatpush.bf16.msra.mxu0 %v781
      %889 = vmatpush.bf16.msra.mxu0 %v780
      %890 = vmatpush.bf16.msra.mxu0 %v779
      %891 = vmatpush.bf16.msra.mxu0 %v778
      %892 = vmatpush.bf16.msra.mxu0 %v777
      %893 = vmatpush.bf16.msra.mxu0 %v776
      %894 = vmatpush.bf16.msra.mxu0 %v775
      %895 = vmatmul.bf16.gmra.mxu0 %v592
      %v896 = vpop.f32.mrf.mxu0
      %v897 = vadd.f32 %v878, %v896
      %v898 = vpop.f32.mrf.mxu0
      %v899 = vadd.f32 %v880, %v898
      %900 = vmatmul.bf16.gmra.mxu0 %v597
      %v901 = vpop.f32.mrf.mxu0
      %v902 = vadd.f32 %v883, %v901
      %v903 = vpop.f32.mrf.mxu0
      %v904 = vadd.f32 %v885, %v903
      %905 = vdwg.mxu0
      %906 = vmatpush.bf16.msra.mxu0 0
      %907 = vmatpush.bf16.msra.mxu0 0
      %908 = vmatpush.bf16.msra.mxu0 0
      %909 = vmatpush.bf16.msra.mxu0 0
      %910 = vmatpush.bf16.msra.mxu0 %v786
      %911 = vmatpush.bf16.msra.mxu0 %v785
      %912 = vmatpush.bf16.msra.mxu0 %v784
      %913 = vmatpush.bf16.msra.mxu0 %v783
      %914 = vmatmul.bf16.gmra.mxu0 %v825
      %v915 = vpop.f32.mrf.mxu0
      %v916 = vadd.f32 %v897, %v915
      %v917 = vpop.f32.mrf.mxu0
      %v918 = vadd.f32 %v899, %v917
      %919 = vmatmul.bf16.gmra.mxu0 %v828
      %v920 = vpop.f32.mrf.mxu0
      %v921 = vadd.f32 %v902, %v920
      %v922 = vpop.f32.mrf.mxu0
      %v923 = vadd.f32 %v904, %v922
      %924 = vdwg.mxu0
      %v925 = vmax.f32 %v916, 0.0
      %v926 = vmax.f32 %v918, 0.0
      %v927 = vmax.f32 %v921, 0.0
      %v928 = vmax.f32 %v923, 0.0
      %v929 = vpack.c.bf16 %v925, %v925
      %v930 = vpack.c.bf16 %v926, %v926
      %v931 = vpack.c.bf16 %v927, %v927
      %v932 = vpack.c.bf16 %v928, %v928
      %v933 = vld [vmem:[%s3] sm:$0xf]
      %v934 = vld [vmem:[%s3 + $0x4] sm:$0xf]
      %v935 = vld [vmem:[%s4] sm:$0x1]
      %v937 = vperm.slane %v935, 0
      %v943 = vunpack.c.l.b16 %v929
      %v944 = vunpack.c.l.b16 %v930
      %v945 = vunpack.c.l.b16 %v931
      %v946 = vunpack.c.l.b16 %v932
      %v947 = vpack.c.b16 %v944, %v943
      %v948 = vpack.c.b16 %v946, %v945
      %v951 = vunpack.c.l.b16 %v933
      %v952 = vunpack.c.l.b16 %v934
      %v953 = vpack.c.b16 %v952, %v951
      %vm955 = vcmask 130048
      %v957 = vsel %vm955, %v947, 0
      %v960 = vsel %vm955, %v948, 0
      %962 = vmatpush.bf16.msra.mxu0 0
      %963 = vmatpush.bf16.msra.mxu0 0
      %964 = vmatpush.bf16.msra.mxu0 0
      %965 = vmatpush.bf16.msra.mxu0 0
      %966 = vmatpush.bf16.msra.mxu0 0
      %967 = vmatpush.bf16.msra.mxu0 0
      %968 = vmatpush.bf16.msra.mxu0 0
      %969 = vmatpush.bf16.msra.mxu0 %v953
      %970 = vmatmul.bf16.gmra.mxu0 %v957
      %v971 = vpop.f32.mrf.mxu0
      %v972 = vadd.f32 %v937, %v971
      %v973 = vpop.f32.mrf.mxu0
      %v974 = vadd.f32 %v937, %v973
      %975 = vmatmul.bf16.gmra.mxu0 %v960
      %v976 = vpop.f32.mrf.mxu0
      %v977 = vadd.f32 %v937, %v976
      %v978 = vpop.f32.mrf.mxu0
      %v979 = vadd.f32 %v937, %v978
      %980 = vdwg.mxu0
      %vm981 = vcmask 125952
      %982 = vst.msk [vmem:[%s426] sm:$0xf] %vm981, %v929
      %983 = vst.msk [vmem:[%s426 + $0x4] sm:$0xf] %vm981, %v930
      %984 = vst.msk [vmem:[%s426 + $0x8] sm:$0xf] %vm981, %v931
      %985 = vst.msk [vmem:[%s426 + $0xc] sm:$0xf] %vm981, %v932
      %986 = vrot.lane.b32.xlu0 %v929, 112
      %v987 = vpop.permute.xlu0 %986
      %988 = vrot.lane.b32.xlu0 %v930, 112
      %v989 = vpop.permute.xlu0 %988
      %990 = vrot.lane.b32.xlu0 %v931, 112
      %v991 = vpop.permute.xlu0 %990
      %992 = vrot.lane.b32.xlu0 %v932, 112
      %v993 = vpop.permute.xlu0 %992
      %998 = vst.msk [vmem:[%s436] sm:$0xf] %vm981, %v987
      %999 = vst.msk [vmem:[%s436 + $0x4] sm:$0xf] %vm981, %v989
      %1000 = vst.msk [vmem:[%s436 + $0x8] sm:$0xf] %vm981, %v991
      %1001 = vst.msk [vmem:[%s436 + $0xc] sm:$0xf] %vm981, %v993
      %v1002 = vpack.c.bf16 %v972, %v972
      %v1003 = vpack.c.bf16 %v974, %v974
      %v1004 = vpack.c.bf16 %v977, %v977
      %v1005 = vpack.c.bf16 %v979, %v979
      %vm1006 = vcmask 60416
      %1007 = vst.msk [vmem:[%s446] sm:$0xf] %vm1006, %v1002
      %1008 = vst.msk [vmem:[%s446 + $0x4] sm:$0xf] %vm1006, %v1003
      %1009 = vst.msk [vmem:[%s446 + $0x8] sm:$0xf] %vm1006, %v1004
      %1010 = vst.msk [vmem:[%s446 + $0xc] sm:$0xf] %vm1006, %v1005
      %1015 = vrot.lane.b32.xlu0 %v1002, 120
      %v1016 = vpop.permute.xlu0 %1015
      %1017 = vrot.lane.b32.xlu0 %v1003, 120
      %v1018 = vpop.permute.xlu0 %1017
      %1019 = vrot.lane.b32.xlu0 %v1004, 120
      %v1020 = vpop.permute.xlu0 %1019
      %1021 = vrot.lane.b32.xlu0 %v1005, 120
      %v1022 = vpop.permute.xlu0 %1021
      %1027 = vst.msk [vmem:[%s456] sm:$0xf] %vm1006, %v1016
      %1028 = vst.msk [vmem:[%s456 + $0x4] sm:$0xf] %vm1006, %v1018
      %1029 = vst.msk [vmem:[%s456 + $0x8] sm:$0xf] %vm1006, %v1020
      %1030 = vst.msk [vmem:[%s456 + $0xc] sm:$0xf] %vm1006, %v1022
      %1031 = vrot.lane.b32.xlu0 %v1002, 112
      %v1032 = vpop.permute.xlu0 %1031
      %1033 = vrot.lane.b32.xlu0 %v1003, 112
      %v1034 = vpop.permute.xlu0 %1033
      %1035 = vrot.lane.b32.xlu0 %v1004, 112
      %v1036 = vpop.permute.xlu0 %1035
      %1037 = vrot.lane.b32.xlu0 %v1005, 112
      %v1038 = vpop.permute.xlu0 %1037
      %1043 = vst.msk [vmem:[%s466] sm:$0xf] %vm981, %v1032
      %1044 = vst.msk [vmem:[%s466 + $0x4] sm:$0xf] %vm981, %v1034
      %1045 = vst.msk [vmem:[%s466 + $0x8] sm:$0xf] %vm981, %v1036
      %1046 = vst.msk [vmem:[%s466 + $0xc] sm:$0xf] %vm981, %v1038
      %s1047 = smul.u32 4, %s26
      %p1048 = scmp.lt.s32.totalorder %s25, 1
      %s1049 = scalar_select %p1048, %s25, 1
      %p1050 = scmp.lt.s32.totalorder %s1047, 7
      %s1051 = scalar_select %p1050, %s1047, 7
      %s1052 = smul.addr %s1049, 8
      %s1053 = sadd.s32 %s1051, %s1052
      %s1054 = smul.addr %s1053, 4
      %s1055 = scalar_lea.vmem %s5, %s1054
      %s1056 = smul.u32 4, %s26
      %p1057 = scmp.lt.s32.totalorder %s25, 1
      %s1058 = scalar_select %p1057, %s25, 1
      %p1059 = scmp.lt.s32.totalorder %s1056, 7
      %s1060 = scalar_select %p1059, %s1056, 7
      %s1061 = smul.addr %s1058, 8
      %s1062 = sadd.s32 %s1060, %s1061
      %s1063 = smul.addr %s1062, 4
      %s1064 = scalar_lea.vmem %s6, %s1063
      %s1065 = smul.u32 4, %s26
      %p1066 = scmp.lt.s32.totalorder %s25, 1
      %s1067 = scalar_select %p1066, %s25, 1
      %p1068 = scmp.lt.s32.totalorder %s1065, 7
      %s1069 = scalar_select %p1068, %s1065, 7
      %s1070 = smul.addr %s1067, 8
      %s1071 = sadd.s32 %s1069, %s1070
      %s1072 = smul.addr %s1071, 4
      %s1073 = scalar_lea.vmem %s7, %s1072
      %s1074 = smul.u32 4, %s26
      %p1075 = scmp.lt.s32.totalorder %s25, 1
      %s1076 = scalar_select %p1075, %s25, 1
      %p1077 = scmp.lt.s32.totalorder %s1074, 7
      %s1078 = scalar_select %p1077, %s1074, 7
      %s1079 = smul.addr %s1076, 8
      %s1080 = sadd.s32 %s1078, %s1079
      %s1081 = smul.addr %s1080, 4
      %s1082 = scalar_lea.vmem %s8, %s1081
      %s1083 = smul.u32 4, %s26
      %p1084 = scmp.lt.s32.totalorder %s25, 1
      %s1085 = scalar_select %p1084, %s25, 1
      %p1086 = scmp.lt.s32.totalorder %s1083, 7
      %s1087 = scalar_select %p1086, %s1083, 7
      %s1088 = smul.addr %s1085, 8
      %s1089 = sadd.s32 %s1087, %s1088
      %s1090 = smul.addr %s1089, 4
      %s1091 = scalar_lea.vmem %s9, %s1090
      // Predicated region
      $region41: #{danet_forward.4} parent=39 // pred_check
        %p1092 = pneg %p165
      $region42: #{danet_forward.4} parent=39 // pred_check_branch
        %1094 = sbr.rel (%p1092) target = $region44
      $region43: #{danet_forward.4} parent=39 // pred_region
        %s1095 = smul.u32 4, %s26
      $region44: #{danet_forward.4} parent=39 // pred_fallthru
        _
      // Predicated region
      $region45: #{danet_forward.4} parent=39 // pred_check
        %p1096 = pneg %p193
      $region46: #{danet_forward.4} parent=39 // pred_check_branch
        %1098 = sbr.rel (%p1096) target = $region48
      $region47: #{danet_forward.4} parent=39 // pred_region
        %s1099 = smul.u32 4, %s26
      $region48: #{danet_forward.4} parent=39 // pred_fallthru
        _
      // Predicated region
      $region49: #{danet_forward.4} parent=39 // pred_check
        %p1100 = pneg %p221
      $region50: #{danet_forward.4} parent=39 // pred_check_branch
        %1102 = sbr.rel (%p1100) target = $region52
      $region51: #{danet_forward.4} parent=39 // pred_region
        %s1103 = smul.u32 4, %s26
      $region52: #{danet_forward.4} parent=39 // pred_fallthru
        _
      // Predicated region
      $region53: #{danet_forward.4} parent=39 // pred_check
        %p1104 = pneg %p249
      $region54: #{danet_forward.4} parent=39 // pred_check_branch
        %1106 = sbr.rel (%p1104) target = $region56
      $region55: #{danet_forward.4} parent=39 // pred_region
        %s1107 = smul.u32 4, %s26
      $region56: #{danet_forward.4} parent=39 // pred_fallthru
        _
      // Predicated region
      $region57: #{danet_forward.4} parent=39 // pred_check
        %p1108 = pneg %p277
      $region58: #{danet_forward.4} parent=39 // pred_check_branch
        %1110 = sbr.rel (%p1108) target = $region60
      $region59: #{danet_forward.4} parent=39 // pred_region
        %s1111 = smul.u32 4, %s26
      $region60: #{danet_forward.4} parent=39 // pred_fallthru
        _
    $region40: #{danet_forward.4} parent=5 // pred_fallthru
      _
    %p1112 = scmp.le.s32.totalorder 2, %s16
    // Predicated region
    $region61: #{danet_forward.4} parent=5 // pred_check
      %p1113 = pneg %p1112
    $region62: #{danet_forward.4} parent=5 // pred_check_branch
      %1115 = sbr.rel (%p1113) target = $region64
    $region63: #{danet_forward.4} parent=5 // pred_region
      %s1116 = ssub.s32 %s16, 2
      // Predicated region
      $region65: #{danet_forward.4} parent=63 // pred_check
        %p1117 = pneg %p171
      $region66: #{danet_forward.4} parent=63 // pred_check_branch
        %1119 = sbr.rel (%p1117) target = $region68
      $region67: #{danet_forward.4} parent=63 // pred_region
        %s1120 = smul.u32 4, %s28
        %p1121 = scmp.lt.s32.totalorder %s27, 1
        %s1122 = scalar_select %p1121, %s27, 1
        %p1123 = scmp.lt.s32.totalorder %s1120, 7
        %s1124 = scalar_select %p1123, %s1120, 7
        %s1125 = smul.addr %s1122, 8
        %s1126 = sadd.s32 %s1124, %s1125
        %s1127 = smul.addr %s1126, 4
        %s1128 = scalar_lea.vmem %s5, %s1127
      $region68: #{danet_forward.4} parent=63 // pred_fallthru
        _
      // Predicated region
      $region69: #{danet_forward.4} parent=63 // pred_check
        %p1129 = pneg %p199
      $region70: #{danet_forward.4} parent=63 // pred_check_branch
        %1131 = sbr.rel (%p1129) target = $region72
      $region71: #{danet_forward.4} parent=63 // pred_region
        %s1132 = smul.u32 4, %s28
        %p1133 = scmp.lt.s32.totalorder %s27, 1
        %s1134 = scalar_select %p1133, %s27, 1
        %p1135 = scmp.lt.s32.totalorder %s1132, 7
        %s1136 = scalar_select %p1135, %s1132, 7
        %s1137 = smul.addr %s1134, 8
        %s1138 = sadd.s32 %s1136, %s1137
        %s1139 = smul.addr %s1138, 4
        %s1140 = scalar_lea.vmem %s6, %s1139
      $region72: #{danet_forward.4} parent=63 // pred_fallthru
        _
      // Predicated region
      $region73: #{danet_forward.4} parent=63 // pred_check
        %p1141 = pneg %p227
      $region74: #{danet_forward.4} parent=63 // pred_check_branch
        %1143 = sbr.rel (%p1141) target = $region76
      $region75: #{danet_forward.4} parent=63 // pred_region
        %s1144 = smul.u32 4, %s28
        %p1145 = scmp.lt.s32.totalorder %s27, 1
        %s1146 = scalar_select %p1145, %s27, 1
        %p1147 = scmp.lt.s32.totalorder %s1144, 7
        %s1148 = scalar_select %p1147, %s1144, 7
        %s1149 = smul.addr %s1146, 8
        %s1150 = sadd.s32 %s1148, %s1149
        %s1151 = smul.addr %s1150, 4
        %s1152 = scalar_lea.vmem %s7, %s1151
      $region76: #{danet_forward.4} parent=63 // pred_fallthru
        _
      // Predicated region
      $region77: #{danet_forward.4} parent=63 // pred_check
        %p1153 = pneg %p255
      $region78: #{danet_forward.4} parent=63 // pred_check_branch
        %1155 = sbr.rel (%p1153) target = $region80
      $region79: #{danet_forward.4} parent=63 // pred_region
        %s1156 = smul.u32 4, %s28
        %p1157 = scmp.lt.s32.totalorder %s27, 1
        %s1158 = scalar_select %p1157, %s27, 1
        %p1159 = scmp.lt.s32.totalorder %s1156, 7
        %s1160 = scalar_select %p1159, %s1156, 7
        %s1161 = smul.addr %s1158, 8
        %s1162 = sadd.s32 %s1160, %s1161
        %s1163 = smul.addr %s1162, 4
        %s1164 = scalar_lea.vmem %s8, %s1163
      $region80: #{danet_forward.4} parent=63 // pred_fallthru
        _
      // Predicated region
      $region81: #{danet_forward.4} parent=63 // pred_check
        %p1165 = pneg %p283
      $region82: #{danet_forward.4} parent=63 // pred_check_branch
        %1167 = sbr.rel (%p1165) target = $region84
      $region83: #{danet_forward.4} parent=63 // pred_region
        %s1168 = smul.u32 4, %s28
        %p1169 = scmp.lt.s32.totalorder %s27, 1
        %s1170 = scalar_select %p1169, %s27, 1
        %p1171 = scmp.lt.s32.totalorder %s1168, 7
        %s1172 = scalar_select %p1171, %s1168, 7
        %s1173 = smul.addr %s1170, 8
        %s1174 = sadd.s32 %s1172, %s1173
        %s1175 = smul.addr %s1174, 4
        %s1176 = scalar_lea.vmem %s9, %s1175
      $region84: #{danet_forward.4} parent=63 // pred_fallthru
        _
    $region64: #{danet_forward.4} parent=5 // pred_fallthru
      _
  $region6: #{danet_forward.4} parent=0 // loop_footer
    %s20 = sadd.s32 1, %s16
  $region7: #{danet_forward.4} parent=0 // loop_footer_branch
    %15 = sbr.rel target = $region3
  $region8: #{danet_forward.4} parent=0 // loop_exit
    _

// kernel: danet_forward.5
$region0: #{danet_forward.5}
  #allocation0 [shape = 'u32[]', space=smem, size = 0x4, offset = 0x4, fixed_abs, tag = 'smem constant byte address 0x4 - core index']
  #allocation1 [shape = 'u32[72,128]{1,0:T(1,128)}', space=vmem, size = 0x9000, scoped, tag = 'internal scratch']
  #allocation2 [shape = 'f32[32,1]{1,0:T(8,128)}', space=vmem, size = 0x4000, scoped, tag = 'scratch operand']
  #allocation3 [shape = 'f32[32,1]{1,0:T(8,128)}', space=vmem, size = 0x4000, scoped, tag = 'scratch operand']
  #allocation4 [shape = 'f32[32,16]{1,0:T(8,128)}', space=vmem, size = 0x4000, scoped, tag = 'scratch operand']
  #allocation5 [shape = 'f32[1]{0:T(128)S(6)}', space=smem, size = 0x200, scoped, tag = 'scoped memory for danet_forward.5']
  %s0 = inlined_call_operand.vmem [shape: bf16[2,64,8], index: 0, kind: input, shape index: {}]
  %s1 = inlined_call_operand.vmem [shape: bf16[2,64,8], index: 1, kind: input, shape index: {}]
  %s2 = inlined_call_operand.vmem [shape: bf16[2,64,16], index: 2, kind: input, shape index: {}]
  %s3 = inlined_call_operand.vmem [shape: bf16[2,64,16], index: 3, kind: input, shape index: {}]
  %s4 = inlined_call_operand.<no memory space> [shape: f32[1], index: 4, kind: input, shape index: {}]
  %s5 = inlined_call_operand.vmem [shape: bf16[2,64,16], index: 5, kind: output, shape index: {}]
  %s6 = sld [smem:[#allocation0]]
  $region61: #{danet_forward.5} parent=0
    _
  %s8 = ssub.s32 1, %s6
  %s9 = scalar_select 0, %s8, %s6
  %10 = sst [smem:[#allocation5]] %s4
  loop: start=0, step=1, limit=10
  $region2: #{danet_forward.5} parent=0 // loop_pre_header
    _
  $region3: #{danet_forward.5} parent=0 // loop_header
    %s12 = sphi 0, %s16
    %p13 = scmp.ge.s32.totalorder %s12, 10
    %s19 = sphi 0, %s38
    %s20 = sphi 0, %s34
    %s21 = sphi 0, %s30
    %s22 = sphi 0, %s19
    %s23 = sphi 0, %s20
    %s24 = sphi 0, %s21
    %s25 = sphi 0, %s22
    %s26 = sphi 0, %s23
    %s27 = sphi 0, %s24
    %s43 = sphi 0, %s45
    %s46 = sphi 0, %s43
    %s47 = sphi 0, %s46
    %s63 = sphi 0, %s47
    %s71 = sphi 0, %s73
    %s74 = sphi 0, %s71
    %s75 = sphi 0, %s74
    %s91 = sphi 0, %s75
    %s99 = sphi 0, %s101
    %s102 = sphi 0, %s99
    %s103 = sphi 0, %s102
    %s119 = sphi 0, %s103
    %s127 = sphi 0, %s129
    %s130 = sphi 0, %s127
    %s131 = sphi 0, %s130
    %s147 = sphi 0, %s131
    %s151 = sphi 0, %s151
    %s153 = sphi 0, %s151
    %s154 = sphi 0, %s153
    %s168 = sphi 0, %s154
    %s176 = sphi 0, %s178
    %s179 = sphi 0, %s176
    %s180 = sphi 0, %s179
    %s196 = sphi 0, %s180
  $region4: #{danet_forward.5} parent=0 // loop_header_branch
    %15 = sbr.rel (%p13) target = $region8
  $region5: #{danet_forward.5} parent=0 // loop_body
    %s17 = ssub.s32 %s12, 1
    %s18 = ssub.s32 %s12, 2
    %s28 = sadd.s32 1, %s21
    %p29 = scmp.ge.s32.totalorder %s28, 2
    %s30 = scalar_select %p29, 0, %s28
    %s31 = sadd.s32 1, %s20
    %s32 = scalar_select %p29, %s31, %s20
    %p33 = scmp.ge.s32.totalorder %s32, 2
    %s34 = scalar_select %p33, 0, %s32
    %s35 = sadd.s32 1, %s19
    %s36 = scalar_select %p33, %s35, %s19
    %p37 = scmp.ge.s32.totalorder %s36, 2
    %s38 = scalar_select %p37, 0, %s36
    %s39 = ssub.s32 %s19, %s38
    %s40 = ssub.s32 %s20, %s34
    %s41 = sor.u32 %s39, %s40
    %p42 = scmp.eq.s32.totalorder %s41, 0
    %s44 = sadd.s32 %s43, 1
    %s45 = scalar_select %p42, %s43, %s44
    %p48 = pneg %p42
    %p49 = scmp.eq.s32.totalorder %s12, 7
    %p50 = por %p48, %p49
    %p51 = scmp.ne.s32.totalorder %s43, %s46
    %p52 = scmp.eq.s32.totalorder %s12, 0
    %p53 = por %p51, %p52
    %p54 = scmp.ne.s32.totalorder %s43, %s46
    %p55 = scmp.eq.s32.totalorder %s17, 7
    %p56 = por %p54, %p55
    %p57 = scmp.ne.s32.totalorder %s46, %s47
    %p58 = scmp.eq.s32.totalorder %s17, 0
    %p59 = por %p57, %p58
    %p60 = scmp.ne.s32.totalorder %s46, %s47
    %p61 = scmp.eq.s32.totalorder %s18, 7
    %p62 = por %p60, %p61
    %p64 = scmp.ne.s32.totalorder %s47, %s63
    %p65 = scmp.eq.s32.totalorder %s18, 0
    %p66 = por %p64, %p65
    %s67 = ssub.s32 %s19, %s38
    %s68 = ssub.s32 %s21, %s30
    %s69 = sor.u32 %s67, %s68
    %p70 = scmp.eq.s32.totalorder %s69, 0
    %s72 = sadd.s32 %s71, 1
    %s73 = scalar_select %p70, %s71, %s72
    %p76 = pneg %p70
    %p77 = scmp.eq.s32.totalorder %s12, 7
    %p78 = por %p76, %p77
    %p79 = scmp.ne.s32.totalorder %s71, %s74
    %p80 = scmp.eq.s32.totalorder %s12, 0
    %p81 = por %p79, %p80
    %p82 = scmp.ne.s32.totalorder %s71, %s74
    %p83 = scmp.eq.s32.totalorder %s17, 7
    %p84 = por %p82, %p83
    %p85 = scmp.ne.s32.totalorder %s74, %s75
    %p86 = scmp.eq.s32.totalorder %s17, 0
    %p87 = por %p85, %p86
    %p88 = scmp.ne.s32.totalorder %s74, %s75
    %p89 = scmp.eq.s32.totalorder %s18, 7
    %p90 = por %p88, %p89
    %p92 = scmp.ne.s32.totalorder %s75, %s91
    %p93 = scmp.eq.s32.totalorder %s18, 0
    %p94 = por %p92, %p93
    %s95 = ssub.s32 %s19, %s38
    %s96 = ssub.s32 %s21, %s30
    %s97 = sor.u32 %s95, %s96
    %p98 = scmp.eq.s32.totalorder %s97, 0
    %s100 = sadd.s32 %s99, 1
    %s101 = scalar_select %p98, %s99, %s100
    %p104 = pneg %p98
    %p105 = scmp.eq.s32.totalorder %s12, 7
    %p106 = por %p104, %p105
    %p107 = scmp.ne.s32.totalorder %s99, %s102
    %p108 = scmp.eq.s32.totalorder %s12, 0
    %p109 = por %p107, %p108
    %p110 = scmp.ne.s32.totalorder %s99, %s102
    %p111 = scmp.eq.s32.totalorder %s17, 7
    %p112 = por %p110, %p111
    %p113 = scmp.ne.s32.totalorder %s102, %s103
    %p114 = scmp.eq.s32.totalorder %s17, 0
    %p115 = por %p113, %p114
    %p116 = scmp.ne.s32.totalorder %s102, %s103
    %p117 = scmp.eq.s32.totalorder %s18, 7
    %p118 = por %p116, %p117
    %p120 = scmp.ne.s32.totalorder %s103, %s119
    %p121 = scmp.eq.s32.totalorder %s18, 0
    %p122 = por %p120, %p121
    %s123 = ssub.s32 %s19, %s38
    %s124 = ssub.s32 %s20, %s34
    %s125 = sor.u32 %s123, %s124
    %p126 = scmp.eq.s32.totalorder %s125, 0
    %s128 = sadd.s32 %s127, 1
    %s129 = scalar_select %p126, %s127, %s128
    %p132 = pneg %p126
    %p133 = scmp.eq.s32.totalorder %s12, 7
    %p134 = por %p132, %p133
    %p135 = scmp.ne.s32.totalorder %s127, %s130
    %p136 = scmp.eq.s32.totalorder %s12, 0
    %p137 = por %p135, %p136
    %p138 = scmp.ne.s32.totalorder %s127, %s130
    %p139 = scmp.eq.s32.totalorder %s17, 7
    %p140 = por %p138, %p139
    %p141 = scmp.ne.s32.totalorder %s130, %s131
    %p142 = scmp.eq.s32.totalorder %s17, 0
    %p143 = por %p141, %p142
    %p144 = scmp.ne.s32.totalorder %s130, %s131
    %p145 = scmp.eq.s32.totalorder %s18, 7
    %p146 = por %p144, %p145
    %p148 = scmp.ne.s32.totalorder %s131, %s147
    %p149 = scmp.eq.s32.totalorder %s18, 0
    %p150 = por %p148, %p149
    %s152 = sadd.s32 %s151, 1
    %p155 = scmp.eq.s32.totalorder %s12, 7
    %p156 = scmp.ne.s32.totalorder %s151, %s153
    %p157 = scmp.eq.s32.totalorder %s12, 0
    %p158 = por %p156, %p157
    %p159 = scmp.ne.s32.totalorder %s151, %s153
    %p160 = scmp.eq.s32.totalorder %s17, 7
    %p161 = por %p159, %p160
    %p162 = scmp.ne.s32.totalorder %s153, %s154
    %p163 = scmp.eq.s32.totalorder %s17, 0
    %p164 = por %p162, %p163
    %p165 = scmp.ne.s32.totalorder %s153, %s154
    %p166 = scmp.eq.s32.totalorder %s18, 7
    %p167 = por %p165, %p166
    %p169 = scmp.ne.s32.totalorder %s154, %s168
    %p170 = scmp.eq.s32.totalorder %s18, 0
    %p171 = por %p169, %p170
    %s172 = ssub.s32 %s19, %s38
    %s173 = ssub.s32 %s20, %s34
    %s174 = sor.u32 %s172, %s173
    %p175 = scmp.eq.s32.totalorder %s174, 0
    %s177 = sadd.s32 %s176, 1
    %s178 = scalar_select %p175, %s176, %s177
    %p181 = pneg %p175
    %p182 = scmp.eq.s32.totalorder %s12, 7
    %p183 = por %p181, %p182
    %p184 = scmp.ne.s32.totalorder %s176, %s179
    %p185 = scmp.eq.s32.totalorder %s12, 0
    %p186 = por %p184, %p185
    %p187 = scmp.ne.s32.totalorder %s176, %s179
    %p188 = scmp.eq.s32.totalorder %s17, 7
    %p189 = por %p187, %p188
    %p190 = scmp.ne.s32.totalorder %s179, %s180
    %p191 = scmp.eq.s32.totalorder %s17, 0
    %p192 = por %p190, %p191
    %p193 = scmp.ne.s32.totalorder %s179, %s180
    %p194 = scmp.eq.s32.totalorder %s18, 7
    %p195 = por %p193, %p194
    %p197 = scmp.ne.s32.totalorder %s180, %s196
    %p198 = scmp.eq.s32.totalorder %s18, 0
    %p199 = por %p197, %p198
    %p200 = scmp.le.s32.totalorder 1, %s12
    %p201 = scmp.lt.s32.totalorder %s12, 9
    %p202 = pnand %p200, %p201
    %p203 = pneg %p202
    // Predicated region
    $region9: #{danet_forward.5} parent=5 // pred_check
      _
    $region10: #{danet_forward.5} parent=5 // pred_check_branch
      %205 = sbr.rel (%p202) target = $region12
    $region11: #{danet_forward.5} parent=5 // pred_region
      %s206 = ssub.s32 %s12, 1
      // Predicated region
      $region13: #{danet_forward.5} parent=11 // pred_check
        %p207 = pneg %p164
      $region14: #{danet_forward.5} parent=11 // pred_check_branch
        %209 = sbr.rel (%p207) target = $region16
      $region15: #{danet_forward.5} parent=11 // pred_region
        _
      $region16: #{danet_forward.5} parent=11 // pred_fallthru
        _
    $region12: #{danet_forward.5} parent=5 // pred_fallthru
      _
    %p210 = scmp.lt.s32.totalorder %s12, 8
    // Predicated region
    $region17: #{danet_forward.5} parent=5 // pred_check
      %p211 = pneg %p210
    $region18: #{danet_forward.5} parent=5 // pred_check_branch
      %213 = sbr.rel (%p211) target = $region20
    $region19: #{danet_forward.5} parent=5 // pred_region
      // Predicated region
      $region21: #{danet_forward.5} parent=19 // pred_check
        %p214 = pneg %p53
      $region22: #{danet_forward.5} parent=19 // pred_check_branch
        %216 = sbr.rel (%p214) target = $region24
      $region23: #{danet_forward.5} parent=19 // pred_region
        %s217 = smul.u32 4, %s20
        %p218 = scmp.lt.s32.totalorder %s19, 1
        %s219 = scalar_select %p218, %s19, 1
        %p220 = scmp.lt.s32.totalorder %s217, 7
        %s221 = scalar_select %p220, %s217, 7
        %s222 = smul.addr %s219, 8
        %s223 = sadd.s32 %s221, %s222
        %s224 = smul.addr %s223, 4
        %s225 = scalar_lea.vmem %s0, %s224
        %s226 = smul.u32 4, %s20
      $region24: #{danet_forward.5} parent=19 // pred_fallthru
        _
      // Predicated region
      $region25: #{danet_forward.5} parent=19 // pred_check
        %p227 = pneg %p81
      $region26: #{danet_forward.5} parent=19 // pred_check_branch
        %229 = sbr.rel (%p227) target = $region28
      $region27: #{danet_forward.5} parent=19 // pred_region
        %s230 = smul.u32 4, %s21
        %p231 = scmp.lt.s32.totalorder %s19, 1
        %s232 = scalar_select %p231, %s19, 1
        %p233 = scmp.lt.s32.totalorder %s230, 7
        %s234 = scalar_select %p233, %s230, 7
        %s235 = smul.addr %s232, 8
        %s236 = sadd.s32 %s234, %s235
        %s237 = smul.addr %s236, 4
        %s238 = scalar_lea.vmem %s1, %s237
        %s239 = smul.u32 4, %s21
      $region28: #{danet_forward.5} parent=19 // pred_fallthru
        _
      // Predicated region
      $region29: #{danet_forward.5} parent=19 // pred_check
        %p240 = pneg %p109
      $region30: #{danet_forward.5} parent=19 // pred_check_branch
        %242 = sbr.rel (%p240) target = $region32
      $region31: #{danet_forward.5} parent=19 // pred_region
        %s243 = smul.u32 4, %s21
        %p244 = scmp.lt.s32.totalorder %s19, 1
        %s245 = scalar_select %p244, %s19, 1
        %p246 = scmp.lt.s32.totalorder %s243, 7
        %s247 = scalar_select %p246, %s243, 7
        %s248 = smul.addr %s245, 8
        %s249 = sadd.s32 %s247, %s248
        %s250 = smul.addr %s249, 4
        %s251 = scalar_lea.vmem %s2, %s250
        %s252 = smul.u32 4, %s21
      $region32: #{danet_forward.5} parent=19 // pred_fallthru
        _
      // Predicated region
      $region33: #{danet_forward.5} parent=19 // pred_check
        %p253 = pneg %p137
      $region34: #{danet_forward.5} parent=19 // pred_check_branch
        %255 = sbr.rel (%p253) target = $region36
      $region35: #{danet_forward.5} parent=19 // pred_region
        %s256 = smul.u32 4, %s20
        %p257 = scmp.lt.s32.totalorder %s19, 1
        %s258 = scalar_select %p257, %s19, 1
        %p259 = scmp.lt.s32.totalorder %s256, 7
        %s260 = scalar_select %p259, %s256, 7
        %s261 = smul.addr %s258, 8
        %s262 = sadd.s32 %s260, %s261
        %s263 = smul.addr %s262, 4
        %s264 = scalar_lea.vmem %s3, %s263
        %s265 = smul.u32 4, %s20
      $region36: #{danet_forward.5} parent=19 // pred_fallthru
        _
    $region20: #{danet_forward.5} parent=5 // pred_fallthru
      _
    %p266 = scmp.le.s32.totalorder 1, %s12
    %p267 = scmp.lt.s32.totalorder %s12, 9
    %p268 = pnand %p266, %p267
    %p269 = pneg %p268
    // Predicated region
    $region37: #{danet_forward.5} parent=5 // pred_check
      _
    $region38: #{danet_forward.5} parent=5 // pred_check_branch
      %271 = sbr.rel (%p268) target = $region40
    $region39: #{danet_forward.5} parent=5 // pred_region
      %s272 = ssub.s32 %s12, 1
      %s273 = smul.u32 4, %s23
      %p274 = scmp.lt.s32.totalorder %s22, 1
      %s275 = scalar_select %p274, %s22, 1
      %p276 = scmp.lt.s32.totalorder %s273, 7
      %s277 = scalar_select %p276, %s273, 7
      %s278 = smul.addr %s275, 8
      %s279 = sadd.s32 %s277, %s278
      %s280 = smul.addr %s279, 4
      %s281 = scalar_lea.vmem %s0, %s280
      %p282 = pneg %p59
      %p283 = pneg %p56
      %s284 = smul.u32 4, %s24
      %p285 = scmp.lt.s32.totalorder %s22, 1
      %s286 = scalar_select %p285, %s22, 1
      %p287 = scmp.lt.s32.totalorder %s284, 7
      %s288 = scalar_select %p287, %s284, 7
      %s289 = smul.addr %s286, 8
      %s290 = sadd.s32 %s288, %s289
      %s291 = smul.addr %s290, 4
      %s292 = scalar_lea.vmem %s1, %s291
      %p293 = pneg %p87
      %p294 = pneg %p84
      %s295 = smul.u32 4, %s24
      %p296 = scmp.lt.s32.totalorder %s22, 1
      %s297 = scalar_select %p296, %s22, 1
      %p298 = scmp.lt.s32.totalorder %s295, 7
      %s299 = scalar_select %p298, %s295, 7
      %s300 = smul.addr %s297, 8
      %s301 = sadd.s32 %s299, %s300
      %s302 = smul.addr %s301, 4
      %s303 = scalar_lea.vmem %s2, %s302
      %p304 = pneg %p115
      %p305 = pneg %p112
      %s306 = smul.u32 4, %s23
      %p307 = scmp.lt.s32.totalorder %s22, 1
      %s308 = scalar_select %p307, %s22, 1
      %p309 = scmp.lt.s32.totalorder %s306, 7
      %s310 = scalar_select %p309, %s306, 7
      %s311 = smul.addr %s308, 8
      %s312 = sadd.s32 %s310, %s311
      %s313 = smul.addr %s312, 4
      %s314 = scalar_lea.vmem %s3, %s313
      %p315 = pneg %p143
      %p316 = pneg %p140
      %p317 = pneg %p164
      %p318 = pneg %p161
      %p319 = pneg %p192
      %p320 = pneg %p189
      %s321 = smul.u32 4, %s23
      %p322 = scmp.lt.s32.totalorder %s22, 1
      %s323 = scalar_select %p322, %s22, 1
      %p324 = scmp.lt.s32.totalorder %s321, 7
      %s325 = scalar_select %p324, %s321, 7
      %s326 = smul.addr %s323, 8
      %s327 = sadd.s32 %s325, %s326
      %s328 = smul.addr %s327, 4
      %s329 = scalar_lea.vmem %s5, %s328
      %s330 = smul.u32 4, %s23
      %p331 = scmp.lt.s32.totalorder %s22, 1
      %s332 = scalar_select %p331, %s22, 1
      %p333 = scmp.lt.s32.totalorder %s330, 7
      %s334 = scalar_select %p333, %s330, 7
      %s335 = smul.addr %s332, 8
      %s336 = sadd.s32 %s334, %s335
      %s337 = smul.addr %s336, 4
      %s338 = scalar_lea.vmem %s0, %s337
      %s339 = smul.u32 4, %s23
      %s340 = smul.u32 4, %s24
      %p341 = scmp.lt.s32.totalorder %s22, 1
      %s342 = scalar_select %p341, %s22, 1
      %p343 = scmp.lt.s32.totalorder %s340, 7
      %s344 = scalar_select %p343, %s340, 7
      %s345 = smul.addr %s342, 8
      %s346 = sadd.s32 %s344, %s345
      %s347 = smul.addr %s346, 4
      %s348 = scalar_lea.vmem %s1, %s347
      %s349 = smul.u32 4, %s24
      %s350 = smul.u32 4, %s24
      %p351 = scmp.lt.s32.totalorder %s22, 1
      %s352 = scalar_select %p351, %s22, 1
      %p353 = scmp.lt.s32.totalorder %s350, 7
      %s354 = scalar_select %p353, %s350, 7
      %s355 = smul.addr %s352, 8
      %s356 = sadd.s32 %s354, %s355
      %s357 = smul.addr %s356, 4
      %s358 = scalar_lea.vmem %s2, %s357
      %s359 = smul.u32 4, %s24
      %s360 = smul.u32 4, %s23
      %p361 = scmp.lt.s32.totalorder %s22, 1
      %s362 = scalar_select %p361, %s22, 1
      %p363 = scmp.lt.s32.totalorder %s360, 7
      %s364 = scalar_select %p363, %s360, 7
      %s365 = smul.addr %s362, 8
      %s366 = sadd.s32 %s364, %s365
      %s367 = smul.addr %s366, 4
      %s368 = scalar_lea.vmem %s3, %s367
      %s369 = smul.u32 4, %s23
      %s370 = smul.u32 4, %s23
      %p371 = scmp.lt.s32.totalorder %s22, 1
      %s372 = scalar_select %p371, %s22, 1
      %p373 = scmp.lt.s32.totalorder %s370, 7
      %s374 = scalar_select %p373, %s370, 7
      %s375 = smul.addr %s372, 8
      %s376 = sadd.s32 %s374, %s375
      %s377 = smul.addr %s376, 4
      %s378 = scalar_lea.vmem %s5, %s377
      %s379 = smul.u32 4, %s23
      %p381 = scmp.eq.s32.totalorder %s24, 0
      // Predicated region
      $region41: #{danet_forward.5} parent=39 // pred_check
        %p382 = pneg %p381
      $region42: #{danet_forward.5} parent=39 // pred_check_branch
        %384 = sbr.rel (%p382) target = $region44
      $region43: #{danet_forward.5} parent=39 // pred_region
        %vm385 = vcmask 7168
        %386 = vst.msk [vmem:[#allocation2] sm:$0xff] %vm385, -inf
        %387 = vst.msk [vmem:[#allocation2 + $0x8] sm:$0xff] %vm385, -inf
        %388 = vst.msk [vmem:[#allocation2 + $0x10] sm:$0xff] %vm385, -inf
        %389 = vst.msk [vmem:[#allocation2 + $0x18] sm:$0xff] %vm385, -inf
        %390 = vst.msk [vmem:[#allocation3] sm:$0xff] %vm385, 0.0
        %391 = vst.msk [vmem:[#allocation3 + $0x8] sm:$0xff] %vm385, 0.0
        %392 = vst.msk [vmem:[#allocation3 + $0x10] sm:$0xff] %vm385, 0.0
        %393 = vst.msk [vmem:[#allocation3 + $0x18] sm:$0xff] %vm385, 0.0
        %vm394 = vcmask 130048
        %395 = vst.msk [vmem:[#allocation4] sm:$0xff] %vm394, 0.0
        %396 = vst.msk [vmem:[#allocation4 + $0x8] sm:$0xff] %vm394, 0.0
        %397 = vst.msk [vmem:[#allocation4 + $0x10] sm:$0xff] %vm394, 0.0
        %398 = vst.msk [vmem:[#allocation4 + $0x18] sm:$0xff] %vm394, 0.0
      $region44: #{danet_forward.5} parent=39 // pred_fallthru
        _
      %v399 = vld [vmem:[%s338] sm:$0xf]
      %v400 = vld [vmem:[%s338 + $0x4] sm:$0xf]
      %v401 = vld [vmem:[%s338 + $0x8] sm:$0xf]
      %v402 = vld [vmem:[%s338 + $0xc] sm:$0xf]
      %v403 = vld [vmem:[%s348] sm:$0xf]
      %v404 = vld [vmem:[%s348 + $0x4] sm:$0xf]
      %v405 = vld [vmem:[%s348 + $0x8] sm:$0xf]
      %v406 = vld [vmem:[%s348 + $0xc] sm:$0xf]
      %v407 = vld [vmem:[%s358] sm:$0xf]
      %v408 = vld [vmem:[%s358 + $0x4] sm:$0xf]
      %v409 = vld [vmem:[%s358 + $0x8] sm:$0xf]
      %v410 = vld [vmem:[%s358 + $0xc] sm:$0xf]
      %v415 = vunpack.c.l.b16 %v399
      %v416 = vunpack.c.l.b16 %v400
      %v417 = vunpack.c.l.b16 %v401
      %v418 = vunpack.c.l.b16 %v402
      %v419 = vpack.c.b16 %v416, %v415
      %v420 = vpack.c.b16 %v418, %v417
      %v425 = vunpack.c.l.b16 %v403
      %v426 = vunpack.c.l.b16 %v404
      %v427 = vunpack.c.l.b16 %v405
      %v428 = vunpack.c.l.b16 %v406
      %v429 = vpack.c.b16 %v426, %v425
      %v430 = vpack.c.b16 %v428, %v427
      %vm431 = vcmask 64512
      %v433 = vsel %vm431, %v419, 0
      %v436 = vsel %vm431, %v420, 0
      %v439 = vsel %vm431, %v429, 0
      %v442 = vsel %vm431, %v430, 0
      %444 = vmatpush.bf16.xpose.msra.mxu0 0
      %445 = vmatpush.bf16.xpose.msra.mxu0 0
      %446 = vmatpush.bf16.xpose.msra.mxu0 0
      %447 = vmatpush.bf16.xpose.msra.mxu0 0
      %448 = vmatpush.bf16.xpose.msra.mxu0 0
      %449 = vmatpush.bf16.xpose.msra.mxu0 0
      %450 = vmatpush.bf16.xpose.msra.mxu0 %v442
      %451 = vmatpush.bf16.xpose.msra.mxu0 %v439
      %452 = vmatmul.bf16.gmra.mxu0 %v433
      %v453 = vpop.f32.mrf.mxu0
      %v454 = vadd.f32 0.0, %v453
      %v455 = vpop.f32.mrf.mxu0
      %v456 = vadd.f32 0.0, %v455
      %457 = vmatmul.bf16.gmra.mxu0 %v436
      %v458 = vpop.f32.mrf.mxu0
      %v459 = vadd.f32 0.0, %v458
      %v460 = vpop.f32.mrf.mxu0
      %v461 = vadd.f32 0.0, %v460
      %462 = vdwg.mxu0
      %v463 = vld [vmem:[#allocation2] sm:$0xff]
      %v464 = vld [vmem:[#allocation2 + $0x8] sm:$0xff]
      %v465 = vld [vmem:[#allocation2 + $0x10] sm:$0xff]
      %v466 = vld [vmem:[#allocation2 + $0x18] sm:$0xff]
      %vm467 = vcmask 261120
      %v468 = vsel %vm467, %v454, -inf
      %469 = vmax.xlane.f32.xlu0 %v468
      %v470 = vpop.xlane.xlu0 %469
      %v471 = vsel %vm467, %v456, -inf
      %472 = vmax.xlane.f32.xlu0 %v471
      %v473 = vpop.xlane.xlu0 %472
      %v474 = vsel %vm467, %v459, -inf
      %475 = vmax.xlane.f32.xlu0 %v474
      %v476 = vpop.xlane.xlu0 %475
      %v477 = vsel %vm467, %v461, -inf
      %478 = vmax.xlane.f32.xlu0 %v477
      %v479 = vpop.xlane.xlu0 %478
      %v480 = vmax.f32 %v463, %v470
      %v481 = vmax.f32 %v464, %v473
      %v482 = vmax.f32 %v465, %v476
      %v483 = vmax.f32 %v466, %v479
      %v484 = vsub.f32 %v463, %v480
      %v485 = vsub.f32 %v464, %v481
      %v486 = vsub.f32 %v465, %v482
      %v487 = vsub.f32 %v466, %v483
      %v488 = vmul.f32 %v484, 1.442695
      %v489 = vpow.pop %v488
      %v490 = vmul.f32 %v485, 1.442695
      %v491 = vpow.pop %v490
      %v492 = vmul.f32 %v486, 1.442695
      %v493 = vpow.pop %v492
      %v494 = vmul.f32 %v487, 1.442695
      %v495 = vpow.pop %v494
      %497 = vset.pattern.permute.xlu0 0
      %498 = vperm.xlu0 %497, %v480
      %v499 = vpop.permute.xlu0 %498
      %502 = vset.pattern.permute.xlu0 0
      %503 = vperm.xlu0 %502, %v481
      %v504 = vpop.permute.xlu0 %503
      %507 = vset.pattern.permute.xlu0 0
      %508 = vperm.xlu0 %507, %v482
      %v509 = vpop.permute.xlu0 %508
      %512 = vset.pattern.permute.xlu0 0
      %513 = vperm.xlu0 %512, %v483
      %v514 = vpop.permute.xlu0 %513
      %v516 = vsub.f32 %v454, %v499
      %v517 = vsub.f32 %v456, %v504
      %v518 = vsub.f32 %v459, %v509
      %v519 = vsub.f32 %v461, %v514
      %v520 = vmul.f32 %v516, 1.442695
      %v521 = vpow.pop %v520
      %v522 = vmul.f32 %v517, 1.442695
      %v523 = vpow.pop %v522
      %v524 = vmul.f32 %v518, 1.442695
      %v525 = vpow.pop %v524
      %v526 = vmul.f32 %v519, 1.442695
      %v527 = vpow.pop %v526
      %v528 = vld [vmem:[#allocation3] sm:$0xff]
      %v529 = vld [vmem:[#allocation3 + $0x8] sm:$0xff]
      %v530 = vld [vmem:[#allocation3 + $0x10] sm:$0xff]
      %v531 = vld [vmem:[#allocation3 + $0x18] sm:$0xff]
      %v532 = vmul.f32 %v489, %v528
      %v533 = vmul.f32 %v491, %v529
      %v534 = vmul.f32 %v493, %v530
      %v535 = vmul.f32 %v495, %v531
      %v536 = vsel %vm467, %v521, 0.0
      %537 = vadd.xlane.f32.xlu0 %v536
      %v538 = vpop.xlane.xlu0 %537
      %v539 = vsel %vm467, %v523, 0.0
      %540 = vadd.xlane.f32.xlu0 %v539
      %v541 = vpop.xlane.xlu0 %540
      %v542 = vsel %vm467, %v525, 0.0
      %543 = vadd.xlane.f32.xlu0 %v542
      %v544 = vpop.xlane.xlu0 %543
      %v545 = vsel %vm467, %v527, 0.0
      %546 = vadd.xlane.f32.xlu0 %v545
      %v547 = vpop.xlane.xlu0 %546
      %v548 = vadd.f32 %v532, %v538
      %v549 = vadd.f32 %v533, %v541
      %v550 = vadd.f32 %v534, %v544
      %v551 = vadd.f32 %v535, %v547
      %vm552 = vcmask 7168
      %553 = vst.msk [vmem:[#allocation3] sm:$0xff] %vm552, %v548
      %554 = vst.msk [vmem:[#allocation3 + $0x8] sm:$0xff] %vm552, %v549
      %555 = vst.msk [vmem:[#allocation3 + $0x10] sm:$0xff] %vm552, %v550
      %556 = vst.msk [vmem:[#allocation3 + $0x18] sm:$0xff] %vm552, %v551
      %v557 = vld [vmem:[#allocation4] sm:$0xff]
      %v558 = vld [vmem:[#allocation4 + $0x8] sm:$0xff]
      %v559 = vld [vmem:[#allocation4 + $0x10] sm:$0xff]
      %v560 = vld [vmem:[#allocation4 + $0x18] sm:$0xff]
      %562 = vset.pattern.permute.xlu0 0
      %563 = vperm.xlu0 %562, %v489
      %v564 = vpop.permute.xlu0 %563
      %567 = vset.pattern.permute.xlu0 0
      %568 = vperm.xlu0 %567, %v491
      %v569 = vpop.permute.xlu0 %568
      %572 = vset.pattern.permute.xlu0 0
      %573 = vperm.xlu0 %572, %v493
      %v574 = vpop.permute.xlu0 %573
      %577 = vset.pattern.permute.xlu0 0
      %578 = vperm.xlu0 %577, %v495
      %v579 = vpop.permute.xlu0 %578
      %v581 = vmul.f32 %v564, %v557
      %v582 = vmul.f32 %v569, %v558
      %v583 = vmul.f32 %v574, %v559
      %v584 = vmul.f32 %v579, %v560
      %v585 = vpack.c.bf16 %v523, %v521
      %v586 = vpack.c.bf16 %v527, %v525
      %v591 = vunpack.c.l.b16 %v407
      %v592 = vunpack.c.l.b16 %v408
      %v593 = vunpack.c.l.b16 %v409
      %v594 = vunpack.c.l.b16 %v410
      %v595 = vpack.c.b16 %v592, %v591
      %v596 = vpack.c.b16 %v594, %v593
      %v600 = vsel %vm467, %v585, 0
      %v603 = vsel %vm467, %v586, 0
      %605 = vmatpush.bf16.msra.mxu0 0
      %606 = vmatpush.bf16.msra.mxu0 0
      %607 = vmatpush.bf16.msra.mxu0 0
      %608 = vmatpush.bf16.msra.mxu0 0
      %609 = vmatpush.bf16.msra.mxu0 0
      %610 = vmatpush.bf16.msra.mxu0 0
      %611 = vmatpush.bf16.msra.mxu0 %v596
      %612 = vmatpush.bf16.msra.mxu0 %v595
      %613 = vmatmul.bf16.gmra.mxu0 %v600
      %v614 = vpop.f32.mrf.mxu0
      %v615 = vadd.f32 0.0, %v614
      %v616 = vpop.f32.mrf.mxu0
      %v617 = vadd.f32 0.0, %v616
      %618 = vmatmul.bf16.gmra.mxu0 %v603
      %v619 = vpop.f32.mrf.mxu0
      %v620 = vadd.f32 0.0, %v619
      %v621 = vpop.f32.mrf.mxu0
      %v622 = vadd.f32 0.0, %v621
      %623 = vdwg.mxu0
      %v624 = vadd.f32 %v581, %v615
      %v625 = vadd.f32 %v582, %v617
      %v626 = vadd.f32 %v583, %v620
      %v627 = vadd.f32 %v584, %v622
      %vm628 = vcmask 130048
      %629 = vst.msk [vmem:[#allocation4] sm:$0xff] %vm628, %v624
      %630 = vst.msk [vmem:[#allocation4 + $0x8] sm:$0xff] %vm628, %v625
      %631 = vst.msk [vmem:[#allocation4 + $0x10] sm:$0xff] %vm628, %v626
      %632 = vst.msk [vmem:[#allocation4 + $0x18] sm:$0xff] %vm628, %v627
      %633 = vst.msk [vmem:[#allocation2] sm:$0xff] %vm552, %v480
      %634 = vst.msk [vmem:[#allocation2 + $0x8] sm:$0xff] %vm552, %v481
      %635 = vst.msk [vmem:[#allocation2 + $0x10] sm:$0xff] %vm552, %v482
      %636 = vst.msk [vmem:[#allocation2 + $0x18] sm:$0xff] %vm552, %v483
      %p637 = scmp.eq.s32.totalorder %s24, 1
      // Predicated region
      $region45: #{danet_forward.5} parent=39 // pred_check
        %p638 = pneg %p637
      $region46: #{danet_forward.5} parent=39 // pred_check_branch
        %640 = sbr.rel (%p638) target = $region48
      $region47: #{danet_forward.5} parent=39 // pred_region
        %v641 = vld [vmem:[#allocation3] sm:$0xff]
        %v642 = vld [vmem:[#allocation3 + $0x8] sm:$0xff]
        %v643 = vld [vmem:[#allocation3 + $0x10] sm:$0xff]
        %v644 = vld [vmem:[#allocation3 + $0x18] sm:$0xff]
        %v645 = vrcp.pop %v641
        %v646 = vrcp.pop %v642
        %v647 = vrcp.pop %v643
        %v648 = vrcp.pop %v644
        %v649 = vld [vmem:[#allocation4] sm:$0xff]
        %v650 = vld [vmem:[#allocation4 + $0x8] sm:$0xff]
        %v651 = vld [vmem:[#allocation4 + $0x10] sm:$0xff]
        %v652 = vld [vmem:[#allocation4 + $0x18] sm:$0xff]
        %654 = vset.pattern.permute.xlu0 0
        %655 = vperm.xlu0 %654, %v645
        %v656 = vpop.permute.xlu0 %655
        %659 = vset.pattern.permute.xlu0 0
        %660 = vperm.xlu0 %659, %v646
        %v661 = vpop.permute.xlu0 %660
        %664 = vset.pattern.permute.xlu0 0
        %665 = vperm.xlu0 %664, %v647
        %v666 = vpop.permute.xlu0 %665
        %669 = vset.pattern.permute.xlu0 0
        %670 = vperm.xlu0 %669, %v648
        %v671 = vpop.permute.xlu0 %670
        %v673 = vmul.f32 %v649, %v656
        %v674 = vmul.f32 %v650, %v661
        %v675 = vmul.f32 %v651, %v666
        %v676 = vmul.f32 %v652, %v671
        %s677 = sld [smem:[#allocation5]]
        %v678 = vstv %s677
        %v679 = vmul.f32 %v678, %v673
        %v680 = vmul.f32 %v678, %v674
        %v681 = vmul.f32 %v678, %v675
        %v682 = vmul.f32 %v678, %v676
        %v683 = vld [vmem:[%s368] sm:$0xf]
        %v684 = vld [vmem:[%s368 + $0x4] sm:$0xf]
        %v685 = vld [vmem:[%s368 + $0x8] sm:$0xf]
        %v686 = vld [vmem:[%s368 + $0xc] sm:$0xf]
        %v687 = vunpack.c.l.bf16 %v683
        %v688 = vunpack.c.l.bf16 %v684
        %v689 = vunpack.c.l.bf16 %v685
        %v690 = vunpack.c.l.bf16 %v686
        %v691 = vadd.f32 %v679, %v687
        %v692 = vadd.f32 %v680, %v688
        %v693 = vadd.f32 %v681, %v689
        %v694 = vadd.f32 %v682, %v690
        %v695 = vpack.c.bf16 %v691, %v691
        %v696 = vpack.c.bf16 %v692, %v692
        %v697 = vpack.c.bf16 %v693, %v693
        %v698 = vpack.c.bf16 %v694, %v694
        %vm699 = vcmask 125952
        %700 = vst.msk [vmem:[%s378] sm:$0xf] %vm699, %v695
        %701 = vst.msk [vmem:[%s378 + $0x4] sm:$0xf] %vm699, %v696
        %702 = vst.msk [vmem:[%s378 + $0x8] sm:$0xf] %vm699, %v697
        %703 = vst.msk [vmem:[%s378 + $0xc] sm:$0xf] %vm699, %v698
      $region48: #{danet_forward.5} parent=39 // pred_fallthru
        _
      %s704 = smul.u32 4, %s23
      %p705 = scmp.lt.s32.totalorder %s22, 1
      %s706 = scalar_select %p705, %s22, 1
      %p707 = scmp.lt.s32.totalorder %s704, 7
      %s708 = scalar_select %p707, %s704, 7
      %s709 = smul.addr %s706, 8
      %s710 = sadd.s32 %s708, %s709
      %s711 = smul.addr %s710, 4
      %s712 = scalar_lea.vmem %s5, %s711
      // Predicated region
      $region49: #{danet_forward.5} parent=39 // pred_check
        %p713 = pneg %p189
      $region50: #{danet_forward.5} parent=39 // pred_check_branch
        %715 = sbr.rel (%p713) target = $region52
      $region51: #{danet_forward.5} parent=39 // pred_region
        %s716 = smul.u32 4, %s23
      $region52: #{danet_forward.5} parent=39 // pred_fallthru
        _
    $region40: #{danet_forward.5} parent=5 // pred_fallthru
      _
    %p717 = scmp.le.s32.totalorder 2, %s12
    // Predicated region
    $region53: #{danet_forward.5} parent=5 // pred_check
      %p718 = pneg %p717
    $region54: #{danet_forward.5} parent=5 // pred_check_branch
      %720 = sbr.rel (%p718) target = $region56
    $region55: #{danet_forward.5} parent=5 // pred_region
      %s721 = ssub.s32 %s12, 2
      // Predicated region
      $region57: #{danet_forward.5} parent=55 // pred_check
        %p722 = pneg %p195
      $region58: #{danet_forward.5} parent=55 // pred_check_branch
        %724 = sbr.rel (%p722) target = $region60
      $region59: #{danet_forward.5} parent=55 // pred_region
        %s725 = smul.u32 4, %s26
        %p726 = scmp.lt.s32.totalorder %s25, 1
        %s727 = scalar_select %p726, %s25, 1
        %p728 = scmp.lt.s32.totalorder %s725, 7
        %s729 = scalar_select %p728, %s725, 7
        %s730 = smul.addr %s727, 8
        %s731 = sadd.s32 %s729, %s730
        %s732 = smul.addr %s731, 4
        %s733 = scalar_lea.vmem %s5, %s732
      $region60: #{danet_forward.5} parent=55 // pred_fallthru
        _
    $region56: #{danet_forward.5} parent=5 // pred_fallthru
      _
  $region6: #{danet_forward.5} parent=0 // loop_footer
    %s16 = sadd.s32 1, %s12
  $region7: #{danet_forward.5} parent=0 // loop_footer_branch
    %11 = sbr.rel target = $region3
  $region8: #{danet_forward.5} parent=0 // loop_exit
    _

// kernel: danet_forward.7
$region0: #{danet_forward.7}
  #allocation0 [shape = 'u32[]', space=smem, size = 0x4, offset = 0x4, fixed_abs, tag = 'smem constant byte address 0x4 - core index']
  #allocation1 [shape = 'u32[72,128]{1,0:T(1,128)}', space=vmem, size = 0x9000, scoped, tag = 'internal scratch']
  %s0 = inlined_call_operand.vmem [shape: bf16[2,64,144], index: 0, kind: input, shape index: {}]
  %s1 = inlined_call_operand.vmem [shape: bf16[2,64,144], index: 1, kind: input, shape index: {}]
  %s2 = inlined_call_operand.vmem [shape: bf16[144,16], index: 2, kind: input, shape index: {}]
  %s3 = inlined_call_operand.vmem [shape: f32[1,16], index: 3, kind: input, shape index: {}]
  %s4 = inlined_call_operand.vmem [shape: bf16[144,16], index: 4, kind: input, shape index: {}]
  %s5 = inlined_call_operand.vmem [shape: f32[1,16], index: 5, kind: input, shape index: {}]
  %s6 = inlined_call_operand.vmem [shape: bf16[2,64,16], index: 6, kind: output, shape index: {0}]
  %s7 = inlined_call_operand.vmem [shape: bf16[2,64,16], index: 7, kind: output, shape index: {1}]
  %8 = xla_tuple %s6, %s7
  %s9 = sld [smem:[#allocation0]]
  $region65: #{danet_forward.7} parent=0
    _
  %s11 = ssub.s32 1, %s9
  %s12 = scalar_select 0, %s11, %s9
  loop: start=0, step=1, limit=6
  $region2: #{danet_forward.7} parent=0 // loop_pre_header
    _
  $region3: #{danet_forward.7} parent=0 // loop_header
    %s14 = sphi 0, %s18
    %p15 = scmp.ge.s32.totalorder %s14, 6
    %s21 = sphi 0, %s33
    %s22 = sphi 0, %s29
    %s23 = sphi 0, %s21
    %s24 = sphi 0, %s22
    %s25 = sphi 0, %s23
    %s26 = sphi 0, %s24
    %s38 = sphi 0, %s40
    %s41 = sphi 0, %s38
    %s42 = sphi 0, %s41
    %s58 = sphi 0, %s42
    %s66 = sphi 0, %s68
    %s69 = sphi 0, %s66
    %s70 = sphi 0, %s69
    %s86 = sphi 0, %s70
    %s90 = sphi 0, %s90
    %s92 = sphi 0, %s90
    %s93 = sphi 0, %s92
    %s107 = sphi 0, %s93
    %s111 = sphi 0, %s111
    %s113 = sphi 0, %s111
    %s114 = sphi 0, %s113
    %s128 = sphi 0, %s114
    %s132 = sphi 0, %s132
    %s134 = sphi 0, %s132
    %s135 = sphi 0, %s134
    %s149 = sphi 0, %s135
    %s153 = sphi 0, %s153
    %s155 = sphi 0, %s153
    %s156 = sphi 0, %s155
    %s170 = sphi 0, %s156
    %s178 = sphi 0, %s180
    %s181 = sphi 0, %s178
    %s182 = sphi 0, %s181
    %s198 = sphi 0, %s182
    %s206 = sphi 0, %s208
    %s209 = sphi 0, %s206
    %s210 = sphi 0, %s209
    %s226 = sphi 0, %s210
  $region4: #{danet_forward.7} parent=0 // loop_header_branch
    %17 = sbr.rel (%p15) target = $region8
  $region5: #{danet_forward.7} parent=0 // loop_body
    %s19 = ssub.s32 %s14, 1
    %s20 = ssub.s32 %s14, 2
    %s27 = sadd.s32 1, %s22
    %p28 = scmp.ge.s32.totalorder %s27, 2
    %s29 = scalar_select %p28, 0, %s27
    %s30 = sadd.s32 1, %s21
    %s31 = scalar_select %p28, %s30, %s21
    %p32 = scmp.ge.s32.totalorder %s31, 2
    %s33 = scalar_select %p32, 0, %s31
    %s34 = ssub.s32 %s21, %s33
    %s35 = ssub.s32 %s22, %s29
    %s36 = sor.u32 %s34, %s35
    %p37 = scmp.eq.s32.totalorder %s36, 0
    %s39 = sadd.s32 %s38, 1
    %s40 = scalar_select %p37, %s38, %s39
    %p43 = pneg %p37
    %p44 = scmp.eq.s32.totalorder %s14, 3
    %p45 = por %p43, %p44
    %p46 = scmp.ne.s32.totalorder %s38, %s41
    %p47 = scmp.eq.s32.totalorder %s14, 0
    %p48 = por %p46, %p47
    %p49 = scmp.ne.s32.totalorder %s38, %s41
    %p50 = scmp.eq.s32.totalorder %s19, 3
    %p51 = por %p49, %p50
    %p52 = scmp.ne.s32.totalorder %s41, %s42
    %p53 = scmp.eq.s32.totalorder %s19, 0
    %p54 = por %p52, %p53
    %p55 = scmp.ne.s32.totalorder %s41, %s42
    %p56 = scmp.eq.s32.totalorder %s20, 3
    %p57 = por %p55, %p56
    %p59 = scmp.ne.s32.totalorder %s42, %s58
    %p60 = scmp.eq.s32.totalorder %s20, 0
    %p61 = por %p59, %p60
    %s62 = ssub.s32 %s21, %s33
    %s63 = ssub.s32 %s22, %s29
    %s64 = sor.u32 %s62, %s63
    %p65 = scmp.eq.s32.totalorder %s64, 0
    %s67 = sadd.s32 %s66, 1
    %s68 = scalar_select %p65, %s66, %s67
    %p71 = pneg %p65
    %p72 = scmp.eq.s32.totalorder %s14, 3
    %p73 = por %p71, %p72
    %p74 = scmp.ne.s32.totalorder %s66, %s69
    %p75 = scmp.eq.s32.totalorder %s14, 0
    %p76 = por %p74, %p75
    %p77 = scmp.ne.s32.totalorder %s66, %s69
    %p78 = scmp.eq.s32.totalorder %s19, 3
    %p79 = por %p77, %p78
    %p80 = scmp.ne.s32.totalorder %s69, %s70
    %p81 = scmp.eq.s32.totalorder %s19, 0
    %p82 = por %p80, %p81
    %p83 = scmp.ne.s32.totalorder %s69, %s70
    %p84 = scmp.eq.s32.totalorder %s20, 3
    %p85 = por %p83, %p84
    %p87 = scmp.ne.s32.totalorder %s70, %s86
    %p88 = scmp.eq.s32.totalorder %s20, 0
    %p89 = por %p87, %p88
    %s91 = sadd.s32 %s90, 1
    %p94 = scmp.eq.s32.totalorder %s14, 3
    %p95 = scmp.ne.s32.totalorder %s90, %s92
    %p96 = scmp.eq.s32.totalorder %s14, 0
    %p97 = por %p95, %p96
    %p98 = scmp.ne.s32.totalorder %s90, %s92
    %p99 = scmp.eq.s32.totalorder %s19, 3
    %p100 = por %p98, %p99
    %p101 = scmp.ne.s32.totalorder %s92, %s93
    %p102 = scmp.eq.s32.totalorder %s19, 0
    %p103 = por %p101, %p102
    %p104 = scmp.ne.s32.totalorder %s92, %s93
    %p105 = scmp.eq.s32.totalorder %s20, 3
    %p106 = por %p104, %p105
    %p108 = scmp.ne.s32.totalorder %s93, %s107
    %p109 = scmp.eq.s32.totalorder %s20, 0
    %p110 = por %p108, %p109
    %s112 = sadd.s32 %s111, 1
    %p115 = scmp.eq.s32.totalorder %s14, 3
    %p116 = scmp.ne.s32.totalorder %s111, %s113
    %p117 = scmp.eq.s32.totalorder %s14, 0
    %p118 = por %p116, %p117
    %p119 = scmp.ne.s32.totalorder %s111, %s113
    %p120 = scmp.eq.s32.totalorder %s19, 3
    %p121 = por %p119, %p120
    %p122 = scmp.ne.s32.totalorder %s113, %s114
    %p123 = scmp.eq.s32.totalorder %s19, 0
    %p124 = por %p122, %p123
    %p125 = scmp.ne.s32.totalorder %s113, %s114
    %p126 = scmp.eq.s32.totalorder %s20, 3
    %p127 = por %p125, %p126
    %p129 = scmp.ne.s32.totalorder %s114, %s128
    %p130 = scmp.eq.s32.totalorder %s20, 0
    %p131 = por %p129, %p130
    %s133 = sadd.s32 %s132, 1
    %p136 = scmp.eq.s32.totalorder %s14, 3
    %p137 = scmp.ne.s32.totalorder %s132, %s134
    %p138 = scmp.eq.s32.totalorder %s14, 0
    %p139 = por %p137, %p138
    %p140 = scmp.ne.s32.totalorder %s132, %s134
    %p141 = scmp.eq.s32.totalorder %s19, 3
    %p142 = por %p140, %p141
    %p143 = scmp.ne.s32.totalorder %s134, %s135
    %p144 = scmp.eq.s32.totalorder %s19, 0
    %p145 = por %p143, %p144
    %p146 = scmp.ne.s32.totalorder %s134, %s135
    %p147 = scmp.eq.s32.totalorder %s20, 3
    %p148 = por %p146, %p147
    %p150 = scmp.ne.s32.totalorder %s135, %s149
    %p151 = scmp.eq.s32.totalorder %s20, 0
    %p152 = por %p150, %p151
    %s154 = sadd.s32 %s153, 1
    %p157 = scmp.eq.s32.totalorder %s14, 3
    %p158 = scmp.ne.s32.totalorder %s153, %s155
    %p159 = scmp.eq.s32.totalorder %s14, 0
    %p160 = por %p158, %p159
    %p161 = scmp.ne.s32.totalorder %s153, %s155
    %p162 = scmp.eq.s32.totalorder %s19, 3
    %p163 = por %p161, %p162
    %p164 = scmp.ne.s32.totalorder %s155, %s156
    %p165 = scmp.eq.s32.totalorder %s19, 0
    %p166 = por %p164, %p165
    %p167 = scmp.ne.s32.totalorder %s155, %s156
    %p168 = scmp.eq.s32.totalorder %s20, 3
    %p169 = por %p167, %p168
    %p171 = scmp.ne.s32.totalorder %s156, %s170
    %p172 = scmp.eq.s32.totalorder %s20, 0
    %p173 = por %p171, %p172
    %s174 = ssub.s32 %s21, %s33
    %s175 = ssub.s32 %s22, %s29
    %s176 = sor.u32 %s174, %s175
    %p177 = scmp.eq.s32.totalorder %s176, 0
    %s179 = sadd.s32 %s178, 1
    %s180 = scalar_select %p177, %s178, %s179
    %p183 = pneg %p177
    %p184 = scmp.eq.s32.totalorder %s14, 3
    %p185 = por %p183, %p184
    %p186 = scmp.ne.s32.totalorder %s178, %s181
    %p187 = scmp.eq.s32.totalorder %s14, 0
    %p188 = por %p186, %p187
    %p189 = scmp.ne.s32.totalorder %s178, %s181
    %p190 = scmp.eq.s32.totalorder %s19, 3
    %p191 = por %p189, %p190
    %p192 = scmp.ne.s32.totalorder %s181, %s182
    %p193 = scmp.eq.s32.totalorder %s19, 0
    %p194 = por %p192, %p193
    %p195 = scmp.ne.s32.totalorder %s181, %s182
    %p196 = scmp.eq.s32.totalorder %s20, 3
    %p197 = por %p195, %p196
    %p199 = scmp.ne.s32.totalorder %s182, %s198
    %p200 = scmp.eq.s32.totalorder %s20, 0
    %p201 = por %p199, %p200
    %s202 = ssub.s32 %s21, %s33
    %s203 = ssub.s32 %s22, %s29
    %s204 = sor.u32 %s202, %s203
    %p205 = scmp.eq.s32.totalorder %s204, 0
    %s207 = sadd.s32 %s206, 1
    %s208 = scalar_select %p205, %s206, %s207
    %p211 = pneg %p205
    %p212 = scmp.eq.s32.totalorder %s14, 3
    %p213 = por %p211, %p212
    %p214 = scmp.ne.s32.totalorder %s206, %s209
    %p215 = scmp.eq.s32.totalorder %s14, 0
    %p216 = por %p214, %p215
    %p217 = scmp.ne.s32.totalorder %s206, %s209
    %p218 = scmp.eq.s32.totalorder %s19, 3
    %p219 = por %p217, %p218
    %p220 = scmp.ne.s32.totalorder %s209, %s210
    %p221 = scmp.eq.s32.totalorder %s19, 0
    %p222 = por %p220, %p221
    %p223 = scmp.ne.s32.totalorder %s209, %s210
    %p224 = scmp.eq.s32.totalorder %s20, 3
    %p225 = por %p223, %p224
    %p227 = scmp.ne.s32.totalorder %s210, %s226
    %p228 = scmp.eq.s32.totalorder %s20, 0
    %p229 = por %p227, %p228
    %p230 = scmp.le.s32.totalorder 1, %s14
    %p231 = scmp.lt.s32.totalorder %s14, 5
    %p232 = pnand %p230, %p231
    %p233 = pneg %p232
    // Predicated region
    $region9: #{danet_forward.7} parent=5 // pred_check
      _
    $region10: #{danet_forward.7} parent=5 // pred_check_branch
      %235 = sbr.rel (%p232) target = $region12
    $region11: #{danet_forward.7} parent=5 // pred_region
      %s236 = ssub.s32 %s14, 1
      // Predicated region
      $region13: #{danet_forward.7} parent=11 // pred_check
        %p237 = pneg %p103
      $region14: #{danet_forward.7} parent=11 // pred_check_branch
        %239 = sbr.rel (%p237) target = $region16
      $region15: #{danet_forward.7} parent=11 // pred_region
        _
      $region16: #{danet_forward.7} parent=11 // pred_fallthru
        _
      // Predicated region
      $region17: #{danet_forward.7} parent=11 // pred_check
        %p240 = pneg %p124
      $region18: #{danet_forward.7} parent=11 // pred_check_branch
        %242 = sbr.rel (%p240) target = $region20
      $region19: #{danet_forward.7} parent=11 // pred_region
        _
      $region20: #{danet_forward.7} parent=11 // pred_fallthru
        _
      // Predicated region
      $region21: #{danet_forward.7} parent=11 // pred_check
        %p243 = pneg %p145
      $region22: #{danet_forward.7} parent=11 // pred_check_branch
        %245 = sbr.rel (%p243) target = $region24
      $region23: #{danet_forward.7} parent=11 // pred_region
        _
      $region24: #{danet_forward.7} parent=11 // pred_fallthru
        _
      // Predicated region
      $region25: #{danet_forward.7} parent=11 // pred_check
        %p246 = pneg %p166
      $region26: #{danet_forward.7} parent=11 // pred_check_branch
        %248 = sbr.rel (%p246) target = $region28
      $region27: #{danet_forward.7} parent=11 // pred_region
        _
      $region28: #{danet_forward.7} parent=11 // pred_fallthru
        _
    $region12: #{danet_forward.7} parent=5 // pred_fallthru
      _
    %p249 = scmp.lt.s32.totalorder %s14, 4
    // Predicated region
    $region29: #{danet_forward.7} parent=5 // pred_check
      %p250 = pneg %p249
    $region30: #{danet_forward.7} parent=5 // pred_check_branch
      %252 = sbr.rel (%p250) target = $region32
    $region31: #{danet_forward.7} parent=5 // pred_region
      // Predicated region
      $region33: #{danet_forward.7} parent=31 // pred_check
        %p253 = pneg %p48
      $region34: #{danet_forward.7} parent=31 // pred_check_branch
        %255 = sbr.rel (%p253) target = $region36
      $region35: #{danet_forward.7} parent=31 // pred_region
        %s256 = smul.u32 4, %s22
        %p257 = scmp.lt.s32.totalorder %s21, 1
        %s258 = scalar_select %p257, %s21, 1
        %p259 = scmp.lt.s32.totalorder %s256, 7
        %s260 = scalar_select %p259, %s256, 7
        %s261 = smul.addr %s260, 2
        %s262 = smul.addr %s258, 16
        %s263 = sadd.s32 %s261, %s262
        %s264 = smul.addr %s263, 4
        %s265 = scalar_lea.vmem %s0, %s264
        %s266 = smul.u32 4, %s22
      $region36: #{danet_forward.7} parent=31 // pred_fallthru
        _
      // Predicated region
      $region37: #{danet_forward.7} parent=31 // pred_check
        %p267 = pneg %p76
      $region38: #{danet_forward.7} parent=31 // pred_check_branch
        %269 = sbr.rel (%p267) target = $region40
      $region39: #{danet_forward.7} parent=31 // pred_region
        %s270 = smul.u32 4, %s22
        %p271 = scmp.lt.s32.totalorder %s21, 1
        %s272 = scalar_select %p271, %s21, 1
        %p273 = scmp.lt.s32.totalorder %s270, 7
        %s274 = scalar_select %p273, %s270, 7
        %s275 = smul.addr %s274, 2
        %s276 = smul.addr %s272, 16
        %s277 = sadd.s32 %s275, %s276
        %s278 = smul.addr %s277, 4
        %s279 = scalar_lea.vmem %s1, %s278
        %s280 = smul.u32 4, %s22
      $region40: #{danet_forward.7} parent=31 // pred_fallthru
        _
    $region32: #{danet_forward.7} parent=5 // pred_fallthru
      _
    %p281 = scmp.le.s32.totalorder 1, %s14
    %p282 = scmp.lt.s32.totalorder %s14, 5
    %p283 = pnand %p281, %p282
    %p284 = pneg %p283
    // Predicated region
    $region41: #{danet_forward.7} parent=5 // pred_check
      _
    $region42: #{danet_forward.7} parent=5 // pred_check_branch
      %286 = sbr.rel (%p283) target = $region44
    $region43: #{danet_forward.7} parent=5 // pred_region
      %s287 = ssub.s32 %s14, 1
      %s288 = smul.u32 4, %s24
      %p289 = scmp.lt.s32.totalorder %s23, 1
      %s290 = scalar_select %p289, %s23, 1
      %p291 = scmp.lt.s32.totalorder %s288, 7
      %s292 = scalar_select %p291, %s288, 7
      %s293 = smul.addr %s292, 2
      %s294 = smul.addr %s290, 16
      %s295 = sadd.s32 %s293, %s294
      %s296 = smul.addr %s295, 4
      %s297 = scalar_lea.vmem %s0, %s296
      %p298 = pneg %p54
      %p299 = pneg %p51
      %s300 = smul.u32 4, %s24
      %p301 = scmp.lt.s32.totalorder %s23, 1
      %s302 = scalar_select %p301, %s23, 1
      %p303 = scmp.lt.s32.totalorder %s300, 7
      %s304 = scalar_select %p303, %s300, 7
      %s305 = smul.addr %s304, 2
      %s306 = smul.addr %s302, 16
      %s307 = sadd.s32 %s305, %s306
      %s308 = smul.addr %s307, 4
      %s309 = scalar_lea.vmem %s1, %s308
      %p310 = pneg %p82
      %p311 = pneg %p79
      %p312 = pneg %p103
      %p313 = pneg %p100
      %p314 = pneg %p124
      %p315 = pneg %p121
      %p316 = pneg %p145
      %p317 = pneg %p142
      %p318 = pneg %p166
      %p319 = pneg %p163
      %p320 = pneg %p194
      %p321 = pneg %p191
      %s322 = smul.u32 4, %s24
      %p323 = scmp.lt.s32.totalorder %s23, 1
      %s324 = scalar_select %p323, %s23, 1
      %p325 = scmp.lt.s32.totalorder %s322, 7
      %s326 = scalar_select %p325, %s322, 7
      %s327 = smul.addr %s324, 8
      %s328 = sadd.s32 %s326, %s327
      %s329 = smul.addr %s328, 4
      %s330 = scalar_lea.vmem %s6, %s329
      %p331 = pneg %p222
      %p332 = pneg %p219
      %s333 = smul.u32 4, %s24
      %p334 = scmp.lt.s32.totalorder %s23, 1
      %s335 = scalar_select %p334, %s23, 1
      %p336 = scmp.lt.s32.totalorder %s333, 7
      %s337 = scalar_select %p336, %s333, 7
      %s338 = smul.addr %s335, 8
      %s339 = sadd.s32 %s337, %s338
      %s340 = smul.addr %s339, 4
      %s341 = scalar_lea.vmem %s7, %s340
      %s342 = smul.u32 4, %s24
      %p343 = scmp.lt.s32.totalorder %s23, 1
      %s344 = scalar_select %p343, %s23, 1
      %p345 = scmp.lt.s32.totalorder %s342, 7
      %s346 = scalar_select %p345, %s342, 7
      %s347 = smul.addr %s346, 2
      %s348 = smul.addr %s344, 16
      %s349 = sadd.s32 %s347, %s348
      %s350 = smul.addr %s349, 4
      %s351 = scalar_lea.vmem %s0, %s350
      %s352 = smul.u32 4, %s24
      %s353 = smul.u32 4, %s24
      %p354 = scmp.lt.s32.totalorder %s23, 1
      %s355 = scalar_select %p354, %s23, 1
      %p356 = scmp.lt.s32.totalorder %s353, 7
      %s357 = scalar_select %p356, %s353, 7
      %s358 = smul.addr %s357, 2
      %s359 = smul.addr %s355, 16
      %s360 = sadd.s32 %s358, %s359
      %s361 = smul.addr %s360, 4
      %s362 = scalar_lea.vmem %s1, %s361
      %s363 = smul.u32 4, %s24
      %s364 = smul.u32 4, %s24
      %p365 = scmp.lt.s32.totalorder %s23, 1
      %s366 = scalar_select %p365, %s23, 1
      %p367 = scmp.lt.s32.totalorder %s364, 7
      %s368 = scalar_select %p367, %s364, 7
      %s369 = smul.addr %s366, 8
      %s370 = sadd.s32 %s368, %s369
      %s371 = smul.addr %s370, 4
      %s372 = scalar_lea.vmem %s6, %s371
      %s373 = smul.u32 4, %s24
      %s374 = smul.u32 4, %s24
      %p375 = scmp.lt.s32.totalorder %s23, 1
      %s376 = scalar_select %p375, %s23, 1
      %p377 = scmp.lt.s32.totalorder %s374, 7
      %s378 = scalar_select %p377, %s374, 7
      %s379 = smul.addr %s376, 8
      %s380 = sadd.s32 %s378, %s379
      %s381 = smul.addr %s380, 4
      %s382 = scalar_lea.vmem %s7, %s381
      %s383 = smul.u32 4, %s24
      %v385 = vld [vmem:[%s351] sm:$0xff]
      %v386 = vld [vmem:[%s351 + $0x8] sm:$0xff]
      %v387 = vld [vmem:[%s351 + $0x10] sm:$0xff]
      %v388 = vld [vmem:[%s351 + $0x18] sm:$0xff]
      %v389 = vld [vmem:[%s2] sm:$0xf]
      %v390 = vld [vmem:[%s2 + $0x4] sm:$0xf]
      %v391 = vld [vmem:[%s2 + $0x8] sm:$0xf]
      %v392 = vld [vmem:[%s2 + $0xc] sm:$0xf]
      %v393 = vld [vmem:[%s2 + $0x10] sm:$0xf]
      %v394 = vld [vmem:[%s2 + $0x14] sm:$0xf]
      %v395 = vld [vmem:[%s2 + $0x18] sm:$0xf]
      %v396 = vld [vmem:[%s2 + $0x1c] sm:$0xf]
      %v397 = vld [vmem:[%s2 + $0x20] sm:$0xf]
      %v398 = vld [vmem:[%s2 + $0x24] sm:$0xf]
      %v399 = vld [vmem:[%s2 + $0x28] sm:$0xf]
      %v400 = vld [vmem:[%s2 + $0x2c] sm:$0xf]
      %v401 = vld [vmem:[%s2 + $0x30] sm:$0xf]
      %v402 = vld [vmem:[%s2 + $0x34] sm:$0xf]
      %v403 = vld [vmem:[%s2 + $0x38] sm:$0xf]
      %v404 = vld [vmem:[%s2 + $0x3c] sm:$0xf]
      %v405 = vld [vmem:[%s2 + $0x40] sm:$0xf]
      %v406 = vld [vmem:[%s2 + $0x44] sm:$0xf]
      %v407 = vld [vmem:[%s3] sm:$0x1]
      %v409 = vperm.slane %v407, 0
      %v415 = vunpack.c.l.b16 %v385
      %v416 = vunpack.c.h.b16 %v385
      %v417 = vunpack.c.l.b16 %v386
      %v418 = vunpack.c.h.b16 %v386
      %v419 = vunpack.c.l.b16 %v387
      %v420 = vunpack.c.h.b16 %v387
      %v421 = vunpack.c.l.b16 %v388
      %v422 = vunpack.c.h.b16 %v388
      %v423 = vpack.c.b16 %v417, %v415
      %v424 = vpack.c.b16 %v418, %v416
      %v425 = vpack.c.b16 %v421, %v419
      %v426 = vpack.c.b16 %v422, %v420
      %v447 = vunpack.c.l.b16 %v389
      %v448 = vunpack.c.l.b16 %v390
      %v449 = vunpack.c.l.b16 %v391
      %v450 = vunpack.c.l.b16 %v392
      %v451 = vunpack.c.l.b16 %v393
      %v452 = vunpack.c.l.b16 %v394
      %v453 = vunpack.c.l.b16 %v395
      %v454 = vunpack.c.l.b16 %v396
      %v455 = vunpack.c.l.b16 %v397
      %v456 = vunpack.c.l.b16 %v398
      %v457 = vunpack.c.l.b16 %v399
      %v458 = vunpack.c.l.b16 %v400
      %v459 = vunpack.c.l.b16 %v401
      %v460 = vunpack.c.l.b16 %v402
      %v461 = vunpack.c.l.b16 %v403
      %v462 = vunpack.c.l.b16 %v404
      %v463 = vunpack.c.l.b16 %v405
      %v464 = vunpack.c.l.b16 %v406
      %v465 = vpack.c.b16 %v448, %v447
      %v466 = vpack.c.b16 %v450, %v449
      %v467 = vpack.c.b16 %v452, %v451
      %v468 = vpack.c.b16 %v454, %v453
      %v469 = vpack.c.b16 %v456, %v455
      %v470 = vpack.c.b16 %v458, %v457
      %v471 = vpack.c.b16 %v460, %v459
      %v472 = vpack.c.b16 %v462, %v461
      %v473 = vpack.c.b16 %v464, %v463
      %vm483 = vcmask 130048
      %v485 = vsel %vm483, %v424, 0
      %v488 = vsel %vm483, %v426, 0
      %490 = vmatpush.bf16.msra.mxu0 %v472
      %491 = vmatpush.bf16.msra.mxu0 %v471
      %492 = vmatpush.bf16.msra.mxu0 %v470
      %493 = vmatpush.bf16.msra.mxu0 %v469
      %494 = vmatpush.bf16.msra.mxu0 %v468
      %495 = vmatpush.bf16.msra.mxu0 %v467
      %496 = vmatpush.bf16.msra.mxu0 %v466
      %497 = vmatpush.bf16.msra.mxu0 %v465
      %498 = vmatmul.bf16.gmra.mxu0 %v423
      %v499 = vpop.f32.mrf.mxu0
      %v500 = vadd.f32 %v409, %v499
      %v501 = vpop.f32.mrf.mxu0
      %v502 = vadd.f32 %v409, %v501
      %503 = vmatmul.bf16.gmra.mxu0 %v425
      %v504 = vpop.f32.mrf.mxu0
      %v505 = vadd.f32 %v409, %v504
      %v506 = vpop.f32.mrf.mxu0
      %v507 = vadd.f32 %v409, %v506
      %508 = vdwg.mxu0
      %509 = vmatpush.bf16.msra.mxu0 0
      %510 = vmatpush.bf16.msra.mxu0 0
      %511 = vmatpush.bf16.msra.mxu0 0
      %512 = vmatpush.bf16.msra.mxu0 0
      %513 = vmatpush.bf16.msra.mxu0 0
      %514 = vmatpush.bf16.msra.mxu0 0
      %515 = vmatpush.bf16.msra.mxu0 0
      %516 = vmatpush.bf16.msra.mxu0 %v473
      %517 = vmatmul.bf16.gmra.mxu0 %v485
      %v518 = vpop.f32.mrf.mxu0
      %v519 = vadd.f32 %v500, %v518
      %v520 = vpop.f32.mrf.mxu0
      %v521 = vadd.f32 %v502, %v520
      %522 = vmatmul.bf16.gmra.mxu0 %v488
      %v523 = vpop.f32.mrf.mxu0
      %v524 = vadd.f32 %v505, %v523
      %v525 = vpop.f32.mrf.mxu0
      %v526 = vadd.f32 %v507, %v525
      %527 = vdwg.mxu0
      %v528 = vmax.f32 %v519, 0.0
      %v529 = vmax.f32 %v521, 0.0
      %v530 = vmax.f32 %v524, 0.0
      %v531 = vmax.f32 %v526, 0.0
      %v532 = vld [vmem:[%s362] sm:$0xff]
      %v533 = vld [vmem:[%s362 + $0x8] sm:$0xff]
      %v534 = vld [vmem:[%s362 + $0x10] sm:$0xff]
      %v535 = vld [vmem:[%s362 + $0x18] sm:$0xff]
      %v536 = vld [vmem:[%s4] sm:$0xf]
      %v537 = vld [vmem:[%s4 + $0x4] sm:$0xf]
      %v538 = vld [vmem:[%s4 + $0x8] sm:$0xf]
      %v539 = vld [vmem:[%s4 + $0xc] sm:$0xf]
      %v540 = vld [vmem:[%s4 + $0x10] sm:$0xf]
      %v541 = vld [vmem:[%s4 + $0x14] sm:$0xf]
      %v542 = vld [vmem:[%s4 + $0x18] sm:$0xf]
      %v543 = vld [vmem:[%s4 + $0x1c] sm:$0xf]
      %v544 = vld [vmem:[%s4 + $0x20] sm:$0xf]
      %v545 = vld [vmem:[%s4 + $0x24] sm:$0xf]
      %v546 = vld [vmem:[%s4 + $0x28] sm:$0xf]
      %v547 = vld [vmem:[%s4 + $0x2c] sm:$0xf]
      %v548 = vld [vmem:[%s4 + $0x30] sm:$0xf]
      %v549 = vld [vmem:[%s4 + $0x34] sm:$0xf]
      %v550 = vld [vmem:[%s4 + $0x38] sm:$0xf]
      %v551 = vld [vmem:[%s4 + $0x3c] sm:$0xf]
      %v552 = vld [vmem:[%s4 + $0x40] sm:$0xf]
      %v553 = vld [vmem:[%s4 + $0x44] sm:$0xf]
      %v554 = vld [vmem:[%s5] sm:$0x1]
      %v556 = vperm.slane %v554, 0
      %v562 = vunpack.c.l.b16 %v532
      %v563 = vunpack.c.h.b16 %v532
      %v564 = vunpack.c.l.b16 %v533
      %v565 = vunpack.c.h.b16 %v533
      %v566 = vunpack.c.l.b16 %v534
      %v567 = vunpack.c.h.b16 %v534
      %v568 = vunpack.c.l.b16 %v535
      %v569 = vunpack.c.h.b16 %v535
      %v570 = vpack.c.b16 %v564, %v562
      %v571 = vpack.c.b16 %v565, %v563
      %v572 = vpack.c.b16 %v568, %v566
      %v573 = vpack.c.b16 %v569, %v567
      %v594 = vunpack.c.l.b16 %v536
      %v595 = vunpack.c.l.b16 %v537
      %v596 = vunpack.c.l.b16 %v538
      %v597 = vunpack.c.l.b16 %v539
      %v598 = vunpack.c.l.b16 %v540
      %v599 = vunpack.c.l.b16 %v541
      %v600 = vunpack.c.l.b16 %v542
      %v601 = vunpack.c.l.b16 %v543
      %v602 = vunpack.c.l.b16 %v544
      %v603 = vunpack.c.l.b16 %v545
      %v604 = vunpack.c.l.b16 %v546
      %v605 = vunpack.c.l.b16 %v547
      %v606 = vunpack.c.l.b16 %v548
      %v607 = vunpack.c.l.b16 %v549
      %v608 = vunpack.c.l.b16 %v550
      %v609 = vunpack.c.l.b16 %v551
      %v610 = vunpack.c.l.b16 %v552
      %v611 = vunpack.c.l.b16 %v553
      %v612 = vpack.c.b16 %v595, %v594
      %v613 = vpack.c.b16 %v597, %v596
      %v614 = vpack.c.b16 %v599, %v598
      %v615 = vpack.c.b16 %v601, %v600
      %v616 = vpack.c.b16 %v603, %v602
      %v617 = vpack.c.b16 %v605, %v604
      %v618 = vpack.c.b16 %v607, %v606
      %v619 = vpack.c.b16 %v609, %v608
      %v620 = vpack.c.b16 %v611, %v610
      %v631 = vsel %vm483, %v571, 0
      %v634 = vsel %vm483, %v573, 0
      %636 = vmatpush.bf16.msra.mxu0 %v619
      %637 = vmatpush.bf16.msra.mxu0 %v618
      %638 = vmatpush.bf16.msra.mxu0 %v617
      %639 = vmatpush.bf16.msra.mxu0 %v616
      %640 = vmatpush.bf16.msra.mxu0 %v615
      %641 = vmatpush.bf16.msra.mxu0 %v614
      %642 = vmatpush.bf16.msra.mxu0 %v613
      %643 = vmatpush.bf16.msra.mxu0 %v612
      %644 = vmatmul.bf16.gmra.mxu0 %v570
      %v645 = vpop.f32.mrf.mxu0
      %v646 = vadd.f32 %v556, %v645
      %v647 = vpop.f32.mrf.mxu0
      %v648 = vadd.f32 %v556, %v647
      %649 = vmatmul.bf16.gmra.mxu0 %v572
      %v650 = vpop.f32.mrf.mxu0
      %v651 = vadd.f32 %v556, %v650
      %v652 = vpop.f32.mrf.mxu0
      %v653 = vadd.f32 %v556, %v652
      %654 = vdwg.mxu0
      %655 = vmatpush.bf16.msra.mxu0 0
      %656 = vmatpush.bf16.msra.mxu0 0
      %657 = vmatpush.bf16.msra.mxu0 0
      %658 = vmatpush.bf16.msra.mxu0 0
      %659 = vmatpush.bf16.msra.mxu0 0
      %660 = vmatpush.bf16.msra.mxu0 0
      %661 = vmatpush.bf16.msra.mxu0 0
      %662 = vmatpush.bf16.msra.mxu0 %v620
      %663 = vmatmul.bf16.gmra.mxu0 %v631
      %v664 = vpop.f32.mrf.mxu0
      %v665 = vadd.f32 %v646, %v664
      %v666 = vpop.f32.mrf.mxu0
      %v667 = vadd.f32 %v648, %v666
      %668 = vmatmul.bf16.gmra.mxu0 %v634
      %v669 = vpop.f32.mrf.mxu0
      %v670 = vadd.f32 %v651, %v669
      %v671 = vpop.f32.mrf.mxu0
      %v672 = vadd.f32 %v653, %v671
      %673 = vdwg.mxu0
      %v674 = vmax.f32 %v665, 0.0
      %v675 = vmax.f32 %v667, 0.0
      %v676 = vmax.f32 %v670, 0.0
      %v677 = vmax.f32 %v672, 0.0
      %v678 = vpack.c.bf16 %v528, %v528
      %v679 = vpack.c.bf16 %v529, %v529
      %v680 = vpack.c.bf16 %v530, %v530
      %v681 = vpack.c.bf16 %v531, %v531
      %vm682 = vcmask 125952
      %683 = vst.msk [vmem:[%s372] sm:$0xf] %vm682, %v678
      %684 = vst.msk [vmem:[%s372 + $0x4] sm:$0xf] %vm682, %v679
      %685 = vst.msk [vmem:[%s372 + $0x8] sm:$0xf] %vm682, %v680
      %686 = vst.msk [vmem:[%s372 + $0xc] sm:$0xf] %vm682, %v681
      %v687 = vpack.c.bf16 %v674, %v674
      %v688 = vpack.c.bf16 %v675, %v675
      %v689 = vpack.c.bf16 %v676, %v676
      %v690 = vpack.c.bf16 %v677, %v677
      %691 = vst.msk [vmem:[%s382] sm:$0xf] %vm682, %v687
      %692 = vst.msk [vmem:[%s382 + $0x4] sm:$0xf] %vm682, %v688
      %693 = vst.msk [vmem:[%s382 + $0x8] sm:$0xf] %vm682, %v689
      %694 = vst.msk [vmem:[%s382 + $0xc] sm:$0xf] %vm682, %v690
      %s695 = smul.u32 4, %s24
      %p696 = scmp.lt.s32.totalorder %s23, 1
      %s697 = scalar_select %p696, %s23, 1
      %p698 = scmp.lt.s32.totalorder %s695, 7
      %s699 = scalar_select %p698, %s695, 7
      %s700 = smul.addr %s697, 8
      %s701 = sadd.s32 %s699, %s700
      %s702 = smul.addr %s701, 4
      %s703 = scalar_lea.vmem %s6, %s702
      %s704 = smul.u32 4, %s24
      %p705 = scmp.lt.s32.totalorder %s23, 1
      %s706 = scalar_select %p705, %s23, 1
      %p707 = scmp.lt.s32.totalorder %s704, 7
      %s708 = scalar_select %p707, %s704, 7
      %s709 = smul.addr %s706, 8
      %s710 = sadd.s32 %s708, %s709
      %s711 = smul.addr %s710, 4
      %s712 = scalar_lea.vmem %s7, %s711
      // Predicated region
      $region45: #{danet_forward.7} parent=43 // pred_check
        %p713 = pneg %p191
      $region46: #{danet_forward.7} parent=43 // pred_check_branch
        %715 = sbr.rel (%p713) target = $region48
      $region47: #{danet_forward.7} parent=43 // pred_region
        %s716 = smul.u32 4, %s24
      $region48: #{danet_forward.7} parent=43 // pred_fallthru
        _
      // Predicated region
      $region49: #{danet_forward.7} parent=43 // pred_check
        %p717 = pneg %p219
      $region50: #{danet_forward.7} parent=43 // pred_check_branch
        %719 = sbr.rel (%p717) target = $region52
      $region51: #{danet_forward.7} parent=43 // pred_region
        %s720 = smul.u32 4, %s24
      $region52: #{danet_forward.7} parent=43 // pred_fallthru
        _
    $region44: #{danet_forward.7} parent=5 // pred_fallthru
      _
    %p721 = scmp.le.s32.totalorder 2, %s14
    // Predicated region
    $region53: #{danet_forward.7} parent=5 // pred_check
      %p722 = pneg %p721
    $region54: #{danet_forward.7} parent=5 // pred_check_branch
      %724 = sbr.rel (%p722) target = $region56
    $region55: #{danet_forward.7} parent=5 // pred_region
      %s725 = ssub.s32 %s14, 2
      // Predicated region
      $region57: #{danet_forward.7} parent=55 // pred_check
        %p726 = pneg %p197
      $region58: #{danet_forward.7} parent=55 // pred_check_branch
        %728 = sbr.rel (%p726) target = $region60
      $region59: #{danet_forward.7} parent=55 // pred_region
        %s729 = smul.u32 4, %s26
        %p730 = scmp.lt.s32.totalorder %s25, 1
        %s731 = scalar_select %p730, %s25, 1
        %p732 = scmp.lt.s32.totalorder %s729, 7
        %s733 = scalar_select %p732, %s729, 7
        %s734 = smul.addr %s731, 8
        %s735 = sadd.s32 %s733, %s734
        %s736 = smul.addr %s735, 4
        %s737 = scalar_lea.vmem %s6, %s736
      $region60: #{danet_forward.7} parent=55 // pred_fallthru
        _
      // Predicated region
      $region61: #{danet_forward.7} parent=55 // pred_check
        %p738 = pneg %p225
      $region62: #{danet_forward.7} parent=55 // pred_check_branch
        %740 = sbr.rel (%p738) target = $region64
      $region63: #{danet_forward.7} parent=55 // pred_region
        %s741 = smul.u32 4, %s26
        %p742 = scmp.lt.s32.totalorder %s25, 1
        %s743 = scalar_select %p742, %s25, 1
        %p744 = scmp.lt.s32.totalorder %s741, 7
        %s745 = scalar_select %p744, %s741, 7
        %s746 = smul.addr %s743, 8
        %s747 = sadd.s32 %s745, %s746
        %s748 = smul.addr %s747, 4
        %s749 = scalar_lea.vmem %s7, %s748
      $region64: #{danet_forward.7} parent=55 // pred_fallthru
        _
    $region56: #{danet_forward.7} parent=5 // pred_fallthru
      _
  $region6: #{danet_forward.7} parent=0 // loop_footer
    %s18 = sadd.s32 1, %s14
  $region7: #{danet_forward.7} parent=0 // loop_footer_branch
    %13 = sbr.rel target = $region3
  $region8: #{danet_forward.7} parent=0 // loop_exit
    _

</llo_original>
